<compile_context>
chip_gen: v6e
topology: v6e:2x2x1
jax: 0.10.0
libtpu: 0.0.40
codegen_flags: <defaults>
</compile_context>

<pallas_src>
import functools

import jax
import jax.numpy as jnp
from jax.experimental import pallas as pl
from jax.experimental.pallas import tpu as pltpu


# ----------------------------------------------------------------------------
# Small helpers
# ----------------------------------------------------------------------------
def _round_up(x, m):
    return (x + m - 1) // m * m


def _vmem_cap_bytes():
    """~85% of physical per-core VMEM (headroom for compiler scratch)."""
    phys = 128 << 20
    try:
        info = pltpu.get_tpu_info()
        phys = int(getattr(info, "vmem_capacity_bytes", phys))
    except Exception:
        pass
    return min(int(phys * 0.85), 100 << 20)


_SINGLE_BUFFER_OK = None


def _single_buffer_supported():
    """Probe (once, eagerly, outside any trace) whether this Pallas build
    accepts pipeline_mode=pl.Buffered(1); fall back to default buffering."""
    global _SINGLE_BUFFER_OK
    if _SINGLE_BUFFER_OK is None:
        try:
            def _copy(x_ref, o_ref):
                o_ref[...] = x_ref[...]

            probe = pl.pallas_call(
                _copy,
                grid=(2,),
                in_specs=[pl.BlockSpec((8, 128), lambda i: (0, 0),
                                       pipeline_mode=pl.Buffered(1))],
                out_specs=pl.BlockSpec((8, 128), lambda i: (0, 0)),
                out_shape=jax.ShapeDtypeStruct((8, 128), jnp.float32),
            )
            jax.block_until_ready(probe(jnp.zeros((8, 128), jnp.float32)))
            _SINGLE_BUFFER_OK = True
        except Exception:
            _SINGLE_BUFFER_OK = False
    return _SINGLE_BUFFER_OK


def _layer_plan(T, B, H, out_itemsize):
    """Choose padded sizes, batch block and time chunk under the VMEM budget."""
    Bp = _round_up(B, 8)
    Hp = _round_up(H, 128)
    # Batch grid axis: >=2 blocks when the padded batch allows it, so the
    # "parallel" leading grid dim can feed v7x's second TensorCore.
    if Bp >= 16 and Bp % 16 == 0:
        Bb = Bp // 2
    elif Bp >= 16:
        Bb = 8
    else:
        Bb = Bp
    cap = _vmem_cap_bytes()
    max_chunk = 128 if cap >= (80 << 20) else 64
    whh_bytes = Hp * 4 * Hp * 2                      # bf16 recurrent weight
    fixed = 2 * whh_bytes + 8 * Bb * Hp * 4          # weights + states/scratch
    per_t = 2 * (Bb * 4 * Hp * 2) + 2 * (Bb * Hp * out_itemsize)  # gx + out (x2 buf)
    budget = max(cap - fixed - (8 << 20), per_t)
    Tc = max(1, min(T, max_chunk, budget // per_t))
    Tp = _round_up(T, Tc)
    return Bp, Hp, Bb, Tc, Tp


def _vmem_limit_bytes(Bp, Hp, Bb, Tc, out_itemsize, single_buf):
    wbuf = 1 if single_buf else 2
    needed = (2 * Tc * Bb * 4 * Hp * 2          # gx blocks (bf16, double-buffered)
              + 2 * Tc * Bb * Hp * out_itemsize  # out blocks
              + wbuf * Hp * 4 * Hp * 2           # W_hh^T
              + 2 * wbuf * Bb * Hp * 4           # h0, c0
              + 2 * Bb * Hp * 4                  # h/c scratch
              + 4 * Bb * Hp * 4)                 # hN/cN out blocks
    return int(min(_vmem_cap_bytes(), max(needed + (8 << 20), 16 << 20)))


def _bspec(shape, index_map, single_buf):
    if single_buf:
        return pl.BlockSpec(shape, index_map, pipeline_mode=pl.Buffered(1))
    return pl.BlockSpec(shape, index_map)


# ----------------------------------------------------------------------------
# Kernel
# ----------------------------------------------------------------------------
def _lstm_kernel(gx_ref, h0_ref, c0_ref, whh_ref,
                 out_ref, hN_ref, cN_ref,
                 h_sc, c_sc, *,
                 t_chunk, hidden, seq_len, needs_mask, reg_carry):
    """One grid step = `t_chunk` LSTM time steps for one batch block.

    gx_ref : (Tc, Bb, 4Hp) bf16   precomputed x @ W_ih^T + b (gate-padded)
    whh_ref: (Hp, 4Hp)     bf16   pre-transposed, gate-padded recurrent weight
    grid   : (batch_blocks [parallel], time_chunks [arbitrary])
    """
    Hp = hidden
    t_blk = pl.program_id(1)

    @pl.when(t_blk == 0)
    def _():
        h_sc[...] = h0_ref[...]
        c_sc[...] = c0_ref[...]

    def fast_sigmoid(x):
        # sigmoid(x) = 0.5*(tanh(0.5*x)+1): one EUP op instead of exp + recip.
        return 0.5 * jnp.tanh(0.5 * x) + 0.5

    def cell(t, h_prev, c_prev):
        # Only the recurrent matmul sits on the serial critical path; operands
        # are bf16 (native MXU rate), accumulation stays f32.
        g = gx_ref[t].astype(jnp.float32) + jnp.dot(
            h_prev.astype(jnp.bfloat16), whh_ref[...],
            preferred_element_type=jnp.float32)
        i_g = fast_sigmoid(g[:, 0 * Hp:1 * Hp])
        f_g = fast_sigmoid(g[:, 1 * Hp:2 * Hp])
        g_g = jnp.tanh(g[:, 2 * Hp:3 * Hp])
        o_g = fast_sigmoid(g[:, 3 * Hp:4 * Hp])
        c_new = f_g * c_prev + i_g * g_g
        h_new = o_g * jnp.tanh(c_new)
        if needs_mask:
            valid = (t_blk * t_chunk + t) < seq_len
            h_new = jnp.where(valid, h_new, h_prev)   # padded tail: keep state
            c_new = jnp.where(valid, c_new, c_prev)
        out_ref[t] = h_new.astype(out_ref.dtype)
        return h_new, c_new

    unroll = True if t_chunk <= 16 else 8

    if reg_carry:
        # h/c carried in vregs across the chunk; scratch written once per chunk
        # (removes 2 vld + 2 vst per step from the serial path).
        def step(t, carry):
            return cell(t, *carry)

        h_fin, c_fin = jax.lax.fori_loop(
            0, t_chunk, step, (h_sc[...], c_sc[...]), unroll=unroll)
        h_sc[...] = h_fin
        c_sc[...] = c_fin
    else:
        # Large state: keep the carry in VMEM scratch to avoid vreg spills.
        def step(t, carry):
            h_new, c_new = cell(t, h_sc[...], c_sc[...])
            h_sc[...] = h_new
            c_sc[...] = c_new
            return carry

        jax.lax.fori_loop(0, t_chunk, step, 0, unroll=unroll)

    @pl.when(t_blk == pl.num_programs(1) - 1)
    def _():
        hN_ref[...] = h_sc[...].astype(hN_ref.dtype)
        cN_ref[...] = c_sc[...].astype(cN_ref.dtype)


# ----------------------------------------------------------------------------
# Layer wrapper
# ----------------------------------------------------------------------------
@functools.partial(jax.jit,
                   static_argnames=("t_chunk", "b_block", "single_buf",
                                    "vmem_limit"))
def _lstm_layer_jit(x, h0, c0, w_ih, w_hh, b, *,
                    t_chunk, b_block, single_buf, vmem_limit):
    """One LSTM layer. x: (T, Bx, Ix) (Bx may already be padded); h0/c0: (B, H).
    Returns (T, Bp, Hp) padded outputs and (Bp, Hp) final states."""
    T, Bx, Ix = x.shape
    B, H = h0.shape
    I = w_ih.shape[1]
    Bp = _round_up(max(Bx, B), 8)
    Hp = _round_up(H, 128)
    Tp = _round_up(T, t_chunk)
    Bb = b_block

    # ---- Gate-padded parameters (padding folded in BEFORE the projection).
    w_ih_p = jnp.pad(w_ih.reshape(4, H, I), ((0, 0), (0, Hp - H), (0, Ix - I)))
    w_ih_p = w_ih_p.reshape(4 * Hp, Ix)
    b_p = jnp.pad(jnp.reshape(b, (4, H)), ((0, 0), (0, Hp - H)))
    b_p = b_p.reshape(1, 1, 4 * Hp)
    # Recurrent weight: (4H,H) -> transposed + gate-padded (Hp, 4Hp), bf16.
    # Padded rows/cols are zero so padded h/c lanes never influence real lanes.
    whh_p = jnp.transpose(w_hh.reshape(4, H, H), (2, 0, 1))     # (in_h, gate, out_h)
    whh_p = jnp.pad(whh_p, ((0, Hp - H), (0, 0), (0, Hp - H)))
    whh_p = whh_p.reshape(Hp, 4 * Hp).astype(jnp.bfloat16)

    # ---- Pad activations/states (batch + ragged time on x; batch/H on states).
    x_p = jnp.pad(x, ((0, Tp - T), (0, Bp - Bx), (0, 0)))
    h0_p = jnp.pad(h0.astype(jnp.float32), ((0, Bp - B), (0, Hp - H)))
    c0_p = jnp.pad(c0.astype(jnp.float32), ((0, Bp - B), (0, Hp - H)))

    # ---- Hoisted input projection for the whole sequence (off the serial
    # path): one big matmul, bias folded in, streamed to the kernel as bf16.
    gx = jnp.einsum('tbi,gi->tbg', x_p, w_ih_p,
                    preferred_element_type=jnp.float32)
    gx = (gx + b_p).astype(jnp.bfloat16)

    out_dtype = x.dtype
    reg_carry = (Bb * Hp * 4) <= 8 * 4096   # state fits in a few vregs

    kernel = functools.partial(
        _lstm_kernel, t_chunk=t_chunk, hidden=Hp, seq_len=T,
        needs_mask=(Tp != T), reg_carry=reg_carry)

    grid_spec = pltpu.PrefetchScalarGridSpec(
        num_scalar_prefetch=0,
        grid=(Bp // Bb, Tp // t_chunk),
        in_specs=[
            pl.BlockSpec((t_chunk, Bb, 4 * Hp), lambda bi, ti: (ti, bi, 0)),
            _bspec((Bb, Hp), lambda bi, ti: (bi, 0), single_buf),        # h0
            _bspec((Bb, Hp), lambda bi, ti: (bi, 0), single_buf),        # c0
            _bspec((Hp, 4 * Hp), lambda bi, ti: (0, 0), single_buf),     # W_hh^T
        ],
        out_specs=[
            pl.BlockSpec((t_chunk, Bb, Hp), lambda bi, ti: (ti, bi, 0)),
            pl.BlockSpec((Bb, Hp), lambda bi, ti: (bi, 0)),
            pl.BlockSpec((Bb, Hp), lambda bi, ti: (bi, 0)),
        ],
        scratch_shapes=[
            pltpu.VMEM((Bb, Hp), jnp.float32),   # h carry
            pltpu.VMEM((Bb, Hp), jnp.float32),   # c carry
        ],
    )

    out_p, hN_p, cN_p = pl.pallas_call(
        kernel,
        grid_spec=grid_spec,
        out_shape=(
            jax.ShapeDtypeStruct((Tp, Bp, Hp), out_dtype),
            jax.ShapeDtypeStruct((Bp, Hp), jnp.float32),
            jax.ShapeDtypeStruct((Bp, Hp), jnp.float32),
        ),
        compiler_params=pltpu.CompilerParams(
            dimension_semantics=("parallel", "arbitrary"),
            vmem_limit_bytes=vmem_limit,
        ),
    )(gx, h0_p, c0_p, whh_p)

    if Tp != T:
        out_p = out_p[:T]
    return out_p, hN_p, cN_p


def _lstm_layer_padded(x, h0, c0, w_ih, w_hh, b):
    """Run one layer; x's batch may already be padded. Returns padded outputs."""
    single_buf = _single_buffer_supported()     # resolved eagerly, not in-trace
    T, Bx, _ = x.shape
    B, H = h0.shape
    itemsize = jnp.dtype(x.dtype).itemsize
    Bp, Hp, Bb, Tc, _ = _layer_plan(T, max(Bx, B), H, itemsize)
    vlim = _vmem_limit_bytes(Bp, Hp, Bb, Tc, itemsize, single_buf)
    return _lstm_layer_jit(x, h0, c0, w_ih, w_hh, b,
                           t_chunk=Tc, b_block=Bb,
                           single_buf=single_buf, vmem_limit=vlim)


def lstm_layer_pallas(x, h0, c0, w_ih, w_hh, b):
    """Single-layer LSTM over x: (T, B, I) -> outputs (T, B, H), hN, cN."""
    T, B, _ = x.shape
    H = h0.shape[-1]
    out_p, hN_p, cN_p = _lstm_layer_padded(x, h0, c0, w_ih, w_hh, b)
    return out_p[:, :B, :H], hN_p[:B, :H], cN_p[:B, :H]


def lstm_pallas(x, h0, c0, params):
    """Multi-layer LSTM. h0/c0: (num_layers, B, H). params: per-layer
    (w_ih, w_hh, b_combined). Padded activations are kept between layers and
    sliced back to (B, H) only once at the end."""
    num_layers, B, H = h0.shape
    inp = x
    hs, cs = [], []
    for layer in range(num_layers):
        w_ih, w_hh, b = params[layer]
        inp, hN_p, cN_p = _lstm_layer_padded(inp, h0[layer], c0[layer],
                                             w_ih, w_hh, b)
        hs.append(hN_p)
        cs.append(cN_p)
    out = inp[:, :B, :H]
    hN = jnp.stack(hs)[:, :B, :H]
    cN = jnp.stack(cs)[:, :B, :H]
    return out, hN, cN


# ----------------------------------------------------------------------------
# Pure-JAX reference + parameter init
# ----------------------------------------------------------------------------
def _lstm_layer_ref(x, h0, c0, w_ih, w_hh, b):
    H = h0.shape[-1]

    def step(carry, x_t):
        h, c = carry
        gates = x_t @ w_ih.T + h @ w_hh.T + b
        i = jax.nn.sigmoid(gates[:, 0 * H:1 * H])
        f = jax.nn.sigmoid(gates[:, 1 * H:2 * H])
        g = jnp.tanh(gates[:, 2 * H:3 * H])
        o = jax.nn.sigmoid(gates[:, 3 * H:4 * H])
        c = f * c + i * g
        h = o * jnp.tanh(c)
        return (h, c), h

    (hN, cN), outs = jax.lax.scan(step, (h0, c0), x)
    return outs, hN, cN


def _init_lstm_params(key, input_size, hidden_size, num_layers):
    """Deterministic parameter init (uniform, like PyTorch's default range)."""
    params = []
    k = 1.0 / jnp.sqrt(hidden_size)
    for layer in range(num_layers):
        in_sz = input_size if layer == 0 else hidden_size
        key, k1, k2, k3, k4 = jax.random.split(key, 5)
        w_ih = jax.random.uniform(k1, (4 * hidden_size, in_sz), jnp.float32, -k, k)
        w_hh = jax.random.uniform(k2, (4 * hidden_size, hidden_size), jnp.float32, -k, k)
        b_ih = jax.random.uniform(k3, (4 * hidden_size,), jnp.float32, -k, k)
        b_hh = jax.random.uniform(k4, (4 * hidden_size,), jnp.float32, -k, k)
        b = (b_ih + b_hh).reshape(1, 4 * hidden_size)
        params.append((w_ih, w_hh, b))
    return params


# ----------------------------------------------------------------------------
# CBIA module
# ----------------------------------------------------------------------------
class CBIA:
    """JAX/Pallas port of the CBIA module.

    __init__ runs the encoder LSTM over `enc_inputs` (the role of `inp_length`
    in the original code), collecting hidden states. forward() builds a decoder
    LSTM from the encoder's final (h, c) and runs it over `inp`.
    """

    def __init__(self, input_size, hidden_state, cell_state, num_layers,
                 enc_inputs, key):
        self.input_size = input_size
        self.num_layers = num_layers
        self.hidden_size = hidden_state.shape[-1]

        key, k_enc, k_dec = jax.random.split(key, 3)
        self.enc_params = _init_lstm_params(k_enc, input_size,
                                            self.hidden_size, num_layers)
        self.dec_params = _init_lstm_params(k_dec, input_size,
                                            self.hidden_size, num_layers)

        self.hidden_state = hidden_state
        self.cell_state = cell_state
        self.h_states = [self.hidden_state]

        # Encoder unroll (matches the loop in the original __init__).
        _, self.hidden_state, self.cell_state = lstm_pallas(
            enc_inputs, self.hidden_state, self.cell_state, self.enc_params)
        self.h_states.append(self.hidden_state)

    def forward(self, inp):
        # Decoder LSTM initialized from the encoder's final (h, c).
        d_outputs, _, _ = lstm_pallas(
            inp, self.hidden_state, self.cell_state, self.dec_params)
        # TODO(synk): `unembed` is undefined in the reference module; return
        # raw decoder outputs instead.
        return d_outputs


if __name__ == "__main__":
    # Small shapes consistent with the module.
    B = 2            # batch
    I = 8            # input_size
    H = 32           # hidden_size
    L = 1            # num_layers
    T_ENC = 8        # encoder sequence length
    T_DEC = 8        # decoder (target) sequence length

    key = jax.random.PRNGKey(0)
    key, k_h, k_c, k_xe, k_xd = jax.random.split(key, 5)

    hidden_state = jax.random.normal(k_h, (L, B, H), jnp.float32)
    cell_state = jax.random.normal(k_c, (L, B, H), jnp.float32)
    enc_inputs = jax.random.normal(k_xe, (T_ENC, B, I), jnp.float32)
    dec_inputs = jax.random.normal(k_xd, (T_DEC, B, I), jnp.float32)

    # Resolve the single-buffer capability probe before any model tracing.
    _single_buffer_supported()

    model = CBIA(I, hidden_state, cell_state, L, enc_inputs, key)

    # Correctness check of the Pallas LSTM layer vs a pure-JAX f32 scan
    # reference. Tolerance is loosened vs pure-f32 because W_hh / h operands
    # and the G_x stream are intentionally bf16 (per the perf review).
    w_ih, w_hh, b = model.enc_params[0]
    out_k, hN_k, cN_k = lstm_layer_pallas(enc_inputs, hidden_state[0],
                                          cell_state[0], w_ih, w_hh, b)
    out_r, hN_r, cN_r = _lstm_layer_ref(enc_inputs, hidden_state[0],
                                        cell_state[0], w_ih, w_hh, b)
    assert jnp.allclose(out_k, out_r, atol=2e-2, rtol=2e-2)
    assert jnp.allclose(hN_k, hN_r, atol=2e-2, rtol=2e-2)
    assert jnp.allclose(cN_k, cN_r, atol=2e-2, rtol=2e-2)

    out = model.forward(dec_inputs)
    out = jax.block_until_ready(out)

    assert out.shape == (T_DEC, B, H), out.shape
    assert jnp.all(jnp.isfinite(out))
    print("KERNEL_OK")
</pallas_src>

<mosaic_0001>
module attributes {stable_mosaic.version = 11 : i64} {
  func.func @_copy(%arg0: i32, %arg1: memref<8x128xf32, #tpu.memory_space<vmem>>, %arg2: memref<8x128xf32, #tpu.memory_space<vmem>>) attributes {dimension_semantics = [#tpu.dimension_semantics<arbitrary>], iteration_bounds = array<i64: 2>, scalar_prefetch = 0 : i64, scratch_operands = 0 : i64, tpu.core_type = #tpu.core_type<tc>, window_params = [{pipeline_mode = #tpu.pipeline_mode<synchronous>, transform_indices = @transform_0, window_bounds = array<i64: 8, 128>}, {pipeline_mode = #tpu.pipeline_mode<synchronous>, transform_indices = @transform_1, window_bounds = array<i64: 8, 128>}]} {
    %c0 = arith.constant 0 : index
    %c0_0 = arith.constant 0 : index
    %0 = vector.load %arg1[%c0, %c0_0] : memref<8x128xf32, #tpu.memory_space<vmem>>, vector<8x128xf32>
    %c0_1 = arith.constant 0 : index
    %c0_2 = arith.constant 0 : index
    %1 = vector.load %arg2[%c0_1, %c0_2] : memref<8x128xf32, #tpu.memory_space<vmem>>, vector<8x128xf32>
    tpu.vector_store %arg2[%c0_1, %c0_2], %0 {strides = array<i32>} : memref<8x128xf32, #tpu.memory_space<vmem>>, vector<8x128xf32>,
    return
  }
  func.func @transform_0(%arg0: i32) -> (i32, i32) {
    %c0_i32 = arith.constant 0 : i32
    %c0_i32_0 = arith.constant 0 : i32
    %c0_i32_1 = arith.constant 0 : i32
    return %c0_i32, %c0_i32_0 : i32, i32
  }
  func.func @transform_1(%arg0: i32) -> (i32, i32) {
    %c0_i32 = arith.constant 0 : i32
    %c0_i32_0 = arith.constant 0 : i32
    %c0_i32_1 = arith.constant 0 : i32
    return %c0_i32, %c0_i32_0 : i32, i32
  }
}

module attributes {stable_mosaic.version = 11 : i64} {
  func.func @_lstm_kernel(%arg0: i32, %arg1: i32, %arg2: memref<8x8x512xbf16, #tpu.memory_space<vmem>>, %arg3: memref<8x128xf32, #tpu.memory_space<vmem>>, %arg4: memref<8x128xf32, #tpu.memory_space<vmem>>, %arg5: memref<128x512xbf16, #tpu.memory_space<vmem>>, %arg6: memref<8x8x128xf32, #tpu.memory_space<vmem>>, %arg7: memref<8x128xf32, #tpu.memory_space<vmem>>, %arg8: memref<8x128xf32, #tpu.memory_space<vmem>>, %arg9: memref<8x128xf32, #tpu.memory_space<vmem>>, %arg10: memref<8x128xf32, #tpu.memory_space<vmem>>) attributes {dimension_semantics = [#tpu.dimension_semantics<parallel>, #tpu.dimension_semantics<arbitrary>], iteration_bounds = array<i64: 1, 1>, scalar_prefetch = 0 : i64, scratch_operands = 2 : i64, tpu.core_type = #tpu.core_type<tc>, window_params = [{transform_indices = @transform_0, window_bounds = array<i64: 8, 8, 512>}, {transform_indices = @transform_1, window_bounds = array<i64: 8, 128>}, {transform_indices = @transform_2, window_bounds = array<i64: 8, 128>}, {pipeline_mode = #tpu.pipeline_mode<synchronous>, transform_indices = @transform_3, window_bounds = array<i64: 128, 512>}, {transform_indices = @transform_4, window_bounds = array<i64: 8, 8, 128>}, {transform_indices = @transform_5, window_bounds = array<i64: 8, 128>}, {transform_indices = @transform_6, window_bounds = array<i64: 8, 128>}]} {
    %c0_i32 = arith.constant 0 : i32
    %0 = arith.cmpi eq, %arg1, %c0_i32 : i32
    %1 = arith.extui %0 : i1 to i32
    %c0_i32_0 = arith.constant 0 : i32
    %2 = arith.cmpi ne, %1, %c0_i32_0 : i32
    scf.if %2 {
      %c0_138 = arith.constant 0 : index
      %c0_139 = arith.constant 0 : index
      %354 = vector.load %arg3[%c0_138, %c0_139] : memref<8x128xf32, #tpu.memory_space<vmem>>, vector<8x128xf32>
      %c0_140 = arith.constant 0 : index
      %c0_141 = arith.constant 0 : index
      %355 = vector.load %arg9[%c0_140, %c0_141] : memref<8x128xf32, #tpu.memory_space<vmem>>, vector<8x128xf32>
      tpu.vector_store %arg9[%c0_140, %c0_141], %354 {strides = array<i32>} : memref<8x128xf32, #tpu.memory_space<vmem>>, vector<8x128xf32>,
      %c0_142 = arith.constant 0 : index
      %c0_143 = arith.constant 0 : index
      %356 = vector.load %arg4[%c0_142, %c0_143] : memref<8x128xf32, #tpu.memory_space<vmem>>, vector<8x128xf32>
      %c0_144 = arith.constant 0 : index
      %c0_145 = arith.constant 0 : index
      %357 = vector.load %arg10[%c0_144, %c0_145] : memref<8x128xf32, #tpu.memory_space<vmem>>, vector<8x128xf32>
      tpu.vector_store %arg10[%c0_144, %c0_145], %356 {strides = array<i32>} : memref<8x128xf32, #tpu.memory_space<vmem>>, vector<8x128xf32>,
    } else {
    }
    %c0 = arith.constant 0 : index
    %c0_1 = arith.constant 0 : index
    %3 = vector.load %arg9[%c0, %c0_1] : memref<8x128xf32, #tpu.memory_space<vmem>>, vector<8x128xf32>
    %c0_2 = arith.constant 0 : index
    %c0_3 = arith.constant 0 : index
    %4 = vector.load %arg10[%c0_2, %c0_3] : memref<8x128xf32, #tpu.memory_space<vmem>>, vector<8x128xf32>
    %c0_i32_4 = arith.constant 0 : i32
    %5 = arith.index_cast %c0_i32_4 : i32 to index
    %c0_5 = arith.constant 0 : index
    %c0_6 = arith.constant 0 : index
    %6 = vector.load %arg2[%5, %c0_5, %c0_6] : memref<8x8x512xbf16, #tpu.memory_space<vmem>>, vector<1x8x512xbf16>
    %7 = vector.shape_cast %6 : vector<1x8x512xbf16> to vector<8x512xbf16>
    %8 = arith.extf %7 : vector<8x512xbf16> to vector<8x512xf32>
    %9 = arith.truncf %3 : vector<8x128xf32> to vector<8x128xbf16>
    %c0_7 = arith.constant 0 : index
    %c0_8 = arith.constant 0 : index
    %10 = vector.load %arg5[%c0_7, %c0_8] : memref<128x512xbf16, #tpu.memory_space<vmem>>, vector<128x512xbf16>
    %cst = arith.constant dense<0.000000e+00> : vector<8x512xf32>
    %11 = tpu.matmul %9, %10, %cst {dimension_numbers = #tpu.dot_dimension_numbers<[1], [0], [0], [1], [0, 0, 1, 1], [], []>} : vector<8x128xbf16>, vector<128x512xbf16>, vector<8x512xf32> -> vector<8x512xf32>
    %12 = arith.addf %8, %11 : vector<8x512xf32>
    %13 = vector.extract_strided_slice %12 {offsets = [0, 0], sizes = [8, 128], strides = [1, 1]} : vector<8x512xf32> to vector<8x128xf32>
    %cst_9 = arith.constant 5.000000e-01 : f32
    %14 = vector.broadcast %cst_9 : f32 to vector<8x128xf32>
    %15 = arith.mulf %14, %13 : vector<8x128xf32>
    %16 = math.tanh %15 : vector<8x128xf32>
    %cst_10 = arith.constant 5.000000e-01 : f32
    %17 = vector.broadcast %cst_10 : f32 to vector<8x128xf32>
    %18 = arith.mulf %17, %16 : vector<8x128xf32>
    %cst_11 = arith.constant 5.000000e-01 : f32
    %19 = vector.broadcast %cst_11 : f32 to vector<8x128xf32>
    %20 = arith.addf %18, %19 : vector<8x128xf32>
    %21 = vector.extract_strided_slice %12 {offsets = [0, 128], sizes = [8, 128], strides = [1, 1]} : vector<8x512xf32> to vector<8x128xf32>
    %cst_12 = arith.constant 5.000000e-01 : f32
    %22 = vector.broadcast %cst_12 : f32 to vector<8x128xf32>
    %23 = arith.mulf %22, %21 : vector<8x128xf32>
    %24 = math.tanh %23 : vector<8x128xf32>
    %cst_13 = arith.constant 5.000000e-01 : f32
    %25 = vector.broadcast %cst_13 : f32 to vector<8x128xf32>
    %26 = arith.mulf %25, %24 : vector<8x128xf32>
    %cst_14 = arith.constant 5.000000e-01 : f32
    %27 = vector.broadcast %cst_14 : f32 to vector<8x128xf32>
    %28 = arith.addf %26, %27 : vector<8x128xf32>
    %29 = vector.extract_strided_slice %12 {offsets = [0, 256], sizes = [8, 128], strides = [1, 1]} : vector<8x512xf32> to vector<8x128xf32>
    %30 = math.tanh %29 : vector<8x128xf32>
    %31 = vector.extract_strided_slice %12 {offsets = [0, 384], sizes = [8, 128], strides = [1, 1]} : vector<8x512xf32> to vector<8x128xf32>
    %cst_15 = arith.constant 5.000000e-01 : f32
    %32 = vector.broadcast %cst_15 : f32 to vector<8x128xf32>
    %33 = arith.mulf %32, %31 : vector<8x128xf32>
    %34 = math.tanh %33 : vector<8x128xf32>
    %cst_16 = arith.constant 5.000000e-01 : f32
    %35 = vector.broadcast %cst_16 : f32 to vector<8x128xf32>
    %36 = arith.mulf %35, %34 : vector<8x128xf32>
    %cst_17 = arith.constant 5.000000e-01 : f32
    %37 = vector.broadcast %cst_17 : f32 to vector<8x128xf32>
    %38 = arith.addf %36, %37 : vector<8x128xf32>
    %39 = arith.mulf %28, %4 : vector<8x128xf32>
    %40 = arith.mulf %20, %30 : vector<8x128xf32>
    %41 = arith.addf %39, %40 : vector<8x128xf32>
    %42 = math.tanh %41 : vector<8x128xf32>
    %43 = arith.mulf %38, %42 : vector<8x128xf32>
    %44 = arith.index_cast %c0_i32_4 : i32 to index
    %c0_18 = arith.constant 0 : index
    %c0_19 = arith.constant 0 : index
    %45 = vector.load %arg6[%44, %c0_18, %c0_19] : memref<8x8x128xf32, #tpu.memory_space<vmem>>, vector<1x8x128xf32>
    %46 = vector.shape_cast %45 : vector<1x8x128xf32> to vector<8x128xf32>
    %47 = vector.shape_cast %43 : vector<8x128xf32> to vector<1x8x128xf32>
    tpu.vector_store %arg6[%44, %c0_18, %c0_19], %47 {strides = array<i32>} : memref<8x8x128xf32, #tpu.memory_space<vmem>>, vector<1x8x128xf32>,
    %c1_i32 = arith.constant 1 : i32
    %48 = arith.index_cast %c1_i32 : i32 to index
    %c0_20 = arith.constant 0 : index
    %c0_21 = arith.constant 0 : index
    %49 = vector.load %arg2[%48, %c0_20, %c0_21] : memref<8x8x512xbf16, #tpu.memory_space<vmem>>, vector<1x8x512xbf16>
    %50 = vector.shape_cast %49 : vector<1x8x512xbf16> to vector<8x512xbf16>
    %51 = arith.extf %50 : vector<8x512xbf16> to vector<8x512xf32>
    %52 = arith.truncf %43 : vector<8x128xf32> to vector<8x128xbf16>
    %c0_22 = arith.constant 0 : index
    %c0_23 = arith.constant 0 : index
    %53 = vector.load %arg5[%c0_22, %c0_23] : memref<128x512xbf16, #tpu.memory_space<vmem>>, vector<128x512xbf16>
    %cst_24 = arith.constant dense<0.000000e+00> : vector<8x512xf32>
    %54 = tpu.matmul %52, %53, %cst_24 {dimension_numbers = #tpu.dot_dimension_numbers<[1], [0], [0], [1], [0, 0, 1, 1], [], []>} : vector<8x128xbf16>, vector<128x512xbf16>, vector<8x512xf32> -> vector<8x512xf32>
    %55 = arith.addf %51, %54 : vector<8x512xf32>
    %56 = vector.extract_strided_slice %55 {offsets = [0, 0], sizes = [8, 128], strides = [1, 1]} : vector<8x512xf32> to vector<8x128xf32>
    %cst_25 = arith.constant 5.000000e-01 : f32
    %57 = vector.broadcast %cst_25 : f32 to vector<8x128xf32>
    %58 = arith.mulf %57, %56 : vector<8x128xf32>
    %59 = math.tanh %58 : vector<8x128xf32>
    %cst_26 = arith.constant 5.000000e-01 : f32
    %60 = vector.broadcast %cst_26 : f32 to vector<8x128xf32>
    %61 = arith.mulf %60, %59 : vector<8x128xf32>
    %cst_27 = arith.constant 5.000000e-01 : f32
    %62 = vector.broadcast %cst_27 : f32 to vector<8x128xf32>
    %63 = arith.addf %61, %62 : vector<8x128xf32>
    %64 = vector.extract_strided_slice %55 {offsets = [0, 128], sizes = [8, 128], strides = [1, 1]} : vector<8x512xf32> to vector<8x128xf32>
    %cst_28 = arith.constant 5.000000e-01 : f32
    %65 = vector.broadcast %cst_28 : f32 to vector<8x128xf32>
    %66 = arith.mulf %65, %64 : vector<8x128xf32>
    %67 = math.tanh %66 : vector<8x128xf32>
    %cst_29 = arith.constant 5.000000e-01 : f32
    %68 = vector.broadcast %cst_29 : f32 to vector<8x128xf32>
    %69 = arith.mulf %68, %67 : vector<8x128xf32>
    %cst_30 = arith.constant 5.000000e-01 : f32
    %70 = vector.broadcast %cst_30 : f32 to vector<8x128xf32>
    %71 = arith.addf %69, %70 : vector<8x128xf32>
    %72 = vector.extract_strided_slice %55 {offsets = [0, 256], sizes = [8, 128], strides = [1, 1]} : vector<8x512xf32> to vector<8x128xf32>
    %73 = math.tanh %72 : vector<8x128xf32>
    %74 = vector.extract_strided_slice %55 {offsets = [0, 384], sizes = [8, 128], strides = [1, 1]} : vector<8x512xf32> to vector<8x128xf32>
    %cst_31 = arith.constant 5.000000e-01 : f32
    %75 = vector.broadcast %cst_31 : f32 to vector<8x128xf32>
    %76 = arith.mulf %75, %74 : vector<8x128xf32>
    %77 = math.tanh %76 : vector<8x128xf32>
    %cst_32 = arith.constant 5.000000e-01 : f32
    %78 = vector.broadcast %cst_32 : f32 to vector<8x128xf32>
    %79 = arith.mulf %78, %77 : vector<8x128xf32>
    %cst_33 = arith.constant 5.000000e-01 : f32
    %80 = vector.broadcast %cst_33 : f32 to vector<8x128xf32>
    %81 = arith.addf %79, %80 : vector<8x128xf32>
    %82 = arith.mulf %71, %41 : vector<8x128xf32>
    %83 = arith.mulf %63, %73 : vector<8x128xf32>
    %84 = arith.addf %82, %83 : vector<8x128xf32>
    %85 = math.tanh %84 : vector<8x128xf32>
    %86 = arith.mulf %81, %85 : vector<8x128xf32>
    %87 = arith.index_cast %c1_i32 : i32 to index
    %c0_34 = arith.constant 0 : index
    %c0_35 = arith.constant 0 : index
    %88 = vector.load %arg6[%87, %c0_34, %c0_35] : memref<8x8x128xf32, #tpu.memory_space<vmem>>, vector<1x8x128xf32>
    %89 = vector.shape_cast %88 : vector<1x8x128xf32> to vector<8x128xf32>
    %90 = vector.shape_cast %86 : vector<8x128xf32> to vector<1x8x128xf32>
    tpu.vector_store %arg6[%87, %c0_34, %c0_35], %90 {strides = array<i32>} : memref<8x8x128xf32, #tpu.memory_space<vmem>>, vector<1x8x128xf32>,
    %c2_i32 = arith.constant 2 : i32
    %91 = arith.index_cast %c2_i32 : i32 to index
    %c0_36 = arith.constant 0 : index
    %c0_37 = arith.constant 0 : index
    %92 = vector.load %arg2[%91, %c0_36, %c0_37] : memref<8x8x512xbf16, #tpu.memory_space<vmem>>, vector<1x8x512xbf16>
    %93 = vector.shape_cast %92 : vector<1x8x512xbf16> to vector<8x512xbf16>
    %94 = arith.extf %93 : vector<8x512xbf16> to vector<8x512xf32>
    %95 = arith.truncf %86 : vector<8x128xf32> to vector<8x128xbf16>
    %c0_38 = arith.constant 0 : index
    %c0_39 = arith.constant 0 : index
    %96 = vector.load %arg5[%c0_38, %c0_39] : memref<128x512xbf16, #tpu.memory_space<vmem>>, vector<128x512xbf16>
    %cst_40 = arith.constant dense<0.000000e+00> : vector<8x512xf32>
    %97 = tpu.matmul %95, %96, %cst_40 {dimension_numbers = #tpu.dot_dimension_numbers<[1], [0], [0], [1], [0, 0, 1, 1], [], []>} : vector<8x128xbf16>, vector<128x512xbf16>, vector<8x512xf32> -> vector<8x512xf32>
    %98 = arith.addf %94, %97 : vector<8x512xf32>
    %99 = vector.extract_strided_slice %98 {offsets = [0, 0], sizes = [8, 128], strides = [1, 1]} : vector<8x512xf32> to vector<8x128xf32>
    %cst_41 = arith.constant 5.000000e-01 : f32
    %100 = vector.broadcast %cst_41 : f32 to vector<8x128xf32>
    %101 = arith.mulf %100, %99 : vector<8x128xf32>
    %102 = math.tanh %101 : vector<8x128xf32>
    %cst_42 = arith.constant 5.000000e-01 : f32
    %103 = vector.broadcast %cst_42 : f32 to vector<8x128xf32>
    %104 = arith.mulf %103, %102 : vector<8x128xf32>
    %cst_43 = arith.constant 5.000000e-01 : f32
    %105 = vector.broadcast %cst_43 : f32 to vector<8x128xf32>
    %106 = arith.addf %104, %105 : vector<8x128xf32>
    %107 = vector.extract_strided_slice %98 {offsets = [0, 128], sizes = [8, 128], strides = [1, 1]} : vector<8x512xf32> to vector<8x128xf32>
    %cst_44 = arith.constant 5.000000e-01 : f32
    %108 = vector.broadcast %cst_44 : f32 to vector<8x128xf32>
    %109 = arith.mulf %108, %107 : vector<8x128xf32>
    %110 = math.tanh %109 : vector<8x128xf32>
    %cst_45 = arith.constant 5.000000e-01 : f32
    %111 = vector.broadcast %cst_45 : f32 to vector<8x128xf32>
    %112 = arith.mulf %111, %110 : vector<8x128xf32>
    %cst_46 = arith.constant 5.000000e-01 : f32
    %113 = vector.broadcast %cst_46 : f32 to vector<8x128xf32>
    %114 = arith.addf %112, %113 : vector<8x128xf32>
    %115 = vector.extract_strided_slice %98 {offsets = [0, 256], sizes = [8, 128], strides = [1, 1]} : vector<8x512xf32> to vector<8x128xf32>
    %116 = math.tanh %115 : vector<8x128xf32>
    %117 = vector.extract_strided_slice %98 {offsets = [0, 384], sizes = [8, 128], strides = [1, 1]} : vector<8x512xf32> to vector<8x128xf32>
    %cst_47 = arith.constant 5.000000e-01 : f32
    %118 = vector.broadcast %cst_47 : f32 to vector<8x128xf32>
    %119 = arith.mulf %118, %117 : vector<8x128xf32>
    %120 = math.tanh %119 : vector<8x128xf32>
    %cst_48 = arith.constant 5.000000e-01 : f32
    %121 = vector.broadcast %cst_48 : f32 to vector<8x128xf32>
    %122 = arith.mulf %121, %120 : vector<8x128xf32>
    %cst_49 = arith.constant 5.000000e-01 : f32
    %123 = vector.broadcast %cst_49 : f32 to vector<8x128xf32>
    %124 = arith.addf %122, %123 : vector<8x128xf32>
    %125 = arith.mulf %114, %84 : vector<8x128xf32>
    %126 = arith.mulf %106, %116 : vector<8x128xf32>
    %127 = arith.addf %125, %126 : vector<8x128xf32>
    %128 = math.tanh %127 : vector<8x128xf32>
    %129 = arith.mulf %124, %128 : vector<8x128xf32>
    %130 = arith.index_cast %c2_i32 : i32 to index
    %c0_50 = arith.constant 0 : index
    %c0_51 = arith.constant 0 : index
    %131 = vector.load %arg6[%130, %c0_50, %c0_51] : memref<8x8x128xf32, #tpu.memory_space<vmem>>, vector<1x8x128xf32>
    %132 = vector.shape_cast %131 : vector<1x8x128xf32> to vector<8x128xf32>
    %133 = vector.shape_cast %129 : vector<8x128xf32> to vector<1x8x128xf32>
    tpu.vector_store %arg6[%130, %c0_50, %c0_51], %133 {strides = array<i32>} : memref<8x8x128xf32, #tpu.memory_space<vmem>>, vector<1x8x128xf32>,
    %c3_i32 = arith.constant 3 : i32
    %134 = arith.index_cast %c3_i32 : i32 to index
    %c0_52 = arith.constant 0 : index
    %c0_53 = arith.constant 0 : index
    %135 = vector.load %arg2[%134, %c0_52, %c0_53] : memref<8x8x512xbf16, #tpu.memory_space<vmem>>, vector<1x8x512xbf16>
    %136 = vector.shape_cast %135 : vector<1x8x512xbf16> to vector<8x512xbf16>
    %137 = arith.extf %136 : vector<8x512xbf16> to vector<8x512xf32>
    %138 = arith.truncf %129 : vector<8x128xf32> to vector<8x128xbf16>
    %c0_54 = arith.constant 0 : index
    %c0_55 = arith.constant 0 : index
    %139 = vector.load %arg5[%c0_54, %c0_55] : memref<128x512xbf16, #tpu.memory_space<vmem>>, vector<128x512xbf16>
    %cst_56 = arith.constant dense<0.000000e+00> : vector<8x512xf32>
    %140 = tpu.matmul %138, %139, %cst_56 {dimension_numbers = #tpu.dot_dimension_numbers<[1], [0], [0], [1], [0, 0, 1, 1], [], []>} : vector<8x128xbf16>, vector<128x512xbf16>, vector<8x512xf32> -> vector<8x512xf32>
    %141 = arith.addf %137, %140 : vector<8x512xf32>
    %142 = vector.extract_strided_slice %141 {offsets = [0, 0], sizes = [8, 128], strides = [1, 1]} : vector<8x512xf32> to vector<8x128xf32>
    %cst_57 = arith.constant 5.000000e-01 : f32
    %143 = vector.broadcast %cst_57 : f32 to vector<8x128xf32>
    %144 = arith.mulf %143, %142 : vector<8x128xf32>
    %145 = math.tanh %144 : vector<8x128xf32>
    %cst_58 = arith.constant 5.000000e-01 : f32
    %146 = vector.broadcast %cst_58 : f32 to vector<8x128xf32>
    %147 = arith.mulf %146, %145 : vector<8x128xf32>
    %cst_59 = arith.constant 5.000000e-01 : f32
    %148 = vector.broadcast %cst_59 : f32 to vector<8x128xf32>
    %149 = arith.addf %147, %148 : vector<8x128xf32>
    %150 = vector.extract_strided_slice %141 {offsets = [0, 128], sizes = [8, 128], strides = [1, 1]} : vector<8x512xf32> to vector<8x128xf32>
    %cst_60 = arith.constant 5.000000e-01 : f32
    %151 = vector.broadcast %cst_60 : f32 to vector<8x128xf32>
    %152 = arith.mulf %151, %150 : vector<8x128xf32>
    %153 = math.tanh %152 : vector<8x128xf32>
    %cst_61 = arith.constant 5.000000e-01 : f32
    %154 = vector.broadcast %cst_61 : f32 to vector<8x128xf32>
    %155 = arith.mulf %154, %153 : vector<8x128xf32>
    %cst_62 = arith.constant 5.000000e-01 : f32
    %156 = vector.broadcast %cst_62 : f32 to vector<8x128xf32>
    %157 = arith.addf %155, %156 : vector<8x128xf32>
    %158 = vector.extract_strided_slice %141 {offsets = [0, 256], sizes = [8, 128], strides = [1, 1]} : vector<8x512xf32> to vector<8x128xf32>
    %159 = math.tanh %158 : vector<8x128xf32>
    %160 = vector.extract_strided_slice %141 {offsets = [0, 384], sizes = [8, 128], strides = [1, 1]} : vector<8x512xf32> to vector<8x128xf32>
    %cst_63 = arith.constant 5.000000e-01 : f32
    %161 = vector.broadcast %cst_63 : f32 to vector<8x128xf32>
    %162 = arith.mulf %161, %160 : vector<8x128xf32>
    %163 = math.tanh %162 : vector<8x128xf32>
    %cst_64 = arith.constant 5.000000e-01 : f32
    %164 = vector.broadcast %cst_64 : f32 to vector<8x128xf32>
    %165 = arith.mulf %164, %163 : vector<8x128xf32>
    %cst_65 = arith.constant 5.000000e-01 : f32
    %166 = vector.broadcast %cst_65 : f32 to vector<8x128xf32>
    %167 = arith.addf %165, %166 : vector<8x128xf32>
    %168 = arith.mulf %157, %127 : vector<8x128xf32>
    %169 = arith.mulf %149, %159 : vector<8x128xf32>
    %170 = arith.addf %168, %169 : vector<8x128xf32>
    %171 = math.tanh %170 : vector<8x128xf32>
    %172 = arith.mulf %167, %171 : vector<8x128xf32>
    %173 = arith.index_cast %c3_i32 : i32 to index
    %c0_66 = arith.constant 0 : index
    %c0_67 = arith.constant 0 : index
    %174 = vector.load %arg6[%173, %c0_66, %c0_67] : memref<8x8x128xf32, #tpu.memory_space<vmem>>, vector<1x8x128xf32>
    %175 = vector.shape_cast %174 : vector<1x8x128xf32> to vector<8x128xf32>
    %176 = vector.shape_cast %172 : vector<8x128xf32> to vector<1x8x128xf32>
    tpu.vector_store %arg6[%173, %c0_66, %c0_67], %176 {strides = array<i32>} : memref<8x8x128xf32, #tpu.memory_space<vmem>>, vector<1x8x128xf32>,
    %c4_i32 = arith.constant 4 : i32
    %177 = arith.index_cast %c4_i32 : i32 to index
    %c0_68 = arith.constant 0 : index
    %c0_69 = arith.constant 0 : index
    %178 = vector.load %arg2[%177, %c0_68, %c0_69] : memref<8x8x512xbf16, #tpu.memory_space<vmem>>, vector<1x8x512xbf16>
    %179 = vector.shape_cast %178 : vector<1x8x512xbf16> to vector<8x512xbf16>
    %180 = arith.extf %179 : vector<8x512xbf16> to vector<8x512xf32>
    %181 = arith.truncf %172 : vector<8x128xf32> to vector<8x128xbf16>
    %c0_70 = arith.constant 0 : index
    %c0_71 = arith.constant 0 : index
    %182 = vector.load %arg5[%c0_70, %c0_71] : memref<128x512xbf16, #tpu.memory_space<vmem>>, vector<128x512xbf16>
    %cst_72 = arith.constant dense<0.000000e+00> : vector<8x512xf32>
    %183 = tpu.matmul %181, %182, %cst_72 {dimension_numbers = #tpu.dot_dimension_numbers<[1], [0], [0], [1], [0, 0, 1, 1], [], []>} : vector<8x128xbf16>, vector<128x512xbf16>, vector<8x512xf32> -> vector<8x512xf32>
    %184 = arith.addf %180, %183 : vector<8x512xf32>
    %185 = vector.extract_strided_slice %184 {offsets = [0, 0], sizes = [8, 128], strides = [1, 1]} : vector<8x512xf32> to vector<8x128xf32>
    %cst_73 = arith.constant 5.000000e-01 : f32
    %186 = vector.broadcast %cst_73 : f32 to vector<8x128xf32>
    %187 = arith.mulf %186, %185 : vector<8x128xf32>
    %188 = math.tanh %187 : vector<8x128xf32>
    %cst_74 = arith.constant 5.000000e-01 : f32
    %189 = vector.broadcast %cst_74 : f32 to vector<8x128xf32>
    %190 = arith.mulf %189, %188 : vector<8x128xf32>
    %cst_75 = arith.constant 5.000000e-01 : f32
    %191 = vector.broadcast %cst_75 : f32 to vector<8x128xf32>
    %192 = arith.addf %190, %191 : vector<8x128xf32>
    %193 = vector.extract_strided_slice %184 {offsets = [0, 128], sizes = [8, 128], strides = [1, 1]} : vector<8x512xf32> to vector<8x128xf32>
    %cst_76 = arith.constant 5.000000e-01 : f32
    %194 = vector.broadcast %cst_76 : f32 to vector<8x128xf32>
    %195 = arith.mulf %194, %193 : vector<8x128xf32>
    %196 = math.tanh %195 : vector<8x128xf32>
    %cst_77 = arith.constant 5.000000e-01 : f32
    %197 = vector.broadcast %cst_77 : f32 to vector<8x128xf32>
    %198 = arith.mulf %197, %196 : vector<8x128xf32>
    %cst_78 = arith.constant 5.000000e-01 : f32
    %199 = vector.broadcast %cst_78 : f32 to vector<8x128xf32>
    %200 = arith.addf %198, %199 : vector<8x128xf32>
    %201 = vector.extract_strided_slice %184 {offsets = [0, 256], sizes = [8, 128], strides = [1, 1]} : vector<8x512xf32> to vector<8x128xf32>
    %202 = math.tanh %201 : vector<8x128xf32>
    %203 = vector.extract_strided_slice %184 {offsets = [0, 384], sizes = [8, 128], strides = [1, 1]} : vector<8x512xf32> to vector<8x128xf32>
    %cst_79 = arith.constant 5.000000e-01 : f32
    %204 = vector.broadcast %cst_79 : f32 to vector<8x128xf32>
    %205 = arith.mulf %204, %203 : vector<8x128xf32>
    %206 = math.tanh %205 : vector<8x128xf32>
    %cst_80 = arith.constant 5.000000e-01 : f32
    %207 = vector.broadcast %cst_80 : f32 to vector<8x128xf32>
    %208 = arith.mulf %207, %206 : vector<8x128xf32>
    %cst_81 = arith.constant 5.000000e-01 : f32
    %209 = vector.broadcast %cst_81 : f32 to vector<8x128xf32>
    %210 = arith.addf %208, %209 : vector<8x128xf32>
    %211 = arith.mulf %200, %170 : vector<8x128xf32>
    %212 = arith.mulf %192, %202 : vector<8x128xf32>
    %213 = arith.addf %211, %212 : vector<8x128xf32>
    %214 = math.tanh %213 : vector<8x128xf32>
    %215 = arith.mulf %210, %214 : vector<8x128xf32>
    %216 = arith.index_cast %c4_i32 : i32 to index
    %c0_82 = arith.constant 0 : index
    %c0_83 = arith.constant 0 : index
    %217 = vector.load %arg6[%216, %c0_82, %c0_83] : memref<8x8x128xf32, #tpu.memory_space<vmem>>, vector<1x8x128xf32>
    %218 = vector.shape_cast %217 : vector<1x8x128xf32> to vector<8x128xf32>
    %219 = vector.shape_cast %215 : vector<8x128xf32> to vector<1x8x128xf32>
    tpu.vector_store %arg6[%216, %c0_82, %c0_83], %219 {strides = array<i32>} : memref<8x8x128xf32, #tpu.memory_space<vmem>>, vector<1x8x128xf32>,
    %c5_i32 = arith.constant 5 : i32
    %220 = arith.index_cast %c5_i32 : i32 to index
    %c0_84 = arith.constant 0 : index
    %c0_85 = arith.constant 0 : index
    %221 = vector.load %arg2[%220, %c0_84, %c0_85] : memref<8x8x512xbf16, #tpu.memory_space<vmem>>, vector<1x8x512xbf16>
    %222 = vector.shape_cast %221 : vector<1x8x512xbf16> to vector<8x512xbf16>
    %223 = arith.extf %222 : vector<8x512xbf16> to vector<8x512xf32>
    %224 = arith.truncf %215 : vector<8x128xf32> to vector<8x128xbf16>
    %c0_86 = arith.constant 0 : index
    %c0_87 = arith.constant 0 : index
    %225 = vector.load %arg5[%c0_86, %c0_87] : memref<128x512xbf16, #tpu.memory_space<vmem>>, vector<128x512xbf16>
    %cst_88 = arith.constant dense<0.000000e+00> : vector<8x512xf32>
    %226 = tpu.matmul %224, %225, %cst_88 {dimension_numbers = #tpu.dot_dimension_numbers<[1], [0], [0], [1], [0, 0, 1, 1], [], []>} : vector<8x128xbf16>, vector<128x512xbf16>, vector<8x512xf32> -> vector<8x512xf32>
    %227 = arith.addf %223, %226 : vector<8x512xf32>
    %228 = vector.extract_strided_slice %227 {offsets = [0, 0], sizes = [8, 128], strides = [1, 1]} : vector<8x512xf32> to vector<8x128xf32>
    %cst_89 = arith.constant 5.000000e-01 : f32
    %229 = vector.broadcast %cst_89 : f32 to vector<8x128xf32>
    %230 = arith.mulf %229, %228 : vector<8x128xf32>
    %231 = math.tanh %230 : vector<8x128xf32>
    %cst_90 = arith.constant 5.000000e-01 : f32
    %232 = vector.broadcast %cst_90 : f32 to vector<8x128xf32>
    %233 = arith.mulf %232, %231 : vector<8x128xf32>
    %cst_91 = arith.constant 5.000000e-01 : f32
    %234 = vector.broadcast %cst_91 : f32 to vector<8x128xf32>
    %235 = arith.addf %233, %234 : vector<8x128xf32>
    %236 = vector.extract_strided_slice %227 {offsets = [0, 128], sizes = [8, 128], strides = [1, 1]} : vector<8x512xf32> to vector<8x128xf32>
    %cst_92 = arith.constant 5.000000e-01 : f32
    %237 = vector.broadcast %cst_92 : f32 to vector<8x128xf32>
    %238 = arith.mulf %237, %236 : vector<8x128xf32>
    %239 = math.tanh %238 : vector<8x128xf32>
    %cst_93 = arith.constant 5.000000e-01 : f32
    %240 = vector.broadcast %cst_93 : f32 to vector<8x128xf32>
    %241 = arith.mulf %240, %239 : vector<8x128xf32>
    %cst_94 = arith.constant 5.000000e-01 : f32
    %242 = vector.broadcast %cst_94 : f32 to vector<8x128xf32>
    %243 = arith.addf %241, %242 : vector<8x128xf32>
    %244 = vector.extract_strided_slice %227 {offsets = [0, 256], sizes = [8, 128], strides = [1, 1]} : vector<8x512xf32> to vector<8x128xf32>
    %245 = math.tanh %244 : vector<8x128xf32>
    %246 = vector.extract_strided_slice %227 {offsets = [0, 384], sizes = [8, 128], strides = [1, 1]} : vector<8x512xf32> to vector<8x128xf32>
    %cst_95 = arith.constant 5.000000e-01 : f32
    %247 = vector.broadcast %cst_95 : f32 to vector<8x128xf32>
    %248 = arith.mulf %247, %246 : vector<8x128xf32>
    %249 = math.tanh %248 : vector<8x128xf32>
    %cst_96 = arith.constant 5.000000e-01 : f32
    %250 = vector.broadcast %cst_96 : f32 to vector<8x128xf32>
    %251 = arith.mulf %250, %249 : vector<8x128xf32>
    %cst_97 = arith.constant 5.000000e-01 : f32
    %252 = vector.broadcast %cst_97 : f32 to vector<8x128xf32>
    %253 = arith.addf %251, %252 : vector<8x128xf32>
    %254 = arith.mulf %243, %213 : vector<8x128xf32>
    %255 = arith.mulf %235, %245 : vector<8x128xf32>
    %256 = arith.addf %254, %255 : vector<8x128xf32>
    %257 = math.tanh %256 : vector<8x128xf32>
    %258 = arith.mulf %253, %257 : vector<8x128xf32>
    %259 = arith.index_cast %c5_i32 : i32 to index
    %c0_98 = arith.constant 0 : index
    %c0_99 = arith.constant 0 : index
    %260 = vector.load %arg6[%259, %c0_98, %c0_99] : memref<8x8x128xf32, #tpu.memory_space<vmem>>, vector<1x8x128xf32>
    %261 = vector.shape_cast %260 : vector<1x8x128xf32> to vector<8x128xf32>
    %262 = vector.shape_cast %258 : vector<8x128xf32> to vector<1x8x128xf32>
    tpu.vector_store %arg6[%259, %c0_98, %c0_99], %262 {strides = array<i32>} : memref<8x8x128xf32, #tpu.memory_space<vmem>>, vector<1x8x128xf32>,
    %c6_i32 = arith.constant 6 : i32
    %263 = arith.index_cast %c6_i32 : i32 to index
    %c0_100 = arith.constant 0 : index
    %c0_101 = arith.constant 0 : index
    %264 = vector.load %arg2[%263, %c0_100, %c0_101] : memref<8x8x512xbf16, #tpu.memory_space<vmem>>, vector<1x8x512xbf16>
    %265 = vector.shape_cast %264 : vector<1x8x512xbf16> to vector<8x512xbf16>
    %266 = arith.extf %265 : vector<8x512xbf16> to vector<8x512xf32>
    %267 = arith.truncf %258 : vector<8x128xf32> to vector<8x128xbf16>
    %c0_102 = arith.constant 0 : index
    %c0_103 = arith.constant 0 : index
    %268 = vector.load %arg5[%c0_102, %c0_103] : memref<128x512xbf16, #tpu.memory_space<vmem>>, vector<128x512xbf16>
    %cst_104 = arith.constant dense<0.000000e+00> : vector<8x512xf32>
    %269 = tpu.matmul %267, %268, %cst_104 {dimension_numbers = #tpu.dot_dimension_numbers<[1], [0], [0], [1], [0, 0, 1, 1], [], []>} : vector<8x128xbf16>, vector<128x512xbf16>, vector<8x512xf32> -> vector<8x512xf32>
    %270 = arith.addf %266, %269 : vector<8x512xf32>
    %271 = vector.extract_strided_slice %270 {offsets = [0, 0], sizes = [8, 128], strides = [1, 1]} : vector<8x512xf32> to vector<8x128xf32>
    %cst_105 = arith.constant 5.000000e-01 : f32
    %272 = vector.broadcast %cst_105 : f32 to vector<8x128xf32>
    %273 = arith.mulf %272, %271 : vector<8x128xf32>
    %274 = math.tanh %273 : vector<8x128xf32>
    %cst_106 = arith.constant 5.000000e-01 : f32
    %275 = vector.broadcast %cst_106 : f32 to vector<8x128xf32>
    %276 = arith.mulf %275, %274 : vector<8x128xf32>
    %cst_107 = arith.constant 5.000000e-01 : f32
    %277 = vector.broadcast %cst_107 : f32 to vector<8x128xf32>
    %278 = arith.addf %276, %277 : vector<8x128xf32>
    %279 = vector.extract_strided_slice %270 {offsets = [0, 128], sizes = [8, 128], strides = [1, 1]} : vector<8x512xf32> to vector<8x128xf32>
    %cst_108 = arith.constant 5.000000e-01 : f32
    %280 = vector.broadcast %cst_108 : f32 to vector<8x128xf32>
    %281 = arith.mulf %280, %279 : vector<8x128xf32>
    %282 = math.tanh %281 : vector<8x128xf32>
    %cst_109 = arith.constant 5.000000e-01 : f32
    %283 = vector.broadcast %cst_109 : f32 to vector<8x128xf32>
    %284 = arith.mulf %283, %282 : vector<8x128xf32>
    %cst_110 = arith.constant 5.000000e-01 : f32
    %285 = vector.broadcast %cst_110 : f32 to vector<8x128xf32>
    %286 = arith.addf %284, %285 : vector<8x128xf32>
    %287 = vector.extract_strided_slice %270 {offsets = [0, 256], sizes = [8, 128], strides = [1, 1]} : vector<8x512xf32> to vector<8x128xf32>
    %288 = math.tanh %287 : vector<8x128xf32>
    %289 = vector.extract_strided_slice %270 {offsets = [0, 384], sizes = [8, 128], strides = [1, 1]} : vector<8x512xf32> to vector<8x128xf32>
    %cst_111 = arith.constant 5.000000e-01 : f32
    %290 = vector.broadcast %cst_111 : f32 to vector<8x128xf32>
    %291 = arith.mulf %290, %289 : vector<8x128xf32>
    %292 = math.tanh %291 : vector<8x128xf32>
    %cst_112 = arith.constant 5.000000e-01 : f32
    %293 = vector.broadcast %cst_112 : f32 to vector<8x128xf32>
    %294 = arith.mulf %293, %292 : vector<8x128xf32>
    %cst_113 = arith.constant 5.000000e-01 : f32
    %295 = vector.broadcast %cst_113 : f32 to vector<8x128xf32>
    %296 = arith.addf %294, %295 : vector<8x128xf32>
    %297 = arith.mulf %286, %256 : vector<8x128xf32>
    %298 = arith.mulf %278, %288 : vector<8x128xf32>
    %299 = arith.addf %297, %298 : vector<8x128xf32>
    %300 = math.tanh %299 : vector<8x128xf32>
    %301 = arith.mulf %296, %300 : vector<8x128xf32>
    %302 = arith.index_cast %c6_i32 : i32 to index
    %c0_114 = arith.constant 0 : index
    %c0_115 = arith.constant 0 : index
    %303 = vector.load %arg6[%302, %c0_114, %c0_115] : memref<8x8x128xf32, #tpu.memory_space<vmem>>, vector<1x8x128xf32>
    %304 = vector.shape_cast %303 : vector<1x8x128xf32> to vector<8x128xf32>
    %305 = vector.shape_cast %301 : vector<8x128xf32> to vector<1x8x128xf32>
    tpu.vector_store %arg6[%302, %c0_114, %c0_115], %305 {strides = array<i32>} : memref<8x8x128xf32, #tpu.memory_space<vmem>>, vector<1x8x128xf32>,
    %c7_i32 = arith.constant 7 : i32
    %306 = arith.index_cast %c7_i32 : i32 to index
    %c0_116 = arith.constant 0 : index
    %c0_117 = arith.constant 0 : index
    %307 = vector.load %arg2[%306, %c0_116, %c0_117] : memref<8x8x512xbf16, #tpu.memory_space<vmem>>, vector<1x8x512xbf16>
    %308 = vector.shape_cast %307 : vector<1x8x512xbf16> to vector<8x512xbf16>
    %309 = arith.extf %308 : vector<8x512xbf16> to vector<8x512xf32>
    %310 = arith.truncf %301 : vector<8x128xf32> to vector<8x128xbf16>
    %c0_118 = arith.constant 0 : index
    %c0_119 = arith.constant 0 : index
    %311 = vector.load %arg5[%c0_118, %c0_119] : memref<128x512xbf16, #tpu.memory_space<vmem>>, vector<128x512xbf16>
    %cst_120 = arith.constant dense<0.000000e+00> : vector<8x512xf32>
    %312 = tpu.matmul %310, %311, %cst_120 {dimension_numbers = #tpu.dot_dimension_numbers<[1], [0], [0], [1], [0, 0, 1, 1], [], []>} : vector<8x128xbf16>, vector<128x512xbf16>, vector<8x512xf32> -> vector<8x512xf32>
    %313 = arith.addf %309, %312 : vector<8x512xf32>
    %314 = vector.extract_strided_slice %313 {offsets = [0, 0], sizes = [8, 128], strides = [1, 1]} : vector<8x512xf32> to vector<8x128xf32>
    %cst_121 = arith.constant 5.000000e-01 : f32
    %315 = vector.broadcast %cst_121 : f32 to vector<8x128xf32>
    %316 = arith.mulf %315, %314 : vector<8x128xf32>
    %317 = math.tanh %316 : vector<8x128xf32>
    %cst_122 = arith.constant 5.000000e-01 : f32
    %318 = vector.broadcast %cst_122 : f32 to vector<8x128xf32>
    %319 = arith.mulf %318, %317 : vector<8x128xf32>
    %cst_123 = arith.constant 5.000000e-01 : f32
    %320 = vector.broadcast %cst_123 : f32 to vector<8x128xf32>
    %321 = arith.addf %319, %320 : vector<8x128xf32>
    %322 = vector.extract_strided_slice %313 {offsets = [0, 128], sizes = [8, 128], strides = [1, 1]} : vector<8x512xf32> to vector<8x128xf32>
    %cst_124 = arith.constant 5.000000e-01 : f32
    %323 = vector.broadcast %cst_124 : f32 to vector<8x128xf32>
    %324 = arith.mulf %323, %322 : vector<8x128xf32>
    %325 = math.tanh %324 : vector<8x128xf32>
    %cst_125 = arith.constant 5.000000e-01 : f32
    %326 = vector.broadcast %cst_125 : f32 to vector<8x128xf32>
    %327 = arith.mulf %326, %325 : vector<8x128xf32>
    %cst_126 = arith.constant 5.000000e-01 : f32
    %328 = vector.broadcast %cst_126 : f32 to vector<8x128xf32>
    %329 = arith.addf %327, %328 : vector<8x128xf32>
    %330 = vector.extract_strided_slice %313 {offsets = [0, 256], sizes = [8, 128], strides = [1, 1]} : vector<8x512xf32> to vector<8x128xf32>
    %331 = math.tanh %330 : vector<8x128xf32>
    %332 = vector.extract_strided_slice %313 {offsets = [0, 384], sizes = [8, 128], strides = [1, 1]} : vector<8x512xf32> to vector<8x128xf32>
    %cst_127 = arith.constant 5.000000e-01 : f32
    %333 = vector.broadcast %cst_127 : f32 to vector<8x128xf32>
    %334 = arith.mulf %333, %332 : vector<8x128xf32>
    %335 = math.tanh %334 : vector<8x128xf32>
    %cst_128 = arith.constant 5.000000e-01 : f32
    %336 = vector.broadcast %cst_128 : f32 to vector<8x128xf32>
    %337 = arith.mulf %336, %335 : vector<8x128xf32>
    %cst_129 = arith.constant 5.000000e-01 : f32
    %338 = vector.broadcast %cst_129 : f32 to vector<8x128xf32>
    %339 = arith.addf %337, %338 : vector<8x128xf32>
    %340 = arith.mulf %329, %299 : vector<8x128xf32>
    %341 = arith.mulf %321, %331 : vector<8x128xf32>
    %342 = arith.addf %340, %341 : vector<8x128xf32>
    %343 = math.tanh %342 : vector<8x128xf32>
    %344 = arith.mulf %339, %343 : vector<8x128xf32>
    %345 = arith.index_cast %c7_i32 : i32 to index
    %c0_130 = arith.constant 0 : index
    %c0_131 = arith.constant 0 : index
    %346 = vector.load %arg6[%345, %c0_130, %c0_131] : memref<8x8x128xf32, #tpu.memory_space<vmem>>, vector<1x8x128xf32>
    %347 = vector.shape_cast %346 : vector<1x8x128xf32> to vector<8x128xf32>
    %348 = vector.shape_cast %344 : vector<8x128xf32> to vector<1x8x128xf32>
    tpu.vector_store %arg6[%345, %c0_130, %c0_131], %348 {strides = array<i32>} : memref<8x8x128xf32, #tpu.memory_space<vmem>>, vector<1x8x128xf32>,
    %c8_i32 = arith.constant 8 : i32
    %c0_132 = arith.constant 0 : index
    %c0_133 = arith.constant 0 : index
    %349 = vector.load %arg9[%c0_132, %c0_133] : memref<8x128xf32, #tpu.memory_space<vmem>>, vector<8x128xf32>
    tpu.vector_store %arg9[%c0_132, %c0_133], %344 {strides = array<i32>} : memref<8x128xf32, #tpu.memory_space<vmem>>, vector<8x128xf32>,
    %c0_134 = arith.constant 0 : index
    %c0_135 = arith.constant 0 : index
    %350 = vector.load %arg10[%c0_134, %c0_135] : memref<8x128xf32, #tpu.memory_space<vmem>>, vector<8x128xf32>
    tpu.vector_store %arg10[%c0_134, %c0_135], %342 {strides = array<i32>} : memref<8x128xf32, #tpu.memory_space<vmem>>, vector<8x128xf32>,
    %c0_i32_136 = arith.constant 0 : i32
    %351 = arith.cmpi eq, %arg1, %c0_i32_136 : i32
    %352 = arith.extui %351 : i1 to i32
    %c0_i32_137 = arith.constant 0 : i32
    %353 = arith.cmpi ne, %352, %c0_i32_137 : i32
    scf.if %353 {
      %c0_138 = arith.constant 0 : index
      %c0_139 = arith.constant 0 : index
      %354 = vector.load %arg9[%c0_138, %c0_139] : memref<8x128xf32, #tpu.memory_space<vmem>>, vector<8x128xf32>
      %c0_140 = arith.constant 0 : index
      %c0_141 = arith.constant 0 : index
      %355 = vector.load %arg7[%c0_140, %c0_141] : memref<8x128xf32, #tpu.memory_space<vmem>>, vector<8x128xf32>
      tpu.vector_store %arg7[%c0_140, %c0_141], %354 {strides = array<i32>} : memref<8x128xf32, #tpu.memory_space<vmem>>, vector<8x128xf32>,
      %c0_142 = arith.constant 0 : index
      %c0_143 = arith.constant 0 : index
      %356 = vector.load %arg10[%c0_142, %c0_143] : memref<8x128xf32, #tpu.memory_space<vmem>>, vector<8x128xf32>
      %c0_144 = arith.constant 0 : index
      %c0_145 = arith.constant 0 : index
      %357 = vector.load %arg8[%c0_144, %c0_145] : memref<8x128xf32, #tpu.memory_space<vmem>>, vector<8x128xf32>
      tpu.vector_store %arg8[%c0_144, %c0_145], %356 {strides = array<i32>} : memref<8x128xf32, #tpu.memory_space<vmem>>, vector<8x128xf32>,
    } else {
    }
    return
  }
  func.func @transform_0(%arg0: i32, %arg1: i32) -> (i32, i32, i32) {
    %c0_i32 = arith.constant 0 : i32
    %c0_i32_0 = arith.constant 0 : i32
    return %arg1, %arg0, %c0_i32 : i32, i32, i32
  }
  func.func @transform_1(%arg0: i32, %arg1: i32) -> (i32, i32) {
    %c0_i32 = arith.constant 0 : i32
    %c0_i32_0 = arith.constant 0 : i32
    return %arg0, %c0_i32 : i32, i32
  }
  func.func @transform_2(%arg0: i32, %arg1: i32) -> (i32, i32) {
    %c0_i32 = arith.constant 0 : i32
    %c0_i32_0 = arith.constant 0 : i32
    return %arg0, %c0_i32 : i32, i32
  }
  func.func @transform_3(%arg0: i32, %arg1: i32) -> (i32, i32) {
    %c0_i32 = arith.constant 0 : i32
    %c0_i32_0 = arith.constant 0 : i32
    %c0_i32_1 = arith.constant 0 : i32
    return %c0_i32, %c0_i32_0 : i32, i32
  }
  func.func @transform_4(%arg0: i32, %arg1: i32) -> (i32, i32, i32) {
    %c0_i32 = arith.constant 0 : i32
    %c0_i32_0 = arith.constant 0 : i32
    return %arg1, %arg0, %c0_i32 : i32, i32, i32
  }
  func.func @transform_5(%arg0: i32, %arg1: i32) -> (i32, i32) {
    %c0_i32 = arith.constant 0 : i32
    %c0_i32_0 = arith.constant 0 : i32
    return %arg0, %c0_i32 : i32, i32
  }
  func.func @transform_6(%arg0: i32, %arg1: i32) -> (i32, i32) {
    %c0_i32 = arith.constant 0 : i32
    %c0_i32_0 = arith.constant 0 : i32
    return %arg0, %c0_i32 : i32, i32
  }
}

</mosaic_0001>

<llo_original>
// kernel: tpu_custom_call.1
$region0: #{tpu_custom_call.1}
  #allocation0 [shape = 'u32[]', space=smem, size = 0x4, offset = 0x4, fixed_abs, tag = 'smem constant byte address 0x4 - core index']
  #allocation1 [shape = 'u32[144,128]{1,0:T(1,128)}', space=vmem, size = 0x12000, scoped, tag = 'internal scratch']
  %s0 = inlined_call_operand.hbm [shape: f32[8,128], index: 0, kind: input, shape index: {}]
  %s1 = inlined_call_operand.hbm [shape: f32[8,128], index: 1, kind: output, shape index: {}]
  %s2 = sld [smem:[#allocation0]]
  $region41: #{tpu_custom_call.1} parent=0
    _
  %s4 = ssub.s32 1, %s2
  %s5 = scalar_select 0, %s4, %s2
  $region1: #{tpu_custom_call.1} parent=0
    #allocation2 [shape = 'u8[4096]{0}', space=vmem, size = 0x1000, scoped, tag = 'input window, operand 0, single buffered']
    #allocation3 [shape = 's32[2]{0}', space=sflag, size = 0x8, scoped, tag = 'scoped memory for tpu_custom_call.1']
    #allocation4 [shape = 's32[2]{0}', space=sflag, size = 0x8, scoped, tag = 'scoped memory for tpu_custom_call.1']
    #allocation5 [shape = 'u8[4096]{0}', space=vmem, size = 0x1000, scoped, tag = 'output window, operand 0, single buffered']
    %6 = vsyncpa [#allocation3], 0
    %7 = vsyncpa [#allocation4], 0
    loop: start=0, step=1, limit=4
    $region2: #{tpu_custom_call.1} parent=1 // loop_pre_header
      _
    $region3: #{tpu_custom_call.1} parent=1 // loop_header
      %s9 = sphi 0, %s13
      %p10 = scmp.ge.s32.totalorder %s9, 4
      %s17 = sphi 0, %s17
      %s19 = sphi 0, %s17
      %s20 = sphi 0, %s19
      %s34 = sphi 0, %s20
      %s38 = sphi 0, %s38
      %s40 = sphi 0, %s38
      %s41 = sphi 0, %s40
      %s55 = sphi 0, %s41
    $region4: #{tpu_custom_call.1} parent=1 // loop_header_branch
      %12 = sbr.rel (%p10) target = $region8
    $region5: #{tpu_custom_call.1} parent=1 // loop_body
      %s14 = ssub.s32 %s9, 1
      %s15 = ssub.s32 %s9, 2
      %s16 = sadd.s32 %s9, 1
      %s18 = sadd.s32 %s17, 1
      %p21 = scmp.eq.s32.totalorder %s9, 1
      %p22 = scmp.ne.s32.totalorder %s17, %s19
      %p23 = scmp.eq.s32.totalorder %s9, 0
      %p24 = por %p22, %p23
      %p25 = scmp.ne.s32.totalorder %s17, %s19
      %p26 = scmp.eq.s32.totalorder %s14, 1
      %p27 = por %p25, %p26
      %p28 = scmp.ne.s32.totalorder %s19, %s20
      %p29 = scmp.eq.s32.totalorder %s14, 0
      %p30 = por %p28, %p29
      %p31 = scmp.ne.s32.totalorder %s19, %s20
      %p32 = scmp.eq.s32.totalorder %s15, 1
      %p33 = por %p31, %p32
      %p35 = scmp.ne.s32.totalorder %s20, %s34
      %p36 = scmp.eq.s32.totalorder %s15, 0
      %p37 = por %p35, %p36
      %s39 = sadd.s32 %s38, 1
      %p42 = scmp.eq.s32.totalorder %s9, 1
      %p43 = scmp.ne.s32.totalorder %s38, %s40
      %p44 = scmp.eq.s32.totalorder %s9, 0
      %p45 = por %p43, %p44
      %p46 = scmp.ne.s32.totalorder %s38, %s40
      %p47 = scmp.eq.s32.totalorder %s14, 1
      %p48 = por %p46, %p47
      %p49 = scmp.ne.s32.totalorder %s40, %s41
      %p50 = scmp.eq.s32.totalorder %s14, 0
      %p51 = por %p49, %p50
      %p52 = scmp.ne.s32.totalorder %s40, %s41
      %p53 = scmp.eq.s32.totalorder %s15, 1
      %p54 = por %p52, %p53
      %p56 = scmp.ne.s32.totalorder %s41, %s55
      %p57 = scmp.eq.s32.totalorder %s15, 0
      %p58 = por %p56, %p57
      %p59 = scmp.le.s32.totalorder 1, %s9
      %p60 = scmp.lt.s32.totalorder %s9, 3
      %p61 = pnand %p59, %p60
      %p62 = pneg %p61
      // Predicated region
      $region9: #{tpu_custom_call.1} parent=5 // pred_check
        _
      $region10: #{tpu_custom_call.1} parent=5 // pred_check_branch
        %64 = sbr.rel (%p61) target = $region12
      $region11: #{tpu_custom_call.1} parent=5 // pred_region
        %s65 = ssub.s32 %s9, 1
        // Predicated region
        $region13: #{tpu_custom_call.1} parent=11 // pred_check
          %p66 = pneg %p30
        $region14: #{tpu_custom_call.1} parent=11 // pred_check_branch
          %68 = sbr.rel (%p66) target = $region16
        $region15: #{tpu_custom_call.1} parent=11 // pred_region
          %s70 = ssub.s32 128, 128
          %71 = vsyncadd [#allocation3], %s70
          %s73 = sshll.u32 [#allocation2], 4
          %s74 = int_to_ptr.vmem [resolvable:$true] %s73
          %76 = dma.hbm_to_vmem [thread:$0]  %s0, 128, %s74, [#allocation3]
        $region16: #{tpu_custom_call.1} parent=11 // pred_fallthru
          _
      $region12: #{tpu_custom_call.1} parent=5 // pred_fallthru
        _
      %p77 = scmp.lt.s32.totalorder %s9, 2
      // Predicated region
      $region17: #{tpu_custom_call.1} parent=5 // pred_check
        %p78 = pneg %p77
      $region18: #{tpu_custom_call.1} parent=5 // pred_check_branch
        %80 = sbr.rel (%p78) target = $region20
      $region19: #{tpu_custom_call.1} parent=5 // pred_region
        _
      $region20: #{tpu_custom_call.1} parent=5 // pred_fallthru
        _
      %p81 = scmp.le.s32.totalorder 1, %s9
      %p82 = scmp.lt.s32.totalorder %s9, 3
      %p83 = pnand %p81, %p82
      %p84 = pneg %p83
      // Predicated region
      $region21: #{tpu_custom_call.1} parent=5 // pred_check
        _
      $region22: #{tpu_custom_call.1} parent=5 // pred_check_branch
        %86 = sbr.rel (%p83) target = $region24
      $region23: #{tpu_custom_call.1} parent=5 // pred_region
        %s87 = ssub.s32 %s9, 1
        // Predicated region
        $region25: #{tpu_custom_call.1} parent=23 // pred_check
          %p88 = pneg %p30
        $region26: #{tpu_custom_call.1} parent=23 // pred_check_branch
          %90 = sbr.rel (%p88) target = $region28
        $region27: #{tpu_custom_call.1} parent=23 // pred_region
          %91 = dma.done [#allocation3], 128
        $region28: #{tpu_custom_call.1} parent=23 // pred_fallthru
          _
        %p92 = pneg %p30
        %p93 = pneg %p27
        %p94 = pneg %p51
        %p95 = pneg %p48
        %v96 = vld [vmem:[#allocation2] sm:$0xff]
        %97 = vst [vmem:[#allocation5] sm:$0xff] %v96
        // Predicated region
        $region29: #{tpu_custom_call.1} parent=23 // pred_check
          %p98 = pneg %p48
        $region30: #{tpu_custom_call.1} parent=23 // pred_check_branch
          %100 = sbr.rel (%p98) target = $region32
        $region31: #{tpu_custom_call.1} parent=23 // pred_region
          %s102 = ssub.s32 128, 128
          %103 = vsyncadd [#allocation4], %s102
          %s105 = sshll.u32 [#allocation5], 4
          %s106 = int_to_ptr.vmem [resolvable:$true] %s105
          %108 = dma.vmem_to_hbm [thread:$0]  %s106, 128, %s1, [#allocation4]
        $region32: #{tpu_custom_call.1} parent=23 // pred_fallthru
          _
        // Predicated region
        $region33: #{tpu_custom_call.1} parent=23 // pred_check
          %p109 = pneg %p48
        $region34: #{tpu_custom_call.1} parent=23 // pred_check_branch
          %111 = sbr.rel (%p109) target = $region36
        $region35: #{tpu_custom_call.1} parent=23 // pred_region
          %112 = dma.done [#allocation4], 128
        $region36: #{tpu_custom_call.1} parent=23 // pred_fallthru
          _
      $region24: #{tpu_custom_call.1} parent=5 // pred_fallthru
        _
      %p113 = scmp.le.s32.totalorder 2, %s9
      // Predicated region
      $region37: #{tpu_custom_call.1} parent=5 // pred_check
        %p114 = pneg %p113
      $region38: #{tpu_custom_call.1} parent=5 // pred_check_branch
        %116 = sbr.rel (%p114) target = $region40
      $region39: #{tpu_custom_call.1} parent=5 // pred_region
        %s117 = ssub.s32 %s9, 2
      $region40: #{tpu_custom_call.1} parent=5 // pred_fallthru
        _
    $region6: #{tpu_custom_call.1} parent=1 // loop_footer
      %s13 = sadd.s32 1, %s9
    $region7: #{tpu_custom_call.1} parent=1 // loop_footer_branch
      %8 = sbr.rel target = $region3
    $region8: #{tpu_custom_call.1} parent=1 // loop_exit
      _
    %118 = vsyncpa [#allocation3], 1
    %s119 = scalar_lea.sflag [#allocation3], 1
    %120 = vsyncpa %s119, 1
    %121 = vsyncpa [#allocation4], 1
    %s122 = scalar_lea.sflag [#allocation4], 1
    %123 = vsyncpa %s122, 1

// kernel: _lstm_layer_jit.1
$region0: #{_lstm_layer_jit.1}
  #allocation0 [shape = 'u32[]', space=smem, size = 0x4, offset = 0x4, fixed_abs, tag = 'smem constant byte address 0x4 - core index']
  #allocation1 [shape = 'u32[144,128]{1,0:T(1,128)}', space=vmem, size = 0x12000, scoped, tag = 'internal scratch']
  #allocation2 [shape = 'f32[8,128]{1,0:T(8,128)}', space=vmem, size = 0x1000, scoped, tag = 'scratch operand']
  #allocation3 [shape = 'f32[8,128]{1,0:T(8,128)}', space=vmem, size = 0x1000, scoped, tag = 'scratch operand']
  %s0 = inlined_call_operand.vmem [shape: bf16[8,8,512], index: 0, kind: input, shape index: {}]
  %s1 = inlined_call_operand.vmem [shape: f32[8,128], index: 1, kind: input, shape index: {}]
  %s2 = inlined_call_operand.vmem [shape: f32[8,128], index: 2, kind: input, shape index: {}]
  %s3 = inlined_call_operand.vmem [shape: bf16[128,512], index: 3, kind: input, shape index: {}]
  %s4 = inlined_call_operand.hbm [shape: f32[8,8,128], index: 4, kind: output, shape index: {0}]
  %s5 = inlined_call_operand.hbm [shape: f32[8,128], index: 5, kind: output, shape index: {1}]
  %s6 = inlined_call_operand.hbm [shape: f32[8,128], index: 6, kind: output, shape index: {2}]
  %7 = xla_tuple %s4, %s5, %s6
  %s8 = sld [smem:[#allocation0]]
  $region50: #{_lstm_layer_jit.1} parent=0
    _
  %s10 = ssub.s32 1, %s8
  %s11 = scalar_select 0, %s10, %s8
  $region1: #{_lstm_layer_jit.1} parent=0
    #allocation4 [shape = 'u8[32768]{0}', space=vmem, size = 0x8000, scoped, tag = 'output window, operand 0, single buffered']
    #allocation5 [shape = 's32[1]{0}', space=sflag, size = 0x4, scoped, tag = 'scoped memory for _lstm_layer_jit.1']
    #allocation6 [shape = 'u8[4096]{0}', space=vmem, size = 0x1000, scoped, tag = 'output window, operand 1, single buffered']
    #allocation7 [shape = 's32[1]{0}', space=sflag, size = 0x4, scoped, tag = 'scoped memory for _lstm_layer_jit.1']
    #allocation8 [shape = 'u8[4096]{0}', space=vmem, size = 0x1000, scoped, tag = 'output window, operand 2, single buffered']
    %12 = vsyncpa [#allocation5], 0
    %13 = vsyncpa [#allocation7], 0
    // Predicated region
    $region2: #{_lstm_layer_jit.1} parent=1 // pred_check
      _
    $region3: #{_lstm_layer_jit.1} parent=1 // pred_check_branch
      %15 = sbr.rel (0) target = $region5
    $region4: #{_lstm_layer_jit.1} parent=1 // pred_region
      _
    $region5: #{_lstm_layer_jit.1} parent=1 // pred_fallthru
      _
    // Predicated region
    $region6: #{_lstm_layer_jit.1} parent=1 // pred_check
      _
    $region7: #{_lstm_layer_jit.1} parent=1 // pred_check_branch
      %17 = sbr.rel (0) target = $region9
    $region8: #{_lstm_layer_jit.1} parent=1 // pred_region
      _
    $region9: #{_lstm_layer_jit.1} parent=1 // pred_fallthru
      _
    // Predicated region
    $region10: #{_lstm_layer_jit.1} parent=1 // pred_check
      _
    $region11: #{_lstm_layer_jit.1} parent=1 // pred_check_branch
      %19 = sbr.rel (0) target = $region13
    $region12: #{_lstm_layer_jit.1} parent=1 // pred_region
      _
    $region13: #{_lstm_layer_jit.1} parent=1 // pred_fallthru
      _
    // Predicated region
    $region14: #{_lstm_layer_jit.1} parent=1 // pred_check
      _
    $region15: #{_lstm_layer_jit.1} parent=1 // pred_check_branch
      %21 = sbr.rel (0) target = $region17
    $region16: #{_lstm_layer_jit.1} parent=1 // pred_region
      _
    $region17: #{_lstm_layer_jit.1} parent=1 // pred_fallthru
      _
    %p23 = scmp.eq.s32.totalorder 0, 0
    // Predicated region
    $region18: #{_lstm_layer_jit.1} parent=1 // pred_check
      %p24 = pneg %p23
    $region19: #{_lstm_layer_jit.1} parent=1 // pred_check_branch
      %26 = sbr.rel (%p24) target = $region21
    $region20: #{_lstm_layer_jit.1} parent=1 // pred_region
      %v27 = vld [vmem:[%s1] sm:$0xff]
      %28 = vst [vmem:[#allocation2] sm:$0xff] %v27
      %v29 = vld [vmem:[%s2] sm:$0xff]
      %30 = vst [vmem:[#allocation3] sm:$0xff] %v29
    $region21: #{_lstm_layer_jit.1} parent=1 // pred_fallthru
      _
    %v31 = vld [vmem:[#allocation2] sm:$0xff]
    %v32 = vld [vmem:[#allocation3] sm:$0xff]
    %v33 = vld [vmem:[%s0] sm:$0xff]
    %v34 = vld [vmem:[%s0 + $0x8] sm:$0xff]
    %v35 = vunpack.c.l.bf16 %v33
    %v36 = vunpack.c.h.bf16 %v33
    %v37 = vunpack.c.l.bf16 %v34
    %v38 = vunpack.c.h.bf16 %v34
    %v39 = vpack.c.bf16 %v31, %v31
    %v40 = vld [vmem:[%s3] sm:$0xff]
    %v41 = vld [vmem:[%s3 + $0x8] sm:$0xff]
    %v42 = vld [vmem:[%s3 + $0x10] sm:$0xff]
    %v43 = vld [vmem:[%s3 + $0x18] sm:$0xff]
    %v44 = vld [vmem:[%s3 + $0x20] sm:$0xff]
    %v45 = vld [vmem:[%s3 + $0x28] sm:$0xff]
    %v46 = vld [vmem:[%s3 + $0x30] sm:$0xff]
    %v47 = vld [vmem:[%s3 + $0x38] sm:$0xff]
    %v48 = vld [vmem:[%s3 + $0x40] sm:$0xff]
    %v49 = vld [vmem:[%s3 + $0x48] sm:$0xff]
    %v50 = vld [vmem:[%s3 + $0x50] sm:$0xff]
    %v51 = vld [vmem:[%s3 + $0x58] sm:$0xff]
    %v52 = vld [vmem:[%s3 + $0x60] sm:$0xff]
    %v53 = vld [vmem:[%s3 + $0x68] sm:$0xff]
    %v54 = vld [vmem:[%s3 + $0x70] sm:$0xff]
    %v55 = vld [vmem:[%s3 + $0x78] sm:$0xff]
    %v56 = vld [vmem:[%s3 + $0x80] sm:$0xff]
    %v57 = vld [vmem:[%s3 + $0x88] sm:$0xff]
    %v58 = vld [vmem:[%s3 + $0x90] sm:$0xff]
    %v59 = vld [vmem:[%s3 + $0x98] sm:$0xff]
    %v60 = vld [vmem:[%s3 + $0xa0] sm:$0xff]
    %v61 = vld [vmem:[%s3 + $0xa8] sm:$0xff]
    %v62 = vld [vmem:[%s3 + $0xb0] sm:$0xff]
    %v63 = vld [vmem:[%s3 + $0xb8] sm:$0xff]
    %v64 = vld [vmem:[%s3 + $0xc0] sm:$0xff]
    %v65 = vld [vmem:[%s3 + $0xc8] sm:$0xff]
    %v66 = vld [vmem:[%s3 + $0xd0] sm:$0xff]
    %v67 = vld [vmem:[%s3 + $0xd8] sm:$0xff]
    %v68 = vld [vmem:[%s3 + $0xe0] sm:$0xff]
    %v69 = vld [vmem:[%s3 + $0xe8] sm:$0xff]
    %v70 = vld [vmem:[%s3 + $0xf0] sm:$0xff]
    %v71 = vld [vmem:[%s3 + $0xf8] sm:$0xff]
    %v104 = vunpack.c.l.b16 %v40
    %v105 = vunpack.c.h.b16 %v40
    %v106 = vunpack.c.l.b16 %v41
    %v107 = vunpack.c.h.b16 %v41
    %v108 = vunpack.c.l.b16 %v42
    %v109 = vunpack.c.h.b16 %v42
    %v110 = vunpack.c.l.b16 %v43
    %v111 = vunpack.c.h.b16 %v43
    %v112 = vunpack.c.l.b16 %v44
    %v113 = vunpack.c.h.b16 %v44
    %v114 = vunpack.c.l.b16 %v45
    %v115 = vunpack.c.h.b16 %v45
    %v116 = vunpack.c.l.b16 %v46
    %v117 = vunpack.c.h.b16 %v46
    %v118 = vunpack.c.l.b16 %v47
    %v119 = vunpack.c.h.b16 %v47
    %v120 = vunpack.c.l.b16 %v48
    %v121 = vunpack.c.h.b16 %v48
    %v122 = vunpack.c.l.b16 %v49
    %v123 = vunpack.c.h.b16 %v49
    %v124 = vunpack.c.l.b16 %v50
    %v125 = vunpack.c.h.b16 %v50
    %v126 = vunpack.c.l.b16 %v51
    %v127 = vunpack.c.h.b16 %v51
    %v128 = vunpack.c.l.b16 %v52
    %v129 = vunpack.c.h.b16 %v52
    %v130 = vunpack.c.l.b16 %v53
    %v131 = vunpack.c.h.b16 %v53
    %v132 = vunpack.c.l.b16 %v54
    %v133 = vunpack.c.h.b16 %v54
    %v134 = vunpack.c.l.b16 %v55
    %v135 = vunpack.c.h.b16 %v55
    %v136 = vunpack.c.l.b16 %v56
    %v137 = vunpack.c.h.b16 %v56
    %v138 = vunpack.c.l.b16 %v57
    %v139 = vunpack.c.h.b16 %v57
    %v140 = vunpack.c.l.b16 %v58
    %v141 = vunpack.c.h.b16 %v58
    %v142 = vunpack.c.l.b16 %v59
    %v143 = vunpack.c.h.b16 %v59
    %v144 = vunpack.c.l.b16 %v60
    %v145 = vunpack.c.h.b16 %v60
    %v146 = vunpack.c.l.b16 %v61
    %v147 = vunpack.c.h.b16 %v61
    %v148 = vunpack.c.l.b16 %v62
    %v149 = vunpack.c.h.b16 %v62
    %v150 = vunpack.c.l.b16 %v63
    %v151 = vunpack.c.h.b16 %v63
    %v152 = vunpack.c.l.b16 %v64
    %v153 = vunpack.c.h.b16 %v64
    %v154 = vunpack.c.l.b16 %v65
    %v155 = vunpack.c.h.b16 %v65
    %v156 = vunpack.c.l.b16 %v66
    %v157 = vunpack.c.h.b16 %v66
    %v158 = vunpack.c.l.b16 %v67
    %v159 = vunpack.c.h.b16 %v67
    %v160 = vunpack.c.l.b16 %v68
    %v161 = vunpack.c.h.b16 %v68
    %v162 = vunpack.c.l.b16 %v69
    %v163 = vunpack.c.h.b16 %v69
    %v164 = vunpack.c.l.b16 %v70
    %v165 = vunpack.c.h.b16 %v70
    %v166 = vunpack.c.l.b16 %v71
    %v167 = vunpack.c.h.b16 %v71
    %v168 = vpack.c.b16 %v108, %v104
    %v169 = vpack.c.b16 %v109, %v105
    %v170 = vpack.c.b16 %v110, %v106
    %v171 = vpack.c.b16 %v111, %v107
    %v172 = vpack.c.b16 %v116, %v112
    %v173 = vpack.c.b16 %v117, %v113
    %v174 = vpack.c.b16 %v118, %v114
    %v175 = vpack.c.b16 %v119, %v115
    %v176 = vpack.c.b16 %v124, %v120
    %v177 = vpack.c.b16 %v125, %v121
    %v178 = vpack.c.b16 %v126, %v122
    %v179 = vpack.c.b16 %v127, %v123
    %v180 = vpack.c.b16 %v132, %v128
    %v181 = vpack.c.b16 %v133, %v129
    %v182 = vpack.c.b16 %v134, %v130
    %v183 = vpack.c.b16 %v135, %v131
    %v184 = vpack.c.b16 %v140, %v136
    %v185 = vpack.c.b16 %v141, %v137
    %v186 = vpack.c.b16 %v142, %v138
    %v187 = vpack.c.b16 %v143, %v139
    %v188 = vpack.c.b16 %v148, %v144
    %v189 = vpack.c.b16 %v149, %v145
    %v190 = vpack.c.b16 %v150, %v146
    %v191 = vpack.c.b16 %v151, %v147
    %v192 = vpack.c.b16 %v156, %v152
    %v193 = vpack.c.b16 %v157, %v153
    %v194 = vpack.c.b16 %v158, %v154
    %v195 = vpack.c.b16 %v159, %v155
    %v196 = vpack.c.b16 %v164, %v160
    %v197 = vpack.c.b16 %v165, %v161
    %v198 = vpack.c.b16 %v166, %v162
    %v199 = vpack.c.b16 %v167, %v163
    %232 = vmatprep.subr.bf16.mxu0 %v197
    %233 = vmatpush1.bf16.msra.mxu0 %v196
    %234 = vmatprep.subr.bf16.mxu0 %v193
    %235 = vmatpush1.bf16.msra.mxu0 %v192
    %236 = vmatprep.subr.bf16.mxu0 %v189
    %237 = vmatpush1.bf16.msra.mxu0 %v188
    %238 = vmatprep.subr.bf16.mxu0 %v185
    %239 = vmatpush1.bf16.msra.mxu0 %v184
    %240 = vmatprep.subr.bf16.mxu0 %v181
    %241 = vmatpush1.bf16.msra.mxu0 %v180
    %242 = vmatprep.subr.bf16.mxu0 %v177
    %243 = vmatpush1.bf16.msra.mxu0 %v176
    %244 = vmatprep.subr.bf16.mxu0 %v173
    %245 = vmatpush1.bf16.msra.mxu0 %v172
    %246 = vmatprep.subr.bf16.mxu0 %v169
    %247 = vmatpush1.bf16.msra.mxu0 %v168
    %248 = vmatprep.subr.bf16.mxu0 0
    %249 = vmatpush2.bf16.msra.mxu0 0
    %250 = vmatprep.subr.bf16.mxu0 0
    %251 = vmatpush2.bf16.msra.mxu0 0
    %252 = vmatprep.subr.bf16.mxu0 0
    %253 = vmatpush2.bf16.msra.mxu0 0
    %254 = vmatprep.subr.bf16.mxu0 0
    %255 = vmatpush2.bf16.msra.mxu0 0
    %256 = vmatprep.subr.bf16.mxu0 0
    %257 = vmatpush2.bf16.msra.mxu0 0
    %258 = vmatprep.subr.bf16.mxu0 0
    %259 = vmatpush2.bf16.msra.mxu0 0
    %260 = vmatprep.subr.bf16.mxu0 0
    %261 = vmatpush2.bf16.msra.mxu0 0
    %262 = vmatprep.subr.bf16.mxu0 0
    %263 = vmatpush2.bf16.msra.mxu0 0
    %264 = vmatprep.mubr.bf16.mxu0 0
    %265 = vmatmul.mubr.bf16.gmra.mxu0 %v39
    %v266 = vpop.f32.mrf.mxu0
    %v267 = vadd.f32 0.0, %v266
    %v268 = vpop.f32.mrf.mxu0
    %v269 = vadd.f32 0.0, %v268
    %v270 = vpop.f32.mrf.mxu0
    %v271 = vpop.f32.mrf.mxu0
    %272 = vdwg.mxu0
    %273 = vmatprep.subr.bf16.mxu0 %v199
    %274 = vmatpush1.bf16.msra.mxu0 %v198
    %275 = vmatprep.subr.bf16.mxu0 %v195
    %276 = vmatpush1.bf16.msra.mxu0 %v194
    %277 = vmatprep.subr.bf16.mxu0 %v191
    %278 = vmatpush1.bf16.msra.mxu0 %v190
    %279 = vmatprep.subr.bf16.mxu0 %v187
    %280 = vmatpush1.bf16.msra.mxu0 %v186
    %281 = vmatprep.subr.bf16.mxu0 %v183
    %282 = vmatpush1.bf16.msra.mxu0 %v182
    %283 = vmatprep.subr.bf16.mxu0 %v179
    %284 = vmatpush1.bf16.msra.mxu0 %v178
    %285 = vmatprep.subr.bf16.mxu0 %v175
    %286 = vmatpush1.bf16.msra.mxu0 %v174
    %287 = vmatprep.subr.bf16.mxu0 %v171
    %288 = vmatpush1.bf16.msra.mxu0 %v170
    %289 = vmatprep.subr.bf16.mxu0 0
    %290 = vmatpush2.bf16.msra.mxu0 0
    %291 = vmatprep.subr.bf16.mxu0 0
    %292 = vmatpush2.bf16.msra.mxu0 0
    %293 = vmatprep.subr.bf16.mxu0 0
    %294 = vmatpush2.bf16.msra.mxu0 0
    %295 = vmatprep.subr.bf16.mxu0 0
    %296 = vmatpush2.bf16.msra.mxu0 0
    %297 = vmatprep.subr.bf16.mxu0 0
    %298 = vmatpush2.bf16.msra.mxu0 0
    %299 = vmatprep.subr.bf16.mxu0 0
    %300 = vmatpush2.bf16.msra.mxu0 0
    %301 = vmatprep.subr.bf16.mxu0 0
    %302 = vmatpush2.bf16.msra.mxu0 0
    %303 = vmatprep.subr.bf16.mxu0 0
    %304 = vmatpush2.bf16.msra.mxu0 0
    %305 = vmatprep.mubr.bf16.mxu0 0
    %306 = vmatmul.mubr.bf16.gmra.mxu0 %v39
    %v307 = vpop.f32.mrf.mxu0
    %v308 = vadd.f32 0.0, %v307
    %v309 = vpop.f32.mrf.mxu0
    %v310 = vadd.f32 0.0, %v309
    %v311 = vpop.f32.mrf.mxu0
    %v312 = vpop.f32.mrf.mxu0
    %313 = vdwg.mxu0
    %v314 = vadd.f32 %v35, %v267
    %v315 = vadd.f32 %v36, %v269
    %v316 = vadd.f32 %v37, %v308
    %v317 = vadd.f32 %v38, %v310
    %v318 = vmul.f32 %v314, 0.5
    %v319 = vtanh.pop %v318
    %v320 = vmul.f32 %v319, 0.5
    %v321 = vadd.f32 %v320, 0.5
    %v322 = vmul.f32 %v315, 0.5
    %v323 = vtanh.pop %v322
    %v324 = vmul.f32 %v323, 0.5
    %v325 = vadd.f32 %v324, 0.5
    %v326 = vtanh.pop %v316
    %v327 = vmul.f32 %v317, 0.5
    %v328 = vtanh.pop %v327
    %v329 = vmul.f32 %v328, 0.5
    %v330 = vadd.f32 %v329, 0.5
    %v331 = vmul.f32 %v325, %v32
    %v332 = vmul.f32 %v321, %v326
    %v333 = vadd.f32 %v331, %v332
    %v334 = vtanh.pop %v333
    %v335 = vmul.f32 %v330, %v334
    %336 = vst [vmem:[#allocation4] sm:$0xff] %v335
    %s337 = scalar_lea.vmem %s0, 16
    %v338 = vld [vmem:[%s337] sm:$0xff]
    %v339 = vld [vmem:[%s337 + $0x8] sm:$0xff]
    %v340 = vunpack.c.l.bf16 %v338
    %v341 = vunpack.c.h.bf16 %v338
    %v342 = vunpack.c.l.bf16 %v339
    %v343 = vunpack.c.h.bf16 %v339
    %v344 = vpack.c.bf16 %v335, %v335
    %v345 = vld [vmem:[%s3] sm:$0xff]
    %v346 = vld [vmem:[%s3 + $0x8] sm:$0xff]
    %v347 = vld [vmem:[%s3 + $0x10] sm:$0xff]
    %v348 = vld [vmem:[%s3 + $0x18] sm:$0xff]
    %v349 = vld [vmem:[%s3 + $0x20] sm:$0xff]
    %v350 = vld [vmem:[%s3 + $0x28] sm:$0xff]
    %v351 = vld [vmem:[%s3 + $0x30] sm:$0xff]
    %v352 = vld [vmem:[%s3 + $0x38] sm:$0xff]
    %v353 = vld [vmem:[%s3 + $0x40] sm:$0xff]
    %v354 = vld [vmem:[%s3 + $0x48] sm:$0xff]
    %v355 = vld [vmem:[%s3 + $0x50] sm:$0xff]
    %v356 = vld [vmem:[%s3 + $0x58] sm:$0xff]
    %v357 = vld [vmem:[%s3 + $0x60] sm:$0xff]
    %v358 = vld [vmem:[%s3 + $0x68] sm:$0xff]
    %v359 = vld [vmem:[%s3 + $0x70] sm:$0xff]
    %v360 = vld [vmem:[%s3 + $0x78] sm:$0xff]
    %v361 = vld [vmem:[%s3 + $0x80] sm:$0xff]
    %v362 = vld [vmem:[%s3 + $0x88] sm:$0xff]
    %v363 = vld [vmem:[%s3 + $0x90] sm:$0xff]
    %v364 = vld [vmem:[%s3 + $0x98] sm:$0xff]
    %v365 = vld [vmem:[%s3 + $0xa0] sm:$0xff]
    %v366 = vld [vmem:[%s3 + $0xa8] sm:$0xff]
    %v367 = vld [vmem:[%s3 + $0xb0] sm:$0xff]
    %v368 = vld [vmem:[%s3 + $0xb8] sm:$0xff]
    %v369 = vld [vmem:[%s3 + $0xc0] sm:$0xff]
    %v370 = vld [vmem:[%s3 + $0xc8] sm:$0xff]
    %v371 = vld [vmem:[%s3 + $0xd0] sm:$0xff]
    %v372 = vld [vmem:[%s3 + $0xd8] sm:$0xff]
    %v373 = vld [vmem:[%s3 + $0xe0] sm:$0xff]
    %v374 = vld [vmem:[%s3 + $0xe8] sm:$0xff]
    %v375 = vld [vmem:[%s3 + $0xf0] sm:$0xff]
    %v376 = vld [vmem:[%s3 + $0xf8] sm:$0xff]
    %v409 = vunpack.c.l.b16 %v345
    %v410 = vunpack.c.h.b16 %v345
    %v411 = vunpack.c.l.b16 %v346
    %v412 = vunpack.c.h.b16 %v346
    %v413 = vunpack.c.l.b16 %v347
    %v414 = vunpack.c.h.b16 %v347
    %v415 = vunpack.c.l.b16 %v348
    %v416 = vunpack.c.h.b16 %v348
    %v417 = vunpack.c.l.b16 %v349
    %v418 = vunpack.c.h.b16 %v349
    %v419 = vunpack.c.l.b16 %v350
    %v420 = vunpack.c.h.b16 %v350
    %v421 = vunpack.c.l.b16 %v351
    %v422 = vunpack.c.h.b16 %v351
    %v423 = vunpack.c.l.b16 %v352
    %v424 = vunpack.c.h.b16 %v352
    %v425 = vunpack.c.l.b16 %v353
    %v426 = vunpack.c.h.b16 %v353
    %v427 = vunpack.c.l.b16 %v354
    %v428 = vunpack.c.h.b16 %v354
    %v429 = vunpack.c.l.b16 %v355
    %v430 = vunpack.c.h.b16 %v355
    %v431 = vunpack.c.l.b16 %v356
    %v432 = vunpack.c.h.b16 %v356
    %v433 = vunpack.c.l.b16 %v357
    %v434 = vunpack.c.h.b16 %v357
    %v435 = vunpack.c.l.b16 %v358
    %v436 = vunpack.c.h.b16 %v358
    %v437 = vunpack.c.l.b16 %v359
    %v438 = vunpack.c.h.b16 %v359
    %v439 = vunpack.c.l.b16 %v360
    %v440 = vunpack.c.h.b16 %v360
    %v441 = vunpack.c.l.b16 %v361
    %v442 = vunpack.c.h.b16 %v361
    %v443 = vunpack.c.l.b16 %v362
    %v444 = vunpack.c.h.b16 %v362
    %v445 = vunpack.c.l.b16 %v363
    %v446 = vunpack.c.h.b16 %v363
    %v447 = vunpack.c.l.b16 %v364
    %v448 = vunpack.c.h.b16 %v364
    %v449 = vunpack.c.l.b16 %v365
    %v450 = vunpack.c.h.b16 %v365
    %v451 = vunpack.c.l.b16 %v366
    %v452 = vunpack.c.h.b16 %v366
    %v453 = vunpack.c.l.b16 %v367
    %v454 = vunpack.c.h.b16 %v367
    %v455 = vunpack.c.l.b16 %v368
    %v456 = vunpack.c.h.b16 %v368
    %v457 = vunpack.c.l.b16 %v369
    %v458 = vunpack.c.h.b16 %v369
    %v459 = vunpack.c.l.b16 %v370
    %v460 = vunpack.c.h.b16 %v370
    %v461 = vunpack.c.l.b16 %v371
    %v462 = vunpack.c.h.b16 %v371
    %v463 = vunpack.c.l.b16 %v372
    %v464 = vunpack.c.h.b16 %v372
    %v465 = vunpack.c.l.b16 %v373
    %v466 = vunpack.c.h.b16 %v373
    %v467 = vunpack.c.l.b16 %v374
    %v468 = vunpack.c.h.b16 %v374
    %v469 = vunpack.c.l.b16 %v375
    %v470 = vunpack.c.h.b16 %v375
    %v471 = vunpack.c.l.b16 %v376
    %v472 = vunpack.c.h.b16 %v376
    %v473 = vpack.c.b16 %v413, %v409
    %v474 = vpack.c.b16 %v414, %v410
    %v475 = vpack.c.b16 %v415, %v411
    %v476 = vpack.c.b16 %v416, %v412
    %v477 = vpack.c.b16 %v421, %v417
    %v478 = vpack.c.b16 %v422, %v418
    %v479 = vpack.c.b16 %v423, %v419
    %v480 = vpack.c.b16 %v424, %v420
    %v481 = vpack.c.b16 %v429, %v425
    %v482 = vpack.c.b16 %v430, %v426
    %v483 = vpack.c.b16 %v431, %v427
    %v484 = vpack.c.b16 %v432, %v428
    %v485 = vpack.c.b16 %v437, %v433
    %v486 = vpack.c.b16 %v438, %v434
    %v487 = vpack.c.b16 %v439, %v435
    %v488 = vpack.c.b16 %v440, %v436
    %v489 = vpack.c.b16 %v445, %v441
    %v490 = vpack.c.b16 %v446, %v442
    %v491 = vpack.c.b16 %v447, %v443
    %v492 = vpack.c.b16 %v448, %v444
    %v493 = vpack.c.b16 %v453, %v449
    %v494 = vpack.c.b16 %v454, %v450
    %v495 = vpack.c.b16 %v455, %v451
    %v496 = vpack.c.b16 %v456, %v452
    %v497 = vpack.c.b16 %v461, %v457
    %v498 = vpack.c.b16 %v462, %v458
    %v499 = vpack.c.b16 %v463, %v459
    %v500 = vpack.c.b16 %v464, %v460
    %v501 = vpack.c.b16 %v469, %v465
    %v502 = vpack.c.b16 %v470, %v466
    %v503 = vpack.c.b16 %v471, %v467
    %v504 = vpack.c.b16 %v472, %v468
    %537 = vmatprep.subr.bf16.mxu0 %v502
    %538 = vmatpush1.bf16.msra.mxu0 %v501
    %539 = vmatprep.subr.bf16.mxu0 %v498
    %540 = vmatpush1.bf16.msra.mxu0 %v497
    %541 = vmatprep.subr.bf16.mxu0 %v494
    %542 = vmatpush1.bf16.msra.mxu0 %v493
    %543 = vmatprep.subr.bf16.mxu0 %v490
    %544 = vmatpush1.bf16.msra.mxu0 %v489
    %545 = vmatprep.subr.bf16.mxu0 %v486
    %546 = vmatpush1.bf16.msra.mxu0 %v485
    %547 = vmatprep.subr.bf16.mxu0 %v482
    %548 = vmatpush1.bf16.msra.mxu0 %v481
    %549 = vmatprep.subr.bf16.mxu0 %v478
    %550 = vmatpush1.bf16.msra.mxu0 %v477
    %551 = vmatprep.subr.bf16.mxu0 %v474
    %552 = vmatpush1.bf16.msra.mxu0 %v473
    %553 = vmatprep.subr.bf16.mxu0 0
    %554 = vmatpush2.bf16.msra.mxu0 0
    %555 = vmatprep.subr.bf16.mxu0 0
    %556 = vmatpush2.bf16.msra.mxu0 0
    %557 = vmatprep.subr.bf16.mxu0 0
    %558 = vmatpush2.bf16.msra.mxu0 0
    %559 = vmatprep.subr.bf16.mxu0 0
    %560 = vmatpush2.bf16.msra.mxu0 0
    %561 = vmatprep.subr.bf16.mxu0 0
    %562 = vmatpush2.bf16.msra.mxu0 0
    %563 = vmatprep.subr.bf16.mxu0 0
    %564 = vmatpush2.bf16.msra.mxu0 0
    %565 = vmatprep.subr.bf16.mxu0 0
    %566 = vmatpush2.bf16.msra.mxu0 0
    %567 = vmatprep.subr.bf16.mxu0 0
    %568 = vmatpush2.bf16.msra.mxu0 0
    %569 = vmatprep.mubr.bf16.mxu0 0
    %570 = vmatmul.mubr.bf16.gmra.mxu0 %v344
    %v571 = vpop.f32.mrf.mxu0
    %v572 = vadd.f32 0.0, %v571
    %v573 = vpop.f32.mrf.mxu0
    %v574 = vadd.f32 0.0, %v573
    %v575 = vpop.f32.mrf.mxu0
    %v576 = vpop.f32.mrf.mxu0
    %577 = vdwg.mxu0
    %578 = vmatprep.subr.bf16.mxu0 %v504
    %579 = vmatpush1.bf16.msra.mxu0 %v503
    %580 = vmatprep.subr.bf16.mxu0 %v500
    %581 = vmatpush1.bf16.msra.mxu0 %v499
    %582 = vmatprep.subr.bf16.mxu0 %v496
    %583 = vmatpush1.bf16.msra.mxu0 %v495
    %584 = vmatprep.subr.bf16.mxu0 %v492
    %585 = vmatpush1.bf16.msra.mxu0 %v491
    %586 = vmatprep.subr.bf16.mxu0 %v488
    %587 = vmatpush1.bf16.msra.mxu0 %v487
    %588 = vmatprep.subr.bf16.mxu0 %v484
    %589 = vmatpush1.bf16.msra.mxu0 %v483
    %590 = vmatprep.subr.bf16.mxu0 %v480
    %591 = vmatpush1.bf16.msra.mxu0 %v479
    %592 = vmatprep.subr.bf16.mxu0 %v476
    %593 = vmatpush1.bf16.msra.mxu0 %v475
    %594 = vmatprep.subr.bf16.mxu0 0
    %595 = vmatpush2.bf16.msra.mxu0 0
    %596 = vmatprep.subr.bf16.mxu0 0
    %597 = vmatpush2.bf16.msra.mxu0 0
    %598 = vmatprep.subr.bf16.mxu0 0
    %599 = vmatpush2.bf16.msra.mxu0 0
    %600 = vmatprep.subr.bf16.mxu0 0
    %601 = vmatpush2.bf16.msra.mxu0 0
    %602 = vmatprep.subr.bf16.mxu0 0
    %603 = vmatpush2.bf16.msra.mxu0 0
    %604 = vmatprep.subr.bf16.mxu0 0
    %605 = vmatpush2.bf16.msra.mxu0 0
    %606 = vmatprep.subr.bf16.mxu0 0
    %607 = vmatpush2.bf16.msra.mxu0 0
    %608 = vmatprep.subr.bf16.mxu0 0
    %609 = vmatpush2.bf16.msra.mxu0 0
    %610 = vmatprep.mubr.bf16.mxu0 0
    %611 = vmatmul.mubr.bf16.gmra.mxu0 %v344
    %v612 = vpop.f32.mrf.mxu0
    %v613 = vadd.f32 0.0, %v612
    %v614 = vpop.f32.mrf.mxu0
    %v615 = vadd.f32 0.0, %v614
    %v616 = vpop.f32.mrf.mxu0
    %v617 = vpop.f32.mrf.mxu0
    %618 = vdwg.mxu0
    %v619 = vadd.f32 %v340, %v572
    %v620 = vadd.f32 %v341, %v574
    %v621 = vadd.f32 %v342, %v613
    %v622 = vadd.f32 %v343, %v615
    %v623 = vmul.f32 %v619, 0.5
    %v624 = vtanh.pop %v623
    %v625 = vmul.f32 %v624, 0.5
    %v626 = vadd.f32 %v625, 0.5
    %v627 = vmul.f32 %v620, 0.5
    %v628 = vtanh.pop %v627
    %v629 = vmul.f32 %v628, 0.5
    %v630 = vadd.f32 %v629, 0.5
    %v631 = vtanh.pop %v621
    %v632 = vmul.f32 %v622, 0.5
    %v633 = vtanh.pop %v632
    %v634 = vmul.f32 %v633, 0.5
    %v635 = vadd.f32 %v634, 0.5
    %v636 = vmul.f32 %v630, %v333
    %v637 = vmul.f32 %v626, %v631
    %v638 = vadd.f32 %v636, %v637
    %v639 = vtanh.pop %v638
    %v640 = vmul.f32 %v635, %v639
    %s641 = scalar_lea.vmem [#allocation4], 8
    %642 = vst [vmem:[%s641] sm:$0xff] %v640
    %s643 = scalar_lea.vmem %s0, 32
    %v644 = vld [vmem:[%s643] sm:$0xff]
    %v645 = vld [vmem:[%s643 + $0x8] sm:$0xff]
    %v646 = vunpack.c.l.bf16 %v644
    %v647 = vunpack.c.h.bf16 %v644
    %v648 = vunpack.c.l.bf16 %v645
    %v649 = vunpack.c.h.bf16 %v645
    %v650 = vpack.c.bf16 %v640, %v640
    %v651 = vld [vmem:[%s3] sm:$0xff]
    %v652 = vld [vmem:[%s3 + $0x8] sm:$0xff]
    %v653 = vld [vmem:[%s3 + $0x10] sm:$0xff]
    %v654 = vld [vmem:[%s3 + $0x18] sm:$0xff]
    %v655 = vld [vmem:[%s3 + $0x20] sm:$0xff]
    %v656 = vld [vmem:[%s3 + $0x28] sm:$0xff]
    %v657 = vld [vmem:[%s3 + $0x30] sm:$0xff]
    %v658 = vld [vmem:[%s3 + $0x38] sm:$0xff]
    %v659 = vld [vmem:[%s3 + $0x40] sm:$0xff]
    %v660 = vld [vmem:[%s3 + $0x48] sm:$0xff]
    %v661 = vld [vmem:[%s3 + $0x50] sm:$0xff]
    %v662 = vld [vmem:[%s3 + $0x58] sm:$0xff]
    %v663 = vld [vmem:[%s3 + $0x60] sm:$0xff]
    %v664 = vld [vmem:[%s3 + $0x68] sm:$0xff]
    %v665 = vld [vmem:[%s3 + $0x70] sm:$0xff]
    %v666 = vld [vmem:[%s3 + $0x78] sm:$0xff]
    %v667 = vld [vmem:[%s3 + $0x80] sm:$0xff]
    %v668 = vld [vmem:[%s3 + $0x88] sm:$0xff]
    %v669 = vld [vmem:[%s3 + $0x90] sm:$0xff]
    %v670 = vld [vmem:[%s3 + $0x98] sm:$0xff]
    %v671 = vld [vmem:[%s3 + $0xa0] sm:$0xff]
    %v672 = vld [vmem:[%s3 + $0xa8] sm:$0xff]
    %v673 = vld [vmem:[%s3 + $0xb0] sm:$0xff]
    %v674 = vld [vmem:[%s3 + $0xb8] sm:$0xff]
    %v675 = vld [vmem:[%s3 + $0xc0] sm:$0xff]
    %v676 = vld [vmem:[%s3 + $0xc8] sm:$0xff]
    %v677 = vld [vmem:[%s3 + $0xd0] sm:$0xff]
    %v678 = vld [vmem:[%s3 + $0xd8] sm:$0xff]
    %v679 = vld [vmem:[%s3 + $0xe0] sm:$0xff]
    %v680 = vld [vmem:[%s3 + $0xe8] sm:$0xff]
    %v681 = vld [vmem:[%s3 + $0xf0] sm:$0xff]
    %v682 = vld [vmem:[%s3 + $0xf8] sm:$0xff]
    %v715 = vunpack.c.l.b16 %v651
    %v716 = vunpack.c.h.b16 %v651
    %v717 = vunpack.c.l.b16 %v652
    %v718 = vunpack.c.h.b16 %v652
    %v719 = vunpack.c.l.b16 %v653
    %v720 = vunpack.c.h.b16 %v653
    %v721 = vunpack.c.l.b16 %v654
    %v722 = vunpack.c.h.b16 %v654
    %v723 = vunpack.c.l.b16 %v655
    %v724 = vunpack.c.h.b16 %v655
    %v725 = vunpack.c.l.b16 %v656
    %v726 = vunpack.c.h.b16 %v656
    %v727 = vunpack.c.l.b16 %v657
    %v728 = vunpack.c.h.b16 %v657
    %v729 = vunpack.c.l.b16 %v658
    %v730 = vunpack.c.h.b16 %v658
    %v731 = vunpack.c.l.b16 %v659
    %v732 = vunpack.c.h.b16 %v659
    %v733 = vunpack.c.l.b16 %v660
    %v734 = vunpack.c.h.b16 %v660
    %v735 = vunpack.c.l.b16 %v661
    %v736 = vunpack.c.h.b16 %v661
    %v737 = vunpack.c.l.b16 %v662
    %v738 = vunpack.c.h.b16 %v662
    %v739 = vunpack.c.l.b16 %v663
    %v740 = vunpack.c.h.b16 %v663
    %v741 = vunpack.c.l.b16 %v664
    %v742 = vunpack.c.h.b16 %v664
    %v743 = vunpack.c.l.b16 %v665
    %v744 = vunpack.c.h.b16 %v665
    %v745 = vunpack.c.l.b16 %v666
    %v746 = vunpack.c.h.b16 %v666
    %v747 = vunpack.c.l.b16 %v667
    %v748 = vunpack.c.h.b16 %v667
    %v749 = vunpack.c.l.b16 %v668
    %v750 = vunpack.c.h.b16 %v668
    %v751 = vunpack.c.l.b16 %v669
    %v752 = vunpack.c.h.b16 %v669
    %v753 = vunpack.c.l.b16 %v670
    %v754 = vunpack.c.h.b16 %v670
    %v755 = vunpack.c.l.b16 %v671
    %v756 = vunpack.c.h.b16 %v671
    %v757 = vunpack.c.l.b16 %v672
    %v758 = vunpack.c.h.b16 %v672
    %v759 = vunpack.c.l.b16 %v673
    %v760 = vunpack.c.h.b16 %v673
    %v761 = vunpack.c.l.b16 %v674
    %v762 = vunpack.c.h.b16 %v674
    %v763 = vunpack.c.l.b16 %v675
    %v764 = vunpack.c.h.b16 %v675
    %v765 = vunpack.c.l.b16 %v676
    %v766 = vunpack.c.h.b16 %v676
    %v767 = vunpack.c.l.b16 %v677
    %v768 = vunpack.c.h.b16 %v677
    %v769 = vunpack.c.l.b16 %v678
    %v770 = vunpack.c.h.b16 %v678
    %v771 = vunpack.c.l.b16 %v679
    %v772 = vunpack.c.h.b16 %v679
    %v773 = vunpack.c.l.b16 %v680
    %v774 = vunpack.c.h.b16 %v680
    %v775 = vunpack.c.l.b16 %v681
    %v776 = vunpack.c.h.b16 %v681
    %v777 = vunpack.c.l.b16 %v682
    %v778 = vunpack.c.h.b16 %v682
    %v779 = vpack.c.b16 %v719, %v715
    %v780 = vpack.c.b16 %v720, %v716
    %v781 = vpack.c.b16 %v721, %v717
    %v782 = vpack.c.b16 %v722, %v718
    %v783 = vpack.c.b16 %v727, %v723
    %v784 = vpack.c.b16 %v728, %v724
    %v785 = vpack.c.b16 %v729, %v725
    %v786 = vpack.c.b16 %v730, %v726
    %v787 = vpack.c.b16 %v735, %v731
    %v788 = vpack.c.b16 %v736, %v732
    %v789 = vpack.c.b16 %v737, %v733
    %v790 = vpack.c.b16 %v738, %v734
    %v791 = vpack.c.b16 %v743, %v739
    %v792 = vpack.c.b16 %v744, %v740
    %v793 = vpack.c.b16 %v745, %v741
    %v794 = vpack.c.b16 %v746, %v742
    %v795 = vpack.c.b16 %v751, %v747
    %v796 = vpack.c.b16 %v752, %v748
    %v797 = vpack.c.b16 %v753, %v749
    %v798 = vpack.c.b16 %v754, %v750
    %v799 = vpack.c.b16 %v759, %v755
    %v800 = vpack.c.b16 %v760, %v756
    %v801 = vpack.c.b16 %v761, %v757
    %v802 = vpack.c.b16 %v762, %v758
    %v803 = vpack.c.b16 %v767, %v763
    %v804 = vpack.c.b16 %v768, %v764
    %v805 = vpack.c.b16 %v769, %v765
    %v806 = vpack.c.b16 %v770, %v766
    %v807 = vpack.c.b16 %v775, %v771
    %v808 = vpack.c.b16 %v776, %v772
    %v809 = vpack.c.b16 %v777, %v773
    %v810 = vpack.c.b16 %v778, %v774
    %843 = vmatprep.subr.bf16.mxu0 %v808
    %844 = vmatpush1.bf16.msra.mxu0 %v807
    %845 = vmatprep.subr.bf16.mxu0 %v804
    %846 = vmatpush1.bf16.msra.mxu0 %v803
    %847 = vmatprep.subr.bf16.mxu0 %v800
    %848 = vmatpush1.bf16.msra.mxu0 %v799
    %849 = vmatprep.subr.bf16.mxu0 %v796
    %850 = vmatpush1.bf16.msra.mxu0 %v795
    %851 = vmatprep.subr.bf16.mxu0 %v792
    %852 = vmatpush1.bf16.msra.mxu0 %v791
    %853 = vmatprep.subr.bf16.mxu0 %v788
    %854 = vmatpush1.bf16.msra.mxu0 %v787
    %855 = vmatprep.subr.bf16.mxu0 %v784
    %856 = vmatpush1.bf16.msra.mxu0 %v783
    %857 = vmatprep.subr.bf16.mxu0 %v780
    %858 = vmatpush1.bf16.msra.mxu0 %v779
    %859 = vmatprep.subr.bf16.mxu0 0
    %860 = vmatpush2.bf16.msra.mxu0 0
    %861 = vmatprep.subr.bf16.mxu0 0
    %862 = vmatpush2.bf16.msra.mxu0 0
    %863 = vmatprep.subr.bf16.mxu0 0
    %864 = vmatpush2.bf16.msra.mxu0 0
    %865 = vmatprep.subr.bf16.mxu0 0
    %866 = vmatpush2.bf16.msra.mxu0 0
    %867 = vmatprep.subr.bf16.mxu0 0
    %868 = vmatpush2.bf16.msra.mxu0 0
    %869 = vmatprep.subr.bf16.mxu0 0
    %870 = vmatpush2.bf16.msra.mxu0 0
    %871 = vmatprep.subr.bf16.mxu0 0
    %872 = vmatpush2.bf16.msra.mxu0 0
    %873 = vmatprep.subr.bf16.mxu0 0
    %874 = vmatpush2.bf16.msra.mxu0 0
    %875 = vmatprep.mubr.bf16.mxu0 0
    %876 = vmatmul.mubr.bf16.gmra.mxu0 %v650
    %v877 = vpop.f32.mrf.mxu0
    %v878 = vadd.f32 0.0, %v877
    %v879 = vpop.f32.mrf.mxu0
    %v880 = vadd.f32 0.0, %v879
    %v881 = vpop.f32.mrf.mxu0
    %v882 = vpop.f32.mrf.mxu0
    %883 = vdwg.mxu0
    %884 = vmatprep.subr.bf16.mxu0 %v810
    %885 = vmatpush1.bf16.msra.mxu0 %v809
    %886 = vmatprep.subr.bf16.mxu0 %v806
    %887 = vmatpush1.bf16.msra.mxu0 %v805
    %888 = vmatprep.subr.bf16.mxu0 %v802
    %889 = vmatpush1.bf16.msra.mxu0 %v801
    %890 = vmatprep.subr.bf16.mxu0 %v798
    %891 = vmatpush1.bf16.msra.mxu0 %v797
    %892 = vmatprep.subr.bf16.mxu0 %v794
    %893 = vmatpush1.bf16.msra.mxu0 %v793
    %894 = vmatprep.subr.bf16.mxu0 %v790
    %895 = vmatpush1.bf16.msra.mxu0 %v789
    %896 = vmatprep.subr.bf16.mxu0 %v786
    %897 = vmatpush1.bf16.msra.mxu0 %v785
    %898 = vmatprep.subr.bf16.mxu0 %v782
    %899 = vmatpush1.bf16.msra.mxu0 %v781
    %900 = vmatprep.subr.bf16.mxu0 0
    %901 = vmatpush2.bf16.msra.mxu0 0
    %902 = vmatprep.subr.bf16.mxu0 0
    %903 = vmatpush2.bf16.msra.mxu0 0
    %904 = vmatprep.subr.bf16.mxu0 0
    %905 = vmatpush2.bf16.msra.mxu0 0
    %906 = vmatprep.subr.bf16.mxu0 0
    %907 = vmatpush2.bf16.msra.mxu0 0
    %908 = vmatprep.subr.bf16.mxu0 0
    %909 = vmatpush2.bf16.msra.mxu0 0
    %910 = vmatprep.subr.bf16.mxu0 0
    %911 = vmatpush2.bf16.msra.mxu0 0
    %912 = vmatprep.subr.bf16.mxu0 0
    %913 = vmatpush2.bf16.msra.mxu0 0
    %914 = vmatprep.subr.bf16.mxu0 0
    %915 = vmatpush2.bf16.msra.mxu0 0
    %916 = vmatprep.mubr.bf16.mxu0 0
    %917 = vmatmul.mubr.bf16.gmra.mxu0 %v650
    %v918 = vpop.f32.mrf.mxu0
    %v919 = vadd.f32 0.0, %v918
    %v920 = vpop.f32.mrf.mxu0
    %v921 = vadd.f32 0.0, %v920
    %v922 = vpop.f32.mrf.mxu0
    %v923 = vpop.f32.mrf.mxu0
    %924 = vdwg.mxu0
    %v925 = vadd.f32 %v646, %v878
    %v926 = vadd.f32 %v647, %v880
    %v927 = vadd.f32 %v648, %v919
    %v928 = vadd.f32 %v649, %v921
    %v929 = vmul.f32 %v925, 0.5
    %v930 = vtanh.pop %v929
    %v931 = vmul.f32 %v930, 0.5
    %v932 = vadd.f32 %v931, 0.5
    %v933 = vmul.f32 %v926, 0.5
    %v934 = vtanh.pop %v933
    %v935 = vmul.f32 %v934, 0.5
    %v936 = vadd.f32 %v935, 0.5
    %v937 = vtanh.pop %v927
    %v938 = vmul.f32 %v928, 0.5
    %v939 = vtanh.pop %v938
    %v940 = vmul.f32 %v939, 0.5
    %v941 = vadd.f32 %v940, 0.5
    %v942 = vmul.f32 %v936, %v638
    %v943 = vmul.f32 %v932, %v937
    %v944 = vadd.f32 %v942, %v943
    %v945 = vtanh.pop %v944
    %v946 = vmul.f32 %v941, %v945
    %s947 = scalar_lea.vmem [#allocation4], 16
    %948 = vst [vmem:[%s947] sm:$0xff] %v946
    %s949 = scalar_lea.vmem %s0, 48
    %v950 = vld [vmem:[%s949] sm:$0xff]
    %v951 = vld [vmem:[%s949 + $0x8] sm:$0xff]
    %v952 = vunpack.c.l.bf16 %v950
    %v953 = vunpack.c.h.bf16 %v950
    %v954 = vunpack.c.l.bf16 %v951
    %v955 = vunpack.c.h.bf16 %v951
    %v956 = vpack.c.bf16 %v946, %v946
    %v957 = vld [vmem:[%s3] sm:$0xff]
    %v958 = vld [vmem:[%s3 + $0x8] sm:$0xff]
    %v959 = vld [vmem:[%s3 + $0x10] sm:$0xff]
    %v960 = vld [vmem:[%s3 + $0x18] sm:$0xff]
    %v961 = vld [vmem:[%s3 + $0x20] sm:$0xff]
    %v962 = vld [vmem:[%s3 + $0x28] sm:$0xff]
    %v963 = vld [vmem:[%s3 + $0x30] sm:$0xff]
    %v964 = vld [vmem:[%s3 + $0x38] sm:$0xff]
    %v965 = vld [vmem:[%s3 + $0x40] sm:$0xff]
    %v966 = vld [vmem:[%s3 + $0x48] sm:$0xff]
    %v967 = vld [vmem:[%s3 + $0x50] sm:$0xff]
    %v968 = vld [vmem:[%s3 + $0x58] sm:$0xff]
    %v969 = vld [vmem:[%s3 + $0x60] sm:$0xff]
    %v970 = vld [vmem:[%s3 + $0x68] sm:$0xff]
    %v971 = vld [vmem:[%s3 + $0x70] sm:$0xff]
    %v972 = vld [vmem:[%s3 + $0x78] sm:$0xff]
    %v973 = vld [vmem:[%s3 + $0x80] sm:$0xff]
    %v974 = vld [vmem:[%s3 + $0x88] sm:$0xff]
    %v975 = vld [vmem:[%s3 + $0x90] sm:$0xff]
    %v976 = vld [vmem:[%s3 + $0x98] sm:$0xff]
    %v977 = vld [vmem:[%s3 + $0xa0] sm:$0xff]
    %v978 = vld [vmem:[%s3 + $0xa8] sm:$0xff]
    %v979 = vld [vmem:[%s3 + $0xb0] sm:$0xff]
    %v980 = vld [vmem:[%s3 + $0xb8] sm:$0xff]
    %v981 = vld [vmem:[%s3 + $0xc0] sm:$0xff]
    %v982 = vld [vmem:[%s3 + $0xc8] sm:$0xff]
    %v983 = vld [vmem:[%s3 + $0xd0] sm:$0xff]
    %v984 = vld [vmem:[%s3 + $0xd8] sm:$0xff]
    %v985 = vld [vmem:[%s3 + $0xe0] sm:$0xff]
    %v986 = vld [vmem:[%s3 + $0xe8] sm:$0xff]
    %v987 = vld [vmem:[%s3 + $0xf0] sm:$0xff]
    %v988 = vld [vmem:[%s3 + $0xf8] sm:$0xff]
    %v1021 = vunpack.c.l.b16 %v957
    %v1022 = vunpack.c.h.b16 %v957
    %v1023 = vunpack.c.l.b16 %v958
    %v1024 = vunpack.c.h.b16 %v958
    %v1025 = vunpack.c.l.b16 %v959
    %v1026 = vunpack.c.h.b16 %v959
    %v1027 = vunpack.c.l.b16 %v960
    %v1028 = vunpack.c.h.b16 %v960
    %v1029 = vunpack.c.l.b16 %v961
    %v1030 = vunpack.c.h.b16 %v961
    %v1031 = vunpack.c.l.b16 %v962
    %v1032 = vunpack.c.h.b16 %v962
    %v1033 = vunpack.c.l.b16 %v963
    %v1034 = vunpack.c.h.b16 %v963
    %v1035 = vunpack.c.l.b16 %v964
    %v1036 = vunpack.c.h.b16 %v964
    %v1037 = vunpack.c.l.b16 %v965
    %v1038 = vunpack.c.h.b16 %v965
    %v1039 = vunpack.c.l.b16 %v966
    %v1040 = vunpack.c.h.b16 %v966
    %v1041 = vunpack.c.l.b16 %v967
    %v1042 = vunpack.c.h.b16 %v967
    %v1043 = vunpack.c.l.b16 %v968
    %v1044 = vunpack.c.h.b16 %v968
    %v1045 = vunpack.c.l.b16 %v969
    %v1046 = vunpack.c.h.b16 %v969
    %v1047 = vunpack.c.l.b16 %v970
    %v1048 = vunpack.c.h.b16 %v970
    %v1049 = vunpack.c.l.b16 %v971
    %v1050 = vunpack.c.h.b16 %v971
    %v1051 = vunpack.c.l.b16 %v972
    %v1052 = vunpack.c.h.b16 %v972
    %v1053 = vunpack.c.l.b16 %v973
    %v1054 = vunpack.c.h.b16 %v973
    %v1055 = vunpack.c.l.b16 %v974
    %v1056 = vunpack.c.h.b16 %v974
    %v1057 = vunpack.c.l.b16 %v975
    %v1058 = vunpack.c.h.b16 %v975
    %v1059 = vunpack.c.l.b16 %v976
    %v1060 = vunpack.c.h.b16 %v976
    %v1061 = vunpack.c.l.b16 %v977
    %v1062 = vunpack.c.h.b16 %v977
    %v1063 = vunpack.c.l.b16 %v978
    %v1064 = vunpack.c.h.b16 %v978
    %v1065 = vunpack.c.l.b16 %v979
    %v1066 = vunpack.c.h.b16 %v979
    %v1067 = vunpack.c.l.b16 %v980
    %v1068 = vunpack.c.h.b16 %v980
    %v1069 = vunpack.c.l.b16 %v981
    %v1070 = vunpack.c.h.b16 %v981
    %v1071 = vunpack.c.l.b16 %v982
    %v1072 = vunpack.c.h.b16 %v982
    %v1073 = vunpack.c.l.b16 %v983
    %v1074 = vunpack.c.h.b16 %v983
    %v1075 = vunpack.c.l.b16 %v984
    %v1076 = vunpack.c.h.b16 %v984
    %v1077 = vunpack.c.l.b16 %v985
    %v1078 = vunpack.c.h.b16 %v985
    %v1079 = vunpack.c.l.b16 %v986
    %v1080 = vunpack.c.h.b16 %v986
    %v1081 = vunpack.c.l.b16 %v987
    %v1082 = vunpack.c.h.b16 %v987
    %v1083 = vunpack.c.l.b16 %v988
    %v1084 = vunpack.c.h.b16 %v988
    %v1085 = vpack.c.b16 %v1025, %v1021
    %v1086 = vpack.c.b16 %v1026, %v1022
    %v1087 = vpack.c.b16 %v1027, %v1023
    %v1088 = vpack.c.b16 %v1028, %v1024
    %v1089 = vpack.c.b16 %v1033, %v1029
    %v1090 = vpack.c.b16 %v1034, %v1030
    %v1091 = vpack.c.b16 %v1035, %v1031
    %v1092 = vpack.c.b16 %v1036, %v1032
    %v1093 = vpack.c.b16 %v1041, %v1037
    %v1094 = vpack.c.b16 %v1042, %v1038
    %v1095 = vpack.c.b16 %v1043, %v1039
    %v1096 = vpack.c.b16 %v1044, %v1040
    %v1097 = vpack.c.b16 %v1049, %v1045
    %v1098 = vpack.c.b16 %v1050, %v1046
    %v1099 = vpack.c.b16 %v1051, %v1047
    %v1100 = vpack.c.b16 %v1052, %v1048
    %v1101 = vpack.c.b16 %v1057, %v1053
    %v1102 = vpack.c.b16 %v1058, %v1054
    %v1103 = vpack.c.b16 %v1059, %v1055
    %v1104 = vpack.c.b16 %v1060, %v1056
    %v1105 = vpack.c.b16 %v1065, %v1061
    %v1106 = vpack.c.b16 %v1066, %v1062
    %v1107 = vpack.c.b16 %v1067, %v1063
    %v1108 = vpack.c.b16 %v1068, %v1064
    %v1109 = vpack.c.b16 %v1073, %v1069
    %v1110 = vpack.c.b16 %v1074, %v1070
    %v1111 = vpack.c.b16 %v1075, %v1071
    %v1112 = vpack.c.b16 %v1076, %v1072
    %v1113 = vpack.c.b16 %v1081, %v1077
    %v1114 = vpack.c.b16 %v1082, %v1078
    %v1115 = vpack.c.b16 %v1083, %v1079
    %v1116 = vpack.c.b16 %v1084, %v1080
    %1149 = vmatprep.subr.bf16.mxu0 %v1114
    %1150 = vmatpush1.bf16.msra.mxu0 %v1113
    %1151 = vmatprep.subr.bf16.mxu0 %v1110
    %1152 = vmatpush1.bf16.msra.mxu0 %v1109
    %1153 = vmatprep.subr.bf16.mxu0 %v1106
    %1154 = vmatpush1.bf16.msra.mxu0 %v1105
    %1155 = vmatprep.subr.bf16.mxu0 %v1102
    %1156 = vmatpush1.bf16.msra.mxu0 %v1101
    %1157 = vmatprep.subr.bf16.mxu0 %v1098
    %1158 = vmatpush1.bf16.msra.mxu0 %v1097
    %1159 = vmatprep.subr.bf16.mxu0 %v1094
    %1160 = vmatpush1.bf16.msra.mxu0 %v1093
    %1161 = vmatprep.subr.bf16.mxu0 %v1090
    %1162 = vmatpush1.bf16.msra.mxu0 %v1089
    %1163 = vmatprep.subr.bf16.mxu0 %v1086
    %1164 = vmatpush1.bf16.msra.mxu0 %v1085
    %1165 = vmatprep.subr.bf16.mxu0 0
    %1166 = vmatpush2.bf16.msra.mxu0 0
    %1167 = vmatprep.subr.bf16.mxu0 0
    %1168 = vmatpush2.bf16.msra.mxu0 0
    %1169 = vmatprep.subr.bf16.mxu0 0
    %1170 = vmatpush2.bf16.msra.mxu0 0
    %1171 = vmatprep.subr.bf16.mxu0 0
    %1172 = vmatpush2.bf16.msra.mxu0 0
    %1173 = vmatprep.subr.bf16.mxu0 0
    %1174 = vmatpush2.bf16.msra.mxu0 0
    %1175 = vmatprep.subr.bf16.mxu0 0
    %1176 = vmatpush2.bf16.msra.mxu0 0
    %1177 = vmatprep.subr.bf16.mxu0 0
    %1178 = vmatpush2.bf16.msra.mxu0 0
    %1179 = vmatprep.subr.bf16.mxu0 0
    %1180 = vmatpush2.bf16.msra.mxu0 0
    %1181 = vmatprep.mubr.bf16.mxu0 0
    %1182 = vmatmul.mubr.bf16.gmra.mxu0 %v956
    %v1183 = vpop.f32.mrf.mxu0
    %v1184 = vadd.f32 0.0, %v1183
    %v1185 = vpop.f32.mrf.mxu0
    %v1186 = vadd.f32 0.0, %v1185
    %v1187 = vpop.f32.mrf.mxu0
    %v1188 = vpop.f32.mrf.mxu0
    %1189 = vdwg.mxu0
    %1190 = vmatprep.subr.bf16.mxu0 %v1116
    %1191 = vmatpush1.bf16.msra.mxu0 %v1115
    %1192 = vmatprep.subr.bf16.mxu0 %v1112
    %1193 = vmatpush1.bf16.msra.mxu0 %v1111
    %1194 = vmatprep.subr.bf16.mxu0 %v1108
    %1195 = vmatpush1.bf16.msra.mxu0 %v1107
    %1196 = vmatprep.subr.bf16.mxu0 %v1104
    %1197 = vmatpush1.bf16.msra.mxu0 %v1103
    %1198 = vmatprep.subr.bf16.mxu0 %v1100
    %1199 = vmatpush1.bf16.msra.mxu0 %v1099
    %1200 = vmatprep.subr.bf16.mxu0 %v1096
    %1201 = vmatpush1.bf16.msra.mxu0 %v1095
    %1202 = vmatprep.subr.bf16.mxu0 %v1092
    %1203 = vmatpush1.bf16.msra.mxu0 %v1091
    %1204 = vmatprep.subr.bf16.mxu0 %v1088
    %1205 = vmatpush1.bf16.msra.mxu0 %v1087
    %1206 = vmatprep.subr.bf16.mxu0 0
    %1207 = vmatpush2.bf16.msra.mxu0 0
    %1208 = vmatprep.subr.bf16.mxu0 0
    %1209 = vmatpush2.bf16.msra.mxu0 0
    %1210 = vmatprep.subr.bf16.mxu0 0
    %1211 = vmatpush2.bf16.msra.mxu0 0
    %1212 = vmatprep.subr.bf16.mxu0 0
    %1213 = vmatpush2.bf16.msra.mxu0 0
    %1214 = vmatprep.subr.bf16.mxu0 0
    %1215 = vmatpush2.bf16.msra.mxu0 0
    %1216 = vmatprep.subr.bf16.mxu0 0
    %1217 = vmatpush2.bf16.msra.mxu0 0
    %1218 = vmatprep.subr.bf16.mxu0 0
    %1219 = vmatpush2.bf16.msra.mxu0 0
    %1220 = vmatprep.subr.bf16.mxu0 0
    %1221 = vmatpush2.bf16.msra.mxu0 0
    %1222 = vmatprep.mubr.bf16.mxu0 0
    %1223 = vmatmul.mubr.bf16.gmra.mxu0 %v956
    %v1224 = vpop.f32.mrf.mxu0
    %v1225 = vadd.f32 0.0, %v1224
    %v1226 = vpop.f32.mrf.mxu0
    %v1227 = vadd.f32 0.0, %v1226
    %v1228 = vpop.f32.mrf.mxu0
    %v1229 = vpop.f32.mrf.mxu0
    %1230 = vdwg.mxu0
    %v1231 = vadd.f32 %v952, %v1184
    %v1232 = vadd.f32 %v953, %v1186
    %v1233 = vadd.f32 %v954, %v1225
    %v1234 = vadd.f32 %v955, %v1227
    %v1235 = vmul.f32 %v1231, 0.5
    %v1236 = vtanh.pop %v1235
    %v1237 = vmul.f32 %v1236, 0.5
    %v1238 = vadd.f32 %v1237, 0.5
    %v1239 = vmul.f32 %v1232, 0.5
    %v1240 = vtanh.pop %v1239
    %v1241 = vmul.f32 %v1240, 0.5
    %v1242 = vadd.f32 %v1241, 0.5
    %v1243 = vtanh.pop %v1233
    %v1244 = vmul.f32 %v1234, 0.5
    %v1245 = vtanh.pop %v1244
    %v1246 = vmul.f32 %v1245, 0.5
    %v1247 = vadd.f32 %v1246, 0.5
    %v1248 = vmul.f32 %v1242, %v944
    %v1249 = vmul.f32 %v1238, %v1243
    %v1250 = vadd.f32 %v1248, %v1249
    %v1251 = vtanh.pop %v1250
    %v1252 = vmul.f32 %v1247, %v1251
    %s1253 = scalar_lea.vmem [#allocation4], 24
    %1254 = vst [vmem:[%s1253] sm:$0xff] %v1252
    %s1255 = scalar_lea.vmem %s0, 64
    %v1256 = vld [vmem:[%s1255] sm:$0xff]
    %v1257 = vld [vmem:[%s1255 + $0x8] sm:$0xff]
    %v1258 = vunpack.c.l.bf16 %v1256
    %v1259 = vunpack.c.h.bf16 %v1256
    %v1260 = vunpack.c.l.bf16 %v1257
    %v1261 = vunpack.c.h.bf16 %v1257
    %v1262 = vpack.c.bf16 %v1252, %v1252
    %v1263 = vld [vmem:[%s3] sm:$0xff]
    %v1264 = vld [vmem:[%s3 + $0x8] sm:$0xff]
    %v1265 = vld [vmem:[%s3 + $0x10] sm:$0xff]
    %v1266 = vld [vmem:[%s3 + $0x18] sm:$0xff]
    %v1267 = vld [vmem:[%s3 + $0x20] sm:$0xff]
    %v1268 = vld [vmem:[%s3 + $0x28] sm:$0xff]
    %v1269 = vld [vmem:[%s3 + $0x30] sm:$0xff]
    %v1270 = vld [vmem:[%s3 + $0x38] sm:$0xff]
    %v1271 = vld [vmem:[%s3 + $0x40] sm:$0xff]
    %v1272 = vld [vmem:[%s3 + $0x48] sm:$0xff]
    %v1273 = vld [vmem:[%s3 + $0x50] sm:$0xff]
    %v1274 = vld [vmem:[%s3 + $0x58] sm:$0xff]
    %v1275 = vld [vmem:[%s3 + $0x60] sm:$0xff]
    %v1276 = vld [vmem:[%s3 + $0x68] sm:$0xff]
    %v1277 = vld [vmem:[%s3 + $0x70] sm:$0xff]
    %v1278 = vld [vmem:[%s3 + $0x78] sm:$0xff]
    %v1279 = vld [vmem:[%s3 + $0x80] sm:$0xff]
    %v1280 = vld [vmem:[%s3 + $0x88] sm:$0xff]
    %v1281 = vld [vmem:[%s3 + $0x90] sm:$0xff]
    %v1282 = vld [vmem:[%s3 + $0x98] sm:$0xff]
    %v1283 = vld [vmem:[%s3 + $0xa0] sm:$0xff]
    %v1284 = vld [vmem:[%s3 + $0xa8] sm:$0xff]
    %v1285 = vld [vmem:[%s3 + $0xb0] sm:$0xff]
    %v1286 = vld [vmem:[%s3 + $0xb8] sm:$0xff]
    %v1287 = vld [vmem:[%s3 + $0xc0] sm:$0xff]
    %v1288 = vld [vmem:[%s3 + $0xc8] sm:$0xff]
    %v1289 = vld [vmem:[%s3 + $0xd0] sm:$0xff]
    %v1290 = vld [vmem:[%s3 + $0xd8] sm:$0xff]
    %v1291 = vld [vmem:[%s3 + $0xe0] sm:$0xff]
    %v1292 = vld [vmem:[%s3 + $0xe8] sm:$0xff]
    %v1293 = vld [vmem:[%s3 + $0xf0] sm:$0xff]
    %v1294 = vld [vmem:[%s3 + $0xf8] sm:$0xff]
    %v1327 = vunpack.c.l.b16 %v1263
    %v1328 = vunpack.c.h.b16 %v1263
    %v1329 = vunpack.c.l.b16 %v1264
    %v1330 = vunpack.c.h.b16 %v1264
    %v1331 = vunpack.c.l.b16 %v1265
    %v1332 = vunpack.c.h.b16 %v1265
    %v1333 = vunpack.c.l.b16 %v1266
    %v1334 = vunpack.c.h.b16 %v1266
    %v1335 = vunpack.c.l.b16 %v1267
    %v1336 = vunpack.c.h.b16 %v1267
    %v1337 = vunpack.c.l.b16 %v1268
    %v1338 = vunpack.c.h.b16 %v1268
    %v1339 = vunpack.c.l.b16 %v1269
    %v1340 = vunpack.c.h.b16 %v1269
    %v1341 = vunpack.c.l.b16 %v1270
    %v1342 = vunpack.c.h.b16 %v1270
    %v1343 = vunpack.c.l.b16 %v1271
    %v1344 = vunpack.c.h.b16 %v1271
    %v1345 = vunpack.c.l.b16 %v1272
    %v1346 = vunpack.c.h.b16 %v1272
    %v1347 = vunpack.c.l.b16 %v1273
    %v1348 = vunpack.c.h.b16 %v1273
    %v1349 = vunpack.c.l.b16 %v1274
    %v1350 = vunpack.c.h.b16 %v1274
    %v1351 = vunpack.c.l.b16 %v1275
    %v1352 = vunpack.c.h.b16 %v1275
    %v1353 = vunpack.c.l.b16 %v1276
    %v1354 = vunpack.c.h.b16 %v1276
    %v1355 = vunpack.c.l.b16 %v1277
    %v1356 = vunpack.c.h.b16 %v1277
    %v1357 = vunpack.c.l.b16 %v1278
    %v1358 = vunpack.c.h.b16 %v1278
    %v1359 = vunpack.c.l.b16 %v1279
    %v1360 = vunpack.c.h.b16 %v1279
    %v1361 = vunpack.c.l.b16 %v1280
    %v1362 = vunpack.c.h.b16 %v1280
    %v1363 = vunpack.c.l.b16 %v1281
    %v1364 = vunpack.c.h.b16 %v1281
    %v1365 = vunpack.c.l.b16 %v1282
    %v1366 = vunpack.c.h.b16 %v1282
    %v1367 = vunpack.c.l.b16 %v1283
    %v1368 = vunpack.c.h.b16 %v1283
    %v1369 = vunpack.c.l.b16 %v1284
    %v1370 = vunpack.c.h.b16 %v1284
    %v1371 = vunpack.c.l.b16 %v1285
    %v1372 = vunpack.c.h.b16 %v1285
    %v1373 = vunpack.c.l.b16 %v1286
    %v1374 = vunpack.c.h.b16 %v1286
    %v1375 = vunpack.c.l.b16 %v1287
    %v1376 = vunpack.c.h.b16 %v1287
    %v1377 = vunpack.c.l.b16 %v1288
    %v1378 = vunpack.c.h.b16 %v1288
    %v1379 = vunpack.c.l.b16 %v1289
    %v1380 = vunpack.c.h.b16 %v1289
    %v1381 = vunpack.c.l.b16 %v1290
    %v1382 = vunpack.c.h.b16 %v1290
    %v1383 = vunpack.c.l.b16 %v1291
    %v1384 = vunpack.c.h.b16 %v1291
    %v1385 = vunpack.c.l.b16 %v1292
    %v1386 = vunpack.c.h.b16 %v1292
    %v1387 = vunpack.c.l.b16 %v1293
    %v1388 = vunpack.c.h.b16 %v1293
    %v1389 = vunpack.c.l.b16 %v1294
    %v1390 = vunpack.c.h.b16 %v1294
    %v1391 = vpack.c.b16 %v1331, %v1327
    %v1392 = vpack.c.b16 %v1332, %v1328
    %v1393 = vpack.c.b16 %v1333, %v1329
    %v1394 = vpack.c.b16 %v1334, %v1330
    %v1395 = vpack.c.b16 %v1339, %v1335
    %v1396 = vpack.c.b16 %v1340, %v1336
    %v1397 = vpack.c.b16 %v1341, %v1337
    %v1398 = vpack.c.b16 %v1342, %v1338
    %v1399 = vpack.c.b16 %v1347, %v1343
    %v1400 = vpack.c.b16 %v1348, %v1344
    %v1401 = vpack.c.b16 %v1349, %v1345
    %v1402 = vpack.c.b16 %v1350, %v1346
    %v1403 = vpack.c.b16 %v1355, %v1351
    %v1404 = vpack.c.b16 %v1356, %v1352
    %v1405 = vpack.c.b16 %v1357, %v1353
    %v1406 = vpack.c.b16 %v1358, %v1354
    %v1407 = vpack.c.b16 %v1363, %v1359
    %v1408 = vpack.c.b16 %v1364, %v1360
    %v1409 = vpack.c.b16 %v1365, %v1361
    %v1410 = vpack.c.b16 %v1366, %v1362
    %v1411 = vpack.c.b16 %v1371, %v1367
    %v1412 = vpack.c.b16 %v1372, %v1368
    %v1413 = vpack.c.b16 %v1373, %v1369
    %v1414 = vpack.c.b16 %v1374, %v1370
    %v1415 = vpack.c.b16 %v1379, %v1375
    %v1416 = vpack.c.b16 %v1380, %v1376
    %v1417 = vpack.c.b16 %v1381, %v1377
    %v1418 = vpack.c.b16 %v1382, %v1378
    %v1419 = vpack.c.b16 %v1387, %v1383
    %v1420 = vpack.c.b16 %v1388, %v1384
    %v1421 = vpack.c.b16 %v1389, %v1385
    %v1422 = vpack.c.b16 %v1390, %v1386
    %1455 = vmatprep.subr.bf16.mxu0 %v1420
    %1456 = vmatpush1.bf16.msra.mxu0 %v1419
    %1457 = vmatprep.subr.bf16.mxu0 %v1416
    %1458 = vmatpush1.bf16.msra.mxu0 %v1415
    %1459 = vmatprep.subr.bf16.mxu0 %v1412
    %1460 = vmatpush1.bf16.msra.mxu0 %v1411
    %1461 = vmatprep.subr.bf16.mxu0 %v1408
    %1462 = vmatpush1.bf16.msra.mxu0 %v1407
    %1463 = vmatprep.subr.bf16.mxu0 %v1404
    %1464 = vmatpush1.bf16.msra.mxu0 %v1403
    %1465 = vmatprep.subr.bf16.mxu0 %v1400
    %1466 = vmatpush1.bf16.msra.mxu0 %v1399
    %1467 = vmatprep.subr.bf16.mxu0 %v1396
    %1468 = vmatpush1.bf16.msra.mxu0 %v1395
    %1469 = vmatprep.subr.bf16.mxu0 %v1392
    %1470 = vmatpush1.bf16.msra.mxu0 %v1391
    %1471 = vmatprep.subr.bf16.mxu0 0
    %1472 = vmatpush2.bf16.msra.mxu0 0
    %1473 = vmatprep.subr.bf16.mxu0 0
    %1474 = vmatpush2.bf16.msra.mxu0 0
    %1475 = vmatprep.subr.bf16.mxu0 0
    %1476 = vmatpush2.bf16.msra.mxu0 0
    %1477 = vmatprep.subr.bf16.mxu0 0
    %1478 = vmatpush2.bf16.msra.mxu0 0
    %1479 = vmatprep.subr.bf16.mxu0 0
    %1480 = vmatpush2.bf16.msra.mxu0 0
    %1481 = vmatprep.subr.bf16.mxu0 0
    %1482 = vmatpush2.bf16.msra.mxu0 0
    %1483 = vmatprep.subr.bf16.mxu0 0
    %1484 = vmatpush2.bf16.msra.mxu0 0
    %1485 = vmatprep.subr.bf16.mxu0 0
    %1486 = vmatpush2.bf16.msra.mxu0 0
    %1487 = vmatprep.mubr.bf16.mxu0 0
    %1488 = vmatmul.mubr.bf16.gmra.mxu0 %v1262
    %v1489 = vpop.f32.mrf.mxu0
    %v1490 = vadd.f32 0.0, %v1489
    %v1491 = vpop.f32.mrf.mxu0
    %v1492 = vadd.f32 0.0, %v1491
    %v1493 = vpop.f32.mrf.mxu0
    %v1494 = vpop.f32.mrf.mxu0
    %1495 = vdwg.mxu0
    %1496 = vmatprep.subr.bf16.mxu0 %v1422
    %1497 = vmatpush1.bf16.msra.mxu0 %v1421
    %1498 = vmatprep.subr.bf16.mxu0 %v1418
    %1499 = vmatpush1.bf16.msra.mxu0 %v1417
    %1500 = vmatprep.subr.bf16.mxu0 %v1414
    %1501 = vmatpush1.bf16.msra.mxu0 %v1413
    %1502 = vmatprep.subr.bf16.mxu0 %v1410
    %1503 = vmatpush1.bf16.msra.mxu0 %v1409
    %1504 = vmatprep.subr.bf16.mxu0 %v1406
    %1505 = vmatpush1.bf16.msra.mxu0 %v1405
    %1506 = vmatprep.subr.bf16.mxu0 %v1402
    %1507 = vmatpush1.bf16.msra.mxu0 %v1401
    %1508 = vmatprep.subr.bf16.mxu0 %v1398
    %1509 = vmatpush1.bf16.msra.mxu0 %v1397
    %1510 = vmatprep.subr.bf16.mxu0 %v1394
    %1511 = vmatpush1.bf16.msra.mxu0 %v1393
    %1512 = vmatprep.subr.bf16.mxu0 0
    %1513 = vmatpush2.bf16.msra.mxu0 0
    %1514 = vmatprep.subr.bf16.mxu0 0
    %1515 = vmatpush2.bf16.msra.mxu0 0
    %1516 = vmatprep.subr.bf16.mxu0 0
    %1517 = vmatpush2.bf16.msra.mxu0 0
    %1518 = vmatprep.subr.bf16.mxu0 0
    %1519 = vmatpush2.bf16.msra.mxu0 0
    %1520 = vmatprep.subr.bf16.mxu0 0
    %1521 = vmatpush2.bf16.msra.mxu0 0
    %1522 = vmatprep.subr.bf16.mxu0 0
    %1523 = vmatpush2.bf16.msra.mxu0 0
    %1524 = vmatprep.subr.bf16.mxu0 0
    %1525 = vmatpush2.bf16.msra.mxu0 0
    %1526 = vmatprep.subr.bf16.mxu0 0
    %1527 = vmatpush2.bf16.msra.mxu0 0
    %1528 = vmatprep.mubr.bf16.mxu0 0
    %1529 = vmatmul.mubr.bf16.gmra.mxu0 %v1262
    %v1530 = vpop.f32.mrf.mxu0
    %v1531 = vadd.f32 0.0, %v1530
    %v1532 = vpop.f32.mrf.mxu0
    %v1533 = vadd.f32 0.0, %v1532
    %v1534 = vpop.f32.mrf.mxu0
    %v1535 = vpop.f32.mrf.mxu0
    %1536 = vdwg.mxu0
    %v1537 = vadd.f32 %v1258, %v1490
    %v1538 = vadd.f32 %v1259, %v1492
    %v1539 = vadd.f32 %v1260, %v1531
    %v1540 = vadd.f32 %v1261, %v1533
    %v1541 = vmul.f32 %v1537, 0.5
    %v1542 = vtanh.pop %v1541
    %v1543 = vmul.f32 %v1542, 0.5
    %v1544 = vadd.f32 %v1543, 0.5
    %v1545 = vmul.f32 %v1538, 0.5
    %v1546 = vtanh.pop %v1545
    %v1547 = vmul.f32 %v1546, 0.5
    %v1548 = vadd.f32 %v1547, 0.5
    %v1549 = vtanh.pop %v1539
    %v1550 = vmul.f32 %v1540, 0.5
    %v1551 = vtanh.pop %v1550
    %v1552 = vmul.f32 %v1551, 0.5
    %v1553 = vadd.f32 %v1552, 0.5
    %v1554 = vmul.f32 %v1548, %v1250
    %v1555 = vmul.f32 %v1544, %v1549
    %v1556 = vadd.f32 %v1554, %v1555
    %v1557 = vtanh.pop %v1556
    %v1558 = vmul.f32 %v1553, %v1557
    %s1559 = scalar_lea.vmem [#allocation4], 32
    %1560 = vst [vmem:[%s1559] sm:$0xff] %v1558
    %s1561 = scalar_lea.vmem %s0, 80
    %v1562 = vld [vmem:[%s1561] sm:$0xff]
    %v1563 = vld [vmem:[%s1561 + $0x8] sm:$0xff]
    %v1564 = vunpack.c.l.bf16 %v1562
    %v1565 = vunpack.c.h.bf16 %v1562
    %v1566 = vunpack.c.l.bf16 %v1563
    %v1567 = vunpack.c.h.bf16 %v1563
    %v1568 = vpack.c.bf16 %v1558, %v1558
    %v1569 = vld [vmem:[%s3] sm:$0xff]
    %v1570 = vld [vmem:[%s3 + $0x8] sm:$0xff]
    %v1571 = vld [vmem:[%s3 + $0x10] sm:$0xff]
    %v1572 = vld [vmem:[%s3 + $0x18] sm:$0xff]
    %v1573 = vld [vmem:[%s3 + $0x20] sm:$0xff]
    %v1574 = vld [vmem:[%s3 + $0x28] sm:$0xff]
    %v1575 = vld [vmem:[%s3 + $0x30] sm:$0xff]
    %v1576 = vld [vmem:[%s3 + $0x38] sm:$0xff]
    %v1577 = vld [vmem:[%s3 + $0x40] sm:$0xff]
    %v1578 = vld [vmem:[%s3 + $0x48] sm:$0xff]
    %v1579 = vld [vmem:[%s3 + $0x50] sm:$0xff]
    %v1580 = vld [vmem:[%s3 + $0x58] sm:$0xff]
    %v1581 = vld [vmem:[%s3 + $0x60] sm:$0xff]
    %v1582 = vld [vmem:[%s3 + $0x68] sm:$0xff]
    %v1583 = vld [vmem:[%s3 + $0x70] sm:$0xff]
    %v1584 = vld [vmem:[%s3 + $0x78] sm:$0xff]
    %v1585 = vld [vmem:[%s3 + $0x80] sm:$0xff]
    %v1586 = vld [vmem:[%s3 + $0x88] sm:$0xff]
    %v1587 = vld [vmem:[%s3 + $0x90] sm:$0xff]
    %v1588 = vld [vmem:[%s3 + $0x98] sm:$0xff]
    %v1589 = vld [vmem:[%s3 + $0xa0] sm:$0xff]
    %v1590 = vld [vmem:[%s3 + $0xa8] sm:$0xff]
    %v1591 = vld [vmem:[%s3 + $0xb0] sm:$0xff]
    %v1592 = vld [vmem:[%s3 + $0xb8] sm:$0xff]
    %v1593 = vld [vmem:[%s3 + $0xc0] sm:$0xff]
    %v1594 = vld [vmem:[%s3 + $0xc8] sm:$0xff]
    %v1595 = vld [vmem:[%s3 + $0xd0] sm:$0xff]
    %v1596 = vld [vmem:[%s3 + $0xd8] sm:$0xff]
    %v1597 = vld [vmem:[%s3 + $0xe0] sm:$0xff]
    %v1598 = vld [vmem:[%s3 + $0xe8] sm:$0xff]
    %v1599 = vld [vmem:[%s3 + $0xf0] sm:$0xff]
    %v1600 = vld [vmem:[%s3 + $0xf8] sm:$0xff]
    %v1633 = vunpack.c.l.b16 %v1569
    %v1634 = vunpack.c.h.b16 %v1569
    %v1635 = vunpack.c.l.b16 %v1570
    %v1636 = vunpack.c.h.b16 %v1570
    %v1637 = vunpack.c.l.b16 %v1571
    %v1638 = vunpack.c.h.b16 %v1571
    %v1639 = vunpack.c.l.b16 %v1572
    %v1640 = vunpack.c.h.b16 %v1572
    %v1641 = vunpack.c.l.b16 %v1573
    %v1642 = vunpack.c.h.b16 %v1573
    %v1643 = vunpack.c.l.b16 %v1574
    %v1644 = vunpack.c.h.b16 %v1574
    %v1645 = vunpack.c.l.b16 %v1575
    %v1646 = vunpack.c.h.b16 %v1575
    %v1647 = vunpack.c.l.b16 %v1576
    %v1648 = vunpack.c.h.b16 %v1576
    %v1649 = vunpack.c.l.b16 %v1577
    %v1650 = vunpack.c.h.b16 %v1577
    %v1651 = vunpack.c.l.b16 %v1578
    %v1652 = vunpack.c.h.b16 %v1578
    %v1653 = vunpack.c.l.b16 %v1579
    %v1654 = vunpack.c.h.b16 %v1579
    %v1655 = vunpack.c.l.b16 %v1580
    %v1656 = vunpack.c.h.b16 %v1580
    %v1657 = vunpack.c.l.b16 %v1581
    %v1658 = vunpack.c.h.b16 %v1581
    %v1659 = vunpack.c.l.b16 %v1582
    %v1660 = vunpack.c.h.b16 %v1582
    %v1661 = vunpack.c.l.b16 %v1583
    %v1662 = vunpack.c.h.b16 %v1583
    %v1663 = vunpack.c.l.b16 %v1584
    %v1664 = vunpack.c.h.b16 %v1584
    %v1665 = vunpack.c.l.b16 %v1585
    %v1666 = vunpack.c.h.b16 %v1585
    %v1667 = vunpack.c.l.b16 %v1586
    %v1668 = vunpack.c.h.b16 %v1586
    %v1669 = vunpack.c.l.b16 %v1587
    %v1670 = vunpack.c.h.b16 %v1587
    %v1671 = vunpack.c.l.b16 %v1588
    %v1672 = vunpack.c.h.b16 %v1588
    %v1673 = vunpack.c.l.b16 %v1589
    %v1674 = vunpack.c.h.b16 %v1589
    %v1675 = vunpack.c.l.b16 %v1590
    %v1676 = vunpack.c.h.b16 %v1590
    %v1677 = vunpack.c.l.b16 %v1591
    %v1678 = vunpack.c.h.b16 %v1591
    %v1679 = vunpack.c.l.b16 %v1592
    %v1680 = vunpack.c.h.b16 %v1592
    %v1681 = vunpack.c.l.b16 %v1593
    %v1682 = vunpack.c.h.b16 %v1593
    %v1683 = vunpack.c.l.b16 %v1594
    %v1684 = vunpack.c.h.b16 %v1594
    %v1685 = vunpack.c.l.b16 %v1595
    %v1686 = vunpack.c.h.b16 %v1595
    %v1687 = vunpack.c.l.b16 %v1596
    %v1688 = vunpack.c.h.b16 %v1596
    %v1689 = vunpack.c.l.b16 %v1597
    %v1690 = vunpack.c.h.b16 %v1597
    %v1691 = vunpack.c.l.b16 %v1598
    %v1692 = vunpack.c.h.b16 %v1598
    %v1693 = vunpack.c.l.b16 %v1599
    %v1694 = vunpack.c.h.b16 %v1599
    %v1695 = vunpack.c.l.b16 %v1600
    %v1696 = vunpack.c.h.b16 %v1600
    %v1697 = vpack.c.b16 %v1637, %v1633
    %v1698 = vpack.c.b16 %v1638, %v1634
    %v1699 = vpack.c.b16 %v1639, %v1635
    %v1700 = vpack.c.b16 %v1640, %v1636
    %v1701 = vpack.c.b16 %v1645, %v1641
    %v1702 = vpack.c.b16 %v1646, %v1642
    %v1703 = vpack.c.b16 %v1647, %v1643
    %v1704 = vpack.c.b16 %v1648, %v1644
    %v1705 = vpack.c.b16 %v1653, %v1649
    %v1706 = vpack.c.b16 %v1654, %v1650
    %v1707 = vpack.c.b16 %v1655, %v1651
    %v1708 = vpack.c.b16 %v1656, %v1652
    %v1709 = vpack.c.b16 %v1661, %v1657
    %v1710 = vpack.c.b16 %v1662, %v1658
    %v1711 = vpack.c.b16 %v1663, %v1659
    %v1712 = vpack.c.b16 %v1664, %v1660
    %v1713 = vpack.c.b16 %v1669, %v1665
    %v1714 = vpack.c.b16 %v1670, %v1666
    %v1715 = vpack.c.b16 %v1671, %v1667
    %v1716 = vpack.c.b16 %v1672, %v1668
    %v1717 = vpack.c.b16 %v1677, %v1673
    %v1718 = vpack.c.b16 %v1678, %v1674
    %v1719 = vpack.c.b16 %v1679, %v1675
    %v1720 = vpack.c.b16 %v1680, %v1676
    %v1721 = vpack.c.b16 %v1685, %v1681
    %v1722 = vpack.c.b16 %v1686, %v1682
    %v1723 = vpack.c.b16 %v1687, %v1683
    %v1724 = vpack.c.b16 %v1688, %v1684
    %v1725 = vpack.c.b16 %v1693, %v1689
    %v1726 = vpack.c.b16 %v1694, %v1690
    %v1727 = vpack.c.b16 %v1695, %v1691
    %v1728 = vpack.c.b16 %v1696, %v1692
    %1761 = vmatprep.subr.bf16.mxu0 %v1726
    %1762 = vmatpush1.bf16.msra.mxu0 %v1725
    %1763 = vmatprep.subr.bf16.mxu0 %v1722
    %1764 = vmatpush1.bf16.msra.mxu0 %v1721
    %1765 = vmatprep.subr.bf16.mxu0 %v1718
    %1766 = vmatpush1.bf16.msra.mxu0 %v1717
    %1767 = vmatprep.subr.bf16.mxu0 %v1714
    %1768 = vmatpush1.bf16.msra.mxu0 %v1713
    %1769 = vmatprep.subr.bf16.mxu0 %v1710
    %1770 = vmatpush1.bf16.msra.mxu0 %v1709
    %1771 = vmatprep.subr.bf16.mxu0 %v1706
    %1772 = vmatpush1.bf16.msra.mxu0 %v1705
    %1773 = vmatprep.subr.bf16.mxu0 %v1702
    %1774 = vmatpush1.bf16.msra.mxu0 %v1701
    %1775 = vmatprep.subr.bf16.mxu0 %v1698
    %1776 = vmatpush1.bf16.msra.mxu0 %v1697
    %1777 = vmatprep.subr.bf16.mxu0 0
    %1778 = vmatpush2.bf16.msra.mxu0 0
    %1779 = vmatprep.subr.bf16.mxu0 0
    %1780 = vmatpush2.bf16.msra.mxu0 0
    %1781 = vmatprep.subr.bf16.mxu0 0
    %1782 = vmatpush2.bf16.msra.mxu0 0
    %1783 = vmatprep.subr.bf16.mxu0 0
    %1784 = vmatpush2.bf16.msra.mxu0 0
    %1785 = vmatprep.subr.bf16.mxu0 0
    %1786 = vmatpush2.bf16.msra.mxu0 0
    %1787 = vmatprep.subr.bf16.mxu0 0
    %1788 = vmatpush2.bf16.msra.mxu0 0
    %1789 = vmatprep.subr.bf16.mxu0 0
    %1790 = vmatpush2.bf16.msra.mxu0 0
    %1791 = vmatprep.subr.bf16.mxu0 0
    %1792 = vmatpush2.bf16.msra.mxu0 0
    %1793 = vmatprep.mubr.bf16.mxu0 0
    %1794 = vmatmul.mubr.bf16.gmra.mxu0 %v1568
    %v1795 = vpop.f32.mrf.mxu0
    %v1796 = vadd.f32 0.0, %v1795
    %v1797 = vpop.f32.mrf.mxu0
    %v1798 = vadd.f32 0.0, %v1797
    %v1799 = vpop.f32.mrf.mxu0
    %v1800 = vpop.f32.mrf.mxu0
    %1801 = vdwg.mxu0
    %1802 = vmatprep.subr.bf16.mxu0 %v1728
    %1803 = vmatpush1.bf16.msra.mxu0 %v1727
    %1804 = vmatprep.subr.bf16.mxu0 %v1724
    %1805 = vmatpush1.bf16.msra.mxu0 %v1723
    %1806 = vmatprep.subr.bf16.mxu0 %v1720
    %1807 = vmatpush1.bf16.msra.mxu0 %v1719
    %1808 = vmatprep.subr.bf16.mxu0 %v1716
    %1809 = vmatpush1.bf16.msra.mxu0 %v1715
    %1810 = vmatprep.subr.bf16.mxu0 %v1712
    %1811 = vmatpush1.bf16.msra.mxu0 %v1711
    %1812 = vmatprep.subr.bf16.mxu0 %v1708
    %1813 = vmatpush1.bf16.msra.mxu0 %v1707
    %1814 = vmatprep.subr.bf16.mxu0 %v1704
    %1815 = vmatpush1.bf16.msra.mxu0 %v1703
    %1816 = vmatprep.subr.bf16.mxu0 %v1700
    %1817 = vmatpush1.bf16.msra.mxu0 %v1699
    %1818 = vmatprep.subr.bf16.mxu0 0
    %1819 = vmatpush2.bf16.msra.mxu0 0
    %1820 = vmatprep.subr.bf16.mxu0 0
    %1821 = vmatpush2.bf16.msra.mxu0 0
    %1822 = vmatprep.subr.bf16.mxu0 0
    %1823 = vmatpush2.bf16.msra.mxu0 0
    %1824 = vmatprep.subr.bf16.mxu0 0
    %1825 = vmatpush2.bf16.msra.mxu0 0
    %1826 = vmatprep.subr.bf16.mxu0 0
    %1827 = vmatpush2.bf16.msra.mxu0 0
    %1828 = vmatprep.subr.bf16.mxu0 0
    %1829 = vmatpush2.bf16.msra.mxu0 0
    %1830 = vmatprep.subr.bf16.mxu0 0
    %1831 = vmatpush2.bf16.msra.mxu0 0
    %1832 = vmatprep.subr.bf16.mxu0 0
    %1833 = vmatpush2.bf16.msra.mxu0 0
    %1834 = vmatprep.mubr.bf16.mxu0 0
    %1835 = vmatmul.mubr.bf16.gmra.mxu0 %v1568
    %v1836 = vpop.f32.mrf.mxu0
    %v1837 = vadd.f32 0.0, %v1836
    %v1838 = vpop.f32.mrf.mxu0
    %v1839 = vadd.f32 0.0, %v1838
    %v1840 = vpop.f32.mrf.mxu0
    %v1841 = vpop.f32.mrf.mxu0
    %1842 = vdwg.mxu0
    %v1843 = vadd.f32 %v1564, %v1796
    %v1844 = vadd.f32 %v1565, %v1798
    %v1845 = vadd.f32 %v1566, %v1837
    %v1846 = vadd.f32 %v1567, %v1839
    %v1847 = vmul.f32 %v1843, 0.5
    %v1848 = vtanh.pop %v1847
    %v1849 = vmul.f32 %v1848, 0.5
    %v1850 = vadd.f32 %v1849, 0.5
    %v1851 = vmul.f32 %v1844, 0.5
    %v1852 = vtanh.pop %v1851
    %v1853 = vmul.f32 %v1852, 0.5
    %v1854 = vadd.f32 %v1853, 0.5
    %v1855 = vtanh.pop %v1845
    %v1856 = vmul.f32 %v1846, 0.5
    %v1857 = vtanh.pop %v1856
    %v1858 = vmul.f32 %v1857, 0.5
    %v1859 = vadd.f32 %v1858, 0.5
    %v1860 = vmul.f32 %v1854, %v1556
    %v1861 = vmul.f32 %v1850, %v1855
    %v1862 = vadd.f32 %v1860, %v1861
    %v1863 = vtanh.pop %v1862
    %v1864 = vmul.f32 %v1859, %v1863
    %s1865 = scalar_lea.vmem [#allocation4], 40
    %1866 = vst [vmem:[%s1865] sm:$0xff] %v1864
    %s1867 = scalar_lea.vmem %s0, 96
    %v1868 = vld [vmem:[%s1867] sm:$0xff]
    %v1869 = vld [vmem:[%s1867 + $0x8] sm:$0xff]
    %v1870 = vunpack.c.l.bf16 %v1868
    %v1871 = vunpack.c.h.bf16 %v1868
    %v1872 = vunpack.c.l.bf16 %v1869
    %v1873 = vunpack.c.h.bf16 %v1869
    %v1874 = vpack.c.bf16 %v1864, %v1864
    %v1875 = vld [vmem:[%s3] sm:$0xff]
    %v1876 = vld [vmem:[%s3 + $0x8] sm:$0xff]
    %v1877 = vld [vmem:[%s3 + $0x10] sm:$0xff]
    %v1878 = vld [vmem:[%s3 + $0x18] sm:$0xff]
    %v1879 = vld [vmem:[%s3 + $0x20] sm:$0xff]
    %v1880 = vld [vmem:[%s3 + $0x28] sm:$0xff]
    %v1881 = vld [vmem:[%s3 + $0x30] sm:$0xff]
    %v1882 = vld [vmem:[%s3 + $0x38] sm:$0xff]
    %v1883 = vld [vmem:[%s3 + $0x40] sm:$0xff]
    %v1884 = vld [vmem:[%s3 + $0x48] sm:$0xff]
    %v1885 = vld [vmem:[%s3 + $0x50] sm:$0xff]
    %v1886 = vld [vmem:[%s3 + $0x58] sm:$0xff]
    %v1887 = vld [vmem:[%s3 + $0x60] sm:$0xff]
    %v1888 = vld [vmem:[%s3 + $0x68] sm:$0xff]
    %v1889 = vld [vmem:[%s3 + $0x70] sm:$0xff]
    %v1890 = vld [vmem:[%s3 + $0x78] sm:$0xff]
    %v1891 = vld [vmem:[%s3 + $0x80] sm:$0xff]
    %v1892 = vld [vmem:[%s3 + $0x88] sm:$0xff]
    %v1893 = vld [vmem:[%s3 + $0x90] sm:$0xff]
    %v1894 = vld [vmem:[%s3 + $0x98] sm:$0xff]
    %v1895 = vld [vmem:[%s3 + $0xa0] sm:$0xff]
    %v1896 = vld [vmem:[%s3 + $0xa8] sm:$0xff]
    %v1897 = vld [vmem:[%s3 + $0xb0] sm:$0xff]
    %v1898 = vld [vmem:[%s3 + $0xb8] sm:$0xff]
    %v1899 = vld [vmem:[%s3 + $0xc0] sm:$0xff]
    %v1900 = vld [vmem:[%s3 + $0xc8] sm:$0xff]
    %v1901 = vld [vmem:[%s3 + $0xd0] sm:$0xff]
    %v1902 = vld [vmem:[%s3 + $0xd8] sm:$0xff]
    %v1903 = vld [vmem:[%s3 + $0xe0] sm:$0xff]
    %v1904 = vld [vmem:[%s3 + $0xe8] sm:$0xff]
    %v1905 = vld [vmem:[%s3 + $0xf0] sm:$0xff]
    %v1906 = vld [vmem:[%s3 + $0xf8] sm:$0xff]
    %v1939 = vunpack.c.l.b16 %v1875
    %v1940 = vunpack.c.h.b16 %v1875
    %v1941 = vunpack.c.l.b16 %v1876
    %v1942 = vunpack.c.h.b16 %v1876
    %v1943 = vunpack.c.l.b16 %v1877
    %v1944 = vunpack.c.h.b16 %v1877
    %v1945 = vunpack.c.l.b16 %v1878
    %v1946 = vunpack.c.h.b16 %v1878
    %v1947 = vunpack.c.l.b16 %v1879
    %v1948 = vunpack.c.h.b16 %v1879
    %v1949 = vunpack.c.l.b16 %v1880
    %v1950 = vunpack.c.h.b16 %v1880
    %v1951 = vunpack.c.l.b16 %v1881
    %v1952 = vunpack.c.h.b16 %v1881
    %v1953 = vunpack.c.l.b16 %v1882
    %v1954 = vunpack.c.h.b16 %v1882
    %v1955 = vunpack.c.l.b16 %v1883
    %v1956 = vunpack.c.h.b16 %v1883
    %v1957 = vunpack.c.l.b16 %v1884
    %v1958 = vunpack.c.h.b16 %v1884
    %v1959 = vunpack.c.l.b16 %v1885
    %v1960 = vunpack.c.h.b16 %v1885
    %v1961 = vunpack.c.l.b16 %v1886
    %v1962 = vunpack.c.h.b16 %v1886
    %v1963 = vunpack.c.l.b16 %v1887
    %v1964 = vunpack.c.h.b16 %v1887
    %v1965 = vunpack.c.l.b16 %v1888
    %v1966 = vunpack.c.h.b16 %v1888
    %v1967 = vunpack.c.l.b16 %v1889
    %v1968 = vunpack.c.h.b16 %v1889
    %v1969 = vunpack.c.l.b16 %v1890
    %v1970 = vunpack.c.h.b16 %v1890
    %v1971 = vunpack.c.l.b16 %v1891
    %v1972 = vunpack.c.h.b16 %v1891
    %v1973 = vunpack.c.l.b16 %v1892
    %v1974 = vunpack.c.h.b16 %v1892
    %v1975 = vunpack.c.l.b16 %v1893
    %v1976 = vunpack.c.h.b16 %v1893
    %v1977 = vunpack.c.l.b16 %v1894
    %v1978 = vunpack.c.h.b16 %v1894
    %v1979 = vunpack.c.l.b16 %v1895
    %v1980 = vunpack.c.h.b16 %v1895
    %v1981 = vunpack.c.l.b16 %v1896
    %v1982 = vunpack.c.h.b16 %v1896
    %v1983 = vunpack.c.l.b16 %v1897
    %v1984 = vunpack.c.h.b16 %v1897
    %v1985 = vunpack.c.l.b16 %v1898
    %v1986 = vunpack.c.h.b16 %v1898
    %v1987 = vunpack.c.l.b16 %v1899
    %v1988 = vunpack.c.h.b16 %v1899
    %v1989 = vunpack.c.l.b16 %v1900
    %v1990 = vunpack.c.h.b16 %v1900
    %v1991 = vunpack.c.l.b16 %v1901
    %v1992 = vunpack.c.h.b16 %v1901
    %v1993 = vunpack.c.l.b16 %v1902
    %v1994 = vunpack.c.h.b16 %v1902
    %v1995 = vunpack.c.l.b16 %v1903
    %v1996 = vunpack.c.h.b16 %v1903
    %v1997 = vunpack.c.l.b16 %v1904
    %v1998 = vunpack.c.h.b16 %v1904
    %v1999 = vunpack.c.l.b16 %v1905
    %v2000 = vunpack.c.h.b16 %v1905
    %v2001 = vunpack.c.l.b16 %v1906
    %v2002 = vunpack.c.h.b16 %v1906
    %v2003 = vpack.c.b16 %v1943, %v1939
    %v2004 = vpack.c.b16 %v1944, %v1940
    %v2005 = vpack.c.b16 %v1945, %v1941
    %v2006 = vpack.c.b16 %v1946, %v1942
    %v2007 = vpack.c.b16 %v1951, %v1947
    %v2008 = vpack.c.b16 %v1952, %v1948
    %v2009 = vpack.c.b16 %v1953, %v1949
    %v2010 = vpack.c.b16 %v1954, %v1950
    %v2011 = vpack.c.b16 %v1959, %v1955
    %v2012 = vpack.c.b16 %v1960, %v1956
    %v2013 = vpack.c.b16 %v1961, %v1957
    %v2014 = vpack.c.b16 %v1962, %v1958
    %v2015 = vpack.c.b16 %v1967, %v1963
    %v2016 = vpack.c.b16 %v1968, %v1964
    %v2017 = vpack.c.b16 %v1969, %v1965
    %v2018 = vpack.c.b16 %v1970, %v1966
    %v2019 = vpack.c.b16 %v1975, %v1971
    %v2020 = vpack.c.b16 %v1976, %v1972
    %v2021 = vpack.c.b16 %v1977, %v1973
    %v2022 = vpack.c.b16 %v1978, %v1974
    %v2023 = vpack.c.b16 %v1983, %v1979
    %v2024 = vpack.c.b16 %v1984, %v1980
    %v2025 = vpack.c.b16 %v1985, %v1981
    %v2026 = vpack.c.b16 %v1986, %v1982
    %v2027 = vpack.c.b16 %v1991, %v1987
    %v2028 = vpack.c.b16 %v1992, %v1988
    %v2029 = vpack.c.b16 %v1993, %v1989
    %v2030 = vpack.c.b16 %v1994, %v1990
    %v2031 = vpack.c.b16 %v1999, %v1995
    %v2032 = vpack.c.b16 %v2000, %v1996
    %v2033 = vpack.c.b16 %v2001, %v1997
    %v2034 = vpack.c.b16 %v2002, %v1998
    %2067 = vmatprep.subr.bf16.mxu0 %v2032
    %2068 = vmatpush1.bf16.msra.mxu0 %v2031
    %2069 = vmatprep.subr.bf16.mxu0 %v2028
    %2070 = vmatpush1.bf16.msra.mxu0 %v2027
    %2071 = vmatprep.subr.bf16.mxu0 %v2024
    %2072 = vmatpush1.bf16.msra.mxu0 %v2023
    %2073 = vmatprep.subr.bf16.mxu0 %v2020
    %2074 = vmatpush1.bf16.msra.mxu0 %v2019
    %2075 = vmatprep.subr.bf16.mxu0 %v2016
    %2076 = vmatpush1.bf16.msra.mxu0 %v2015
    %2077 = vmatprep.subr.bf16.mxu0 %v2012
    %2078 = vmatpush1.bf16.msra.mxu0 %v2011
    %2079 = vmatprep.subr.bf16.mxu0 %v2008
    %2080 = vmatpush1.bf16.msra.mxu0 %v2007
    %2081 = vmatprep.subr.bf16.mxu0 %v2004
    %2082 = vmatpush1.bf16.msra.mxu0 %v2003
    %2083 = vmatprep.subr.bf16.mxu0 0
    %2084 = vmatpush2.bf16.msra.mxu0 0
    %2085 = vmatprep.subr.bf16.mxu0 0
    %2086 = vmatpush2.bf16.msra.mxu0 0
    %2087 = vmatprep.subr.bf16.mxu0 0
    %2088 = vmatpush2.bf16.msra.mxu0 0
    %2089 = vmatprep.subr.bf16.mxu0 0
    %2090 = vmatpush2.bf16.msra.mxu0 0
    %2091 = vmatprep.subr.bf16.mxu0 0
    %2092 = vmatpush2.bf16.msra.mxu0 0
    %2093 = vmatprep.subr.bf16.mxu0 0
    %2094 = vmatpush2.bf16.msra.mxu0 0
    %2095 = vmatprep.subr.bf16.mxu0 0
    %2096 = vmatpush2.bf16.msra.mxu0 0
    %2097 = vmatprep.subr.bf16.mxu0 0
    %2098 = vmatpush2.bf16.msra.mxu0 0
    %2099 = vmatprep.mubr.bf16.mxu0 0
    %2100 = vmatmul.mubr.bf16.gmra.mxu0 %v1874
    %v2101 = vpop.f32.mrf.mxu0
    %v2102 = vadd.f32 0.0, %v2101
    %v2103 = vpop.f32.mrf.mxu0
    %v2104 = vadd.f32 0.0, %v2103
    %v2105 = vpop.f32.mrf.mxu0
    %v2106 = vpop.f32.mrf.mxu0
    %2107 = vdwg.mxu0
    %2108 = vmatprep.subr.bf16.mxu0 %v2034
    %2109 = vmatpush1.bf16.msra.mxu0 %v2033
    %2110 = vmatprep.subr.bf16.mxu0 %v2030
    %2111 = vmatpush1.bf16.msra.mxu0 %v2029
    %2112 = vmatprep.subr.bf16.mxu0 %v2026
    %2113 = vmatpush1.bf16.msra.mxu0 %v2025
    %2114 = vmatprep.subr.bf16.mxu0 %v2022
    %2115 = vmatpush1.bf16.msra.mxu0 %v2021
    %2116 = vmatprep.subr.bf16.mxu0 %v2018
    %2117 = vmatpush1.bf16.msra.mxu0 %v2017
    %2118 = vmatprep.subr.bf16.mxu0 %v2014
    %2119 = vmatpush1.bf16.msra.mxu0 %v2013
    %2120 = vmatprep.subr.bf16.mxu0 %v2010
    %2121 = vmatpush1.bf16.msra.mxu0 %v2009
    %2122 = vmatprep.subr.bf16.mxu0 %v2006
    %2123 = vmatpush1.bf16.msra.mxu0 %v2005
    %2124 = vmatprep.subr.bf16.mxu0 0
    %2125 = vmatpush2.bf16.msra.mxu0 0
    %2126 = vmatprep.subr.bf16.mxu0 0
    %2127 = vmatpush2.bf16.msra.mxu0 0
    %2128 = vmatprep.subr.bf16.mxu0 0
    %2129 = vmatpush2.bf16.msra.mxu0 0
    %2130 = vmatprep.subr.bf16.mxu0 0
    %2131 = vmatpush2.bf16.msra.mxu0 0
    %2132 = vmatprep.subr.bf16.mxu0 0
    %2133 = vmatpush2.bf16.msra.mxu0 0
    %2134 = vmatprep.subr.bf16.mxu0 0
    %2135 = vmatpush2.bf16.msra.mxu0 0
    %2136 = vmatprep.subr.bf16.mxu0 0
    %2137 = vmatpush2.bf16.msra.mxu0 0
    %2138 = vmatprep.subr.bf16.mxu0 0
    %2139 = vmatpush2.bf16.msra.mxu0 0
    %2140 = vmatprep.mubr.bf16.mxu0 0
    %2141 = vmatmul.mubr.bf16.gmra.mxu0 %v1874
    %v2142 = vpop.f32.mrf.mxu0
    %v2143 = vadd.f32 0.0, %v2142
    %v2144 = vpop.f32.mrf.mxu0
    %v2145 = vadd.f32 0.0, %v2144
    %v2146 = vpop.f32.mrf.mxu0
    %v2147 = vpop.f32.mrf.mxu0
    %2148 = vdwg.mxu0
    %v2149 = vadd.f32 %v1870, %v2102
    %v2150 = vadd.f32 %v1871, %v2104
    %v2151 = vadd.f32 %v1872, %v2143
    %v2152 = vadd.f32 %v1873, %v2145
    %v2153 = vmul.f32 %v2149, 0.5
    %v2154 = vtanh.pop %v2153
    %v2155 = vmul.f32 %v2154, 0.5
    %v2156 = vadd.f32 %v2155, 0.5
    %v2157 = vmul.f32 %v2150, 0.5
    %v2158 = vtanh.pop %v2157
    %v2159 = vmul.f32 %v2158, 0.5
    %v2160 = vadd.f32 %v2159, 0.5
    %v2161 = vtanh.pop %v2151
    %v2162 = vmul.f32 %v2152, 0.5
    %v2163 = vtanh.pop %v2162
    %v2164 = vmul.f32 %v2163, 0.5
    %v2165 = vadd.f32 %v2164, 0.5
    %v2166 = vmul.f32 %v2160, %v1862
    %v2167 = vmul.f32 %v2156, %v2161
    %v2168 = vadd.f32 %v2166, %v2167
    %v2169 = vtanh.pop %v2168
    %v2170 = vmul.f32 %v2165, %v2169
    %s2171 = scalar_lea.vmem [#allocation4], 48
    %2172 = vst [vmem:[%s2171] sm:$0xff] %v2170
    %s2173 = scalar_lea.vmem %s0, 112
    %v2174 = vld [vmem:[%s2173] sm:$0xff]
    %v2175 = vld [vmem:[%s2173 + $0x8] sm:$0xff]
    %v2176 = vunpack.c.l.bf16 %v2174
    %v2177 = vunpack.c.h.bf16 %v2174
    %v2178 = vunpack.c.l.bf16 %v2175
    %v2179 = vunpack.c.h.bf16 %v2175
    %v2180 = vpack.c.bf16 %v2170, %v2170
    %v2181 = vld [vmem:[%s3] sm:$0xff]
    %v2182 = vld [vmem:[%s3 + $0x8] sm:$0xff]
    %v2183 = vld [vmem:[%s3 + $0x10] sm:$0xff]
    %v2184 = vld [vmem:[%s3 + $0x18] sm:$0xff]
    %v2185 = vld [vmem:[%s3 + $0x20] sm:$0xff]
    %v2186 = vld [vmem:[%s3 + $0x28] sm:$0xff]
    %v2187 = vld [vmem:[%s3 + $0x30] sm:$0xff]
    %v2188 = vld [vmem:[%s3 + $0x38] sm:$0xff]
    %v2189 = vld [vmem:[%s3 + $0x40] sm:$0xff]
    %v2190 = vld [vmem:[%s3 + $0x48] sm:$0xff]
    %v2191 = vld [vmem:[%s3 + $0x50] sm:$0xff]
    %v2192 = vld [vmem:[%s3 + $0x58] sm:$0xff]
    %v2193 = vld [vmem:[%s3 + $0x60] sm:$0xff]
    %v2194 = vld [vmem:[%s3 + $0x68] sm:$0xff]
    %v2195 = vld [vmem:[%s3 + $0x70] sm:$0xff]
    %v2196 = vld [vmem:[%s3 + $0x78] sm:$0xff]
    %v2197 = vld [vmem:[%s3 + $0x80] sm:$0xff]
    %v2198 = vld [vmem:[%s3 + $0x88] sm:$0xff]
    %v2199 = vld [vmem:[%s3 + $0x90] sm:$0xff]
    %v2200 = vld [vmem:[%s3 + $0x98] sm:$0xff]
    %v2201 = vld [vmem:[%s3 + $0xa0] sm:$0xff]
    %v2202 = vld [vmem:[%s3 + $0xa8] sm:$0xff]
    %v2203 = vld [vmem:[%s3 + $0xb0] sm:$0xff]
    %v2204 = vld [vmem:[%s3 + $0xb8] sm:$0xff]
    %v2205 = vld [vmem:[%s3 + $0xc0] sm:$0xff]
    %v2206 = vld [vmem:[%s3 + $0xc8] sm:$0xff]
    %v2207 = vld [vmem:[%s3 + $0xd0] sm:$0xff]
    %v2208 = vld [vmem:[%s3 + $0xd8] sm:$0xff]
    %v2209 = vld [vmem:[%s3 + $0xe0] sm:$0xff]
    %v2210 = vld [vmem:[%s3 + $0xe8] sm:$0xff]
    %v2211 = vld [vmem:[%s3 + $0xf0] sm:$0xff]
    %v2212 = vld [vmem:[%s3 + $0xf8] sm:$0xff]
    %v2245 = vunpack.c.l.b16 %v2181
    %v2246 = vunpack.c.h.b16 %v2181
    %v2247 = vunpack.c.l.b16 %v2182
    %v2248 = vunpack.c.h.b16 %v2182
    %v2249 = vunpack.c.l.b16 %v2183
    %v2250 = vunpack.c.h.b16 %v2183
    %v2251 = vunpack.c.l.b16 %v2184
    %v2252 = vunpack.c.h.b16 %v2184
    %v2253 = vunpack.c.l.b16 %v2185
    %v2254 = vunpack.c.h.b16 %v2185
    %v2255 = vunpack.c.l.b16 %v2186
    %v2256 = vunpack.c.h.b16 %v2186
    %v2257 = vunpack.c.l.b16 %v2187
    %v2258 = vunpack.c.h.b16 %v2187
    %v2259 = vunpack.c.l.b16 %v2188
    %v2260 = vunpack.c.h.b16 %v2188
    %v2261 = vunpack.c.l.b16 %v2189
    %v2262 = vunpack.c.h.b16 %v2189
    %v2263 = vunpack.c.l.b16 %v2190
    %v2264 = vunpack.c.h.b16 %v2190
    %v2265 = vunpack.c.l.b16 %v2191
    %v2266 = vunpack.c.h.b16 %v2191
    %v2267 = vunpack.c.l.b16 %v2192
    %v2268 = vunpack.c.h.b16 %v2192
    %v2269 = vunpack.c.l.b16 %v2193
    %v2270 = vunpack.c.h.b16 %v2193
    %v2271 = vunpack.c.l.b16 %v2194
    %v2272 = vunpack.c.h.b16 %v2194
    %v2273 = vunpack.c.l.b16 %v2195
    %v2274 = vunpack.c.h.b16 %v2195
    %v2275 = vunpack.c.l.b16 %v2196
    %v2276 = vunpack.c.h.b16 %v2196
    %v2277 = vunpack.c.l.b16 %v2197
    %v2278 = vunpack.c.h.b16 %v2197
    %v2279 = vunpack.c.l.b16 %v2198
    %v2280 = vunpack.c.h.b16 %v2198
    %v2281 = vunpack.c.l.b16 %v2199
    %v2282 = vunpack.c.h.b16 %v2199
    %v2283 = vunpack.c.l.b16 %v2200
    %v2284 = vunpack.c.h.b16 %v2200
    %v2285 = vunpack.c.l.b16 %v2201
    %v2286 = vunpack.c.h.b16 %v2201
    %v2287 = vunpack.c.l.b16 %v2202
    %v2288 = vunpack.c.h.b16 %v2202
    %v2289 = vunpack.c.l.b16 %v2203
    %v2290 = vunpack.c.h.b16 %v2203
    %v2291 = vunpack.c.l.b16 %v2204
    %v2292 = vunpack.c.h.b16 %v2204
    %v2293 = vunpack.c.l.b16 %v2205
    %v2294 = vunpack.c.h.b16 %v2205
    %v2295 = vunpack.c.l.b16 %v2206
    %v2296 = vunpack.c.h.b16 %v2206
    %v2297 = vunpack.c.l.b16 %v2207
    %v2298 = vunpack.c.h.b16 %v2207
    %v2299 = vunpack.c.l.b16 %v2208
    %v2300 = vunpack.c.h.b16 %v2208
    %v2301 = vunpack.c.l.b16 %v2209
    %v2302 = vunpack.c.h.b16 %v2209
    %v2303 = vunpack.c.l.b16 %v2210
    %v2304 = vunpack.c.h.b16 %v2210
    %v2305 = vunpack.c.l.b16 %v2211
    %v2306 = vunpack.c.h.b16 %v2211
    %v2307 = vunpack.c.l.b16 %v2212
    %v2308 = vunpack.c.h.b16 %v2212
    %v2309 = vpack.c.b16 %v2249, %v2245
    %v2310 = vpack.c.b16 %v2250, %v2246
    %v2311 = vpack.c.b16 %v2251, %v2247
    %v2312 = vpack.c.b16 %v2252, %v2248
    %v2313 = vpack.c.b16 %v2257, %v2253
    %v2314 = vpack.c.b16 %v2258, %v2254
    %v2315 = vpack.c.b16 %v2259, %v2255
    %v2316 = vpack.c.b16 %v2260, %v2256
    %v2317 = vpack.c.b16 %v2265, %v2261
    %v2318 = vpack.c.b16 %v2266, %v2262
    %v2319 = vpack.c.b16 %v2267, %v2263
    %v2320 = vpack.c.b16 %v2268, %v2264
    %v2321 = vpack.c.b16 %v2273, %v2269
    %v2322 = vpack.c.b16 %v2274, %v2270
    %v2323 = vpack.c.b16 %v2275, %v2271
    %v2324 = vpack.c.b16 %v2276, %v2272
    %v2325 = vpack.c.b16 %v2281, %v2277
    %v2326 = vpack.c.b16 %v2282, %v2278
    %v2327 = vpack.c.b16 %v2283, %v2279
    %v2328 = vpack.c.b16 %v2284, %v2280
    %v2329 = vpack.c.b16 %v2289, %v2285
    %v2330 = vpack.c.b16 %v2290, %v2286
    %v2331 = vpack.c.b16 %v2291, %v2287
    %v2332 = vpack.c.b16 %v2292, %v2288
    %v2333 = vpack.c.b16 %v2297, %v2293
    %v2334 = vpack.c.b16 %v2298, %v2294
    %v2335 = vpack.c.b16 %v2299, %v2295
    %v2336 = vpack.c.b16 %v2300, %v2296
    %v2337 = vpack.c.b16 %v2305, %v2301
    %v2338 = vpack.c.b16 %v2306, %v2302
    %v2339 = vpack.c.b16 %v2307, %v2303
    %v2340 = vpack.c.b16 %v2308, %v2304
    %2373 = vmatprep.subr.bf16.mxu0 %v2338
    %2374 = vmatpush1.bf16.msra.mxu0 %v2337
    %2375 = vmatprep.subr.bf16.mxu0 %v2334
    %2376 = vmatpush1.bf16.msra.mxu0 %v2333
    %2377 = vmatprep.subr.bf16.mxu0 %v2330
    %2378 = vmatpush1.bf16.msra.mxu0 %v2329
    %2379 = vmatprep.subr.bf16.mxu0 %v2326
    %2380 = vmatpush1.bf16.msra.mxu0 %v2325
    %2381 = vmatprep.subr.bf16.mxu0 %v2322
    %2382 = vmatpush1.bf16.msra.mxu0 %v2321
    %2383 = vmatprep.subr.bf16.mxu0 %v2318
    %2384 = vmatpush1.bf16.msra.mxu0 %v2317
    %2385 = vmatprep.subr.bf16.mxu0 %v2314
    %2386 = vmatpush1.bf16.msra.mxu0 %v2313
    %2387 = vmatprep.subr.bf16.mxu0 %v2310
    %2388 = vmatpush1.bf16.msra.mxu0 %v2309
    %2389 = vmatprep.subr.bf16.mxu0 0
    %2390 = vmatpush2.bf16.msra.mxu0 0
    %2391 = vmatprep.subr.bf16.mxu0 0
    %2392 = vmatpush2.bf16.msra.mxu0 0
    %2393 = vmatprep.subr.bf16.mxu0 0
    %2394 = vmatpush2.bf16.msra.mxu0 0
    %2395 = vmatprep.subr.bf16.mxu0 0
    %2396 = vmatpush2.bf16.msra.mxu0 0
    %2397 = vmatprep.subr.bf16.mxu0 0
    %2398 = vmatpush2.bf16.msra.mxu0 0
    %2399 = vmatprep.subr.bf16.mxu0 0
    %2400 = vmatpush2.bf16.msra.mxu0 0
    %2401 = vmatprep.subr.bf16.mxu0 0
    %2402 = vmatpush2.bf16.msra.mxu0 0
    %2403 = vmatprep.subr.bf16.mxu0 0
    %2404 = vmatpush2.bf16.msra.mxu0 0
    %2405 = vmatprep.mubr.bf16.mxu0 0
    %2406 = vmatmul.mubr.bf16.gmra.mxu0 %v2180
    %v2407 = vpop.f32.mrf.mxu0
    %v2408 = vadd.f32 0.0, %v2407
    %v2409 = vpop.f32.mrf.mxu0
    %v2410 = vadd.f32 0.0, %v2409
    %v2411 = vpop.f32.mrf.mxu0
    %v2412 = vpop.f32.mrf.mxu0
    %2413 = vdwg.mxu0
    %2414 = vmatprep.subr.bf16.mxu0 %v2340
    %2415 = vmatpush1.bf16.msra.mxu0 %v2339
    %2416 = vmatprep.subr.bf16.mxu0 %v2336
    %2417 = vmatpush1.bf16.msra.mxu0 %v2335
    %2418 = vmatprep.subr.bf16.mxu0 %v2332
    %2419 = vmatpush1.bf16.msra.mxu0 %v2331
    %2420 = vmatprep.subr.bf16.mxu0 %v2328
    %2421 = vmatpush1.bf16.msra.mxu0 %v2327
    %2422 = vmatprep.subr.bf16.mxu0 %v2324
    %2423 = vmatpush1.bf16.msra.mxu0 %v2323
    %2424 = vmatprep.subr.bf16.mxu0 %v2320
    %2425 = vmatpush1.bf16.msra.mxu0 %v2319
    %2426 = vmatprep.subr.bf16.mxu0 %v2316
    %2427 = vmatpush1.bf16.msra.mxu0 %v2315
    %2428 = vmatprep.subr.bf16.mxu0 %v2312
    %2429 = vmatpush1.bf16.msra.mxu0 %v2311
    %2430 = vmatprep.subr.bf16.mxu0 0
    %2431 = vmatpush2.bf16.msra.mxu0 0
    %2432 = vmatprep.subr.bf16.mxu0 0
    %2433 = vmatpush2.bf16.msra.mxu0 0
    %2434 = vmatprep.subr.bf16.mxu0 0
    %2435 = vmatpush2.bf16.msra.mxu0 0
    %2436 = vmatprep.subr.bf16.mxu0 0
    %2437 = vmatpush2.bf16.msra.mxu0 0
    %2438 = vmatprep.subr.bf16.mxu0 0
    %2439 = vmatpush2.bf16.msra.mxu0 0
    %2440 = vmatprep.subr.bf16.mxu0 0
    %2441 = vmatpush2.bf16.msra.mxu0 0
    %2442 = vmatprep.subr.bf16.mxu0 0
    %2443 = vmatpush2.bf16.msra.mxu0 0
    %2444 = vmatprep.subr.bf16.mxu0 0
    %2445 = vmatpush2.bf16.msra.mxu0 0
    %2446 = vmatprep.mubr.bf16.mxu0 0
    %2447 = vmatmul.mubr.bf16.gmra.mxu0 %v2180
    %v2448 = vpop.f32.mrf.mxu0
    %v2449 = vadd.f32 0.0, %v2448
    %v2450 = vpop.f32.mrf.mxu0
    %v2451 = vadd.f32 0.0, %v2450
    %v2452 = vpop.f32.mrf.mxu0
    %v2453 = vpop.f32.mrf.mxu0
    %2454 = vdwg.mxu0
    %v2455 = vadd.f32 %v2176, %v2408
    %v2456 = vadd.f32 %v2177, %v2410
    %v2457 = vadd.f32 %v2178, %v2449
    %v2458 = vadd.f32 %v2179, %v2451
    %v2459 = vmul.f32 %v2455, 0.5
    %v2460 = vtanh.pop %v2459
    %v2461 = vmul.f32 %v2460, 0.5
    %v2462 = vadd.f32 %v2461, 0.5
    %v2463 = vmul.f32 %v2456, 0.5
    %v2464 = vtanh.pop %v2463
    %v2465 = vmul.f32 %v2464, 0.5
    %v2466 = vadd.f32 %v2465, 0.5
    %v2467 = vtanh.pop %v2457
    %v2468 = vmul.f32 %v2458, 0.5
    %v2469 = vtanh.pop %v2468
    %v2470 = vmul.f32 %v2469, 0.5
    %v2471 = vadd.f32 %v2470, 0.5
    %v2472 = vmul.f32 %v2466, %v2168
    %v2473 = vmul.f32 %v2462, %v2467
    %v2474 = vadd.f32 %v2472, %v2473
    %v2475 = vtanh.pop %v2474
    %v2476 = vmul.f32 %v2471, %v2475
    %s2477 = scalar_lea.vmem [#allocation4], 56
    %2478 = vst [vmem:[%s2477] sm:$0xff] %v2476
    %2479 = vst [vmem:[#allocation2] sm:$0xff] %v2476
    %2480 = vst [vmem:[#allocation3] sm:$0xff] %v2474
    // Predicated region
    $region22: #{_lstm_layer_jit.1} parent=1 // pred_check
      %p2481 = pneg %p23
    $region23: #{_lstm_layer_jit.1} parent=1 // pred_check_branch
      %2483 = sbr.rel (%p2481) target = $region25
    $region24: #{_lstm_layer_jit.1} parent=1 // pred_region
      %v2484 = vld [vmem:[#allocation2] sm:$0xff]
      %2485 = vst [vmem:[#allocation6] sm:$0xff] %v2484
      %v2486 = vld [vmem:[#allocation3] sm:$0xff]
      %2487 = vst [vmem:[#allocation8] sm:$0xff] %v2486
    $region25: #{_lstm_layer_jit.1} parent=1 // pred_fallthru
      _
    // Predicated region
    $region26: #{_lstm_layer_jit.1} parent=1 // pred_check
      _
    $region27: #{_lstm_layer_jit.1} parent=1 // pred_check_branch
      %2489 = sbr.rel (0) target = $region29
    $region28: #{_lstm_layer_jit.1} parent=1 // pred_region
      %s2491 = ssub.s32 1024, 1024
      %2492 = vsyncadd [#allocation5], %s2491
      %s2493 = sshll.u32 [#allocation4], 4
      %s2494 = int_to_ptr.vmem [resolvable:$true] %s2493
      %2499 = dma.vmem_to_hbm [thread:$0]  %s2494, 1024, %s4, [#allocation5], 128, 128, 8
    $region29: #{_lstm_layer_jit.1} parent=1 // pred_fallthru
      _
    // Predicated region
    $region30: #{_lstm_layer_jit.1} parent=1 // pred_check
      _
    $region31: #{_lstm_layer_jit.1} parent=1 // pred_check_branch
      %2501 = sbr.rel (0) target = $region33
    $region32: #{_lstm_layer_jit.1} parent=1 // pred_region
      %s2503 = ssub.s32 128, 128
      %2504 = vsyncadd [#allocation7], %s2503
      %s2506 = sshll.u32 [#allocation6], 4
      %s2507 = int_to_ptr.vmem [resolvable:$true] %s2506
      %2509 = dma.vmem_to_hbm [thread:$0]  %s2507, 128, %s5, [#allocation7]
    $region33: #{_lstm_layer_jit.1} parent=1 // pred_fallthru
      _
    // Predicated region
    $region34: #{_lstm_layer_jit.1} parent=1 // pred_check
      _
    $region35: #{_lstm_layer_jit.1} parent=1 // pred_check_branch
      %2511 = sbr.rel (0) target = $region37
    $region36: #{_lstm_layer_jit.1} parent=1 // pred_region
      %s2513 = ssub.s32 128, 128
      %2514 = vsyncadd [#allocation7], %s2513
      %s2516 = sshll.u32 [#allocation8], 4
      %s2517 = int_to_ptr.vmem [resolvable:$true] %s2516
      %2519 = dma.vmem_to_hbm [thread:$0]  %s2517, 128, %s6, [#allocation7]
    $region37: #{_lstm_layer_jit.1} parent=1 // pred_fallthru
      _
    // Predicated region
    $region38: #{_lstm_layer_jit.1} parent=1 // pred_check
      _
    $region39: #{_lstm_layer_jit.1} parent=1 // pred_check_branch
      %2521 = sbr.rel (0) target = $region41
    $region40: #{_lstm_layer_jit.1} parent=1 // pred_region
      %2522 = dma.done [#allocation5], 1024
    $region41: #{_lstm_layer_jit.1} parent=1 // pred_fallthru
      _
    // Predicated region
    $region42: #{_lstm_layer_jit.1} parent=1 // pred_check
      _
    $region43: #{_lstm_layer_jit.1} parent=1 // pred_check_branch
      %2524 = sbr.rel (0) target = $region45
    $region44: #{_lstm_layer_jit.1} parent=1 // pred_region
      %2525 = dma.done [#allocation7], 128
    $region45: #{_lstm_layer_jit.1} parent=1 // pred_fallthru
      _
    // Predicated region
    $region46: #{_lstm_layer_jit.1} parent=1 // pred_check
      _
    $region47: #{_lstm_layer_jit.1} parent=1 // pred_check_branch
      %2527 = sbr.rel (0) target = $region49
    $region48: #{_lstm_layer_jit.1} parent=1 // pred_region
      %2528 = dma.done [#allocation7], 128
    $region49: #{_lstm_layer_jit.1} parent=1 // pred_fallthru
      _
    %2529 = vsyncpa [#allocation5], 1
    %2530 = vsyncpa [#allocation7], 1

</llo_original>
